<compile_context>
chip_gen: v6e
topology: v6e:2x2x1
jax: 0.10.0
libtpu: 0.0.40
codegen_flags: <defaults>
</compile_context>

<pallas_src>
import functools

import numpy as np
import jax
import jax.numpy as jnp
from jax.experimental import pallas as pl
from jax.experimental.pallas import tpu as pltpu

VMEM = pltpu.MemorySpace.VMEM

# ----------------------------- config ---------------------------------------
BATCH = 2
IN_CH = 3
IMG = 16
EMBED_DIM = 32          # stage-1 embed dim
NUM_HEADS = 2
MLP_RATIO = 2
HIDDEN_DIM = EMBED_DIM * MLP_RATIO
NECK_DIM = 16
NUM_CLASSES = 5
LN_EPS = 1e-6           # PVTv2 uses partial(nn.LayerNorm, eps=1e-6)
PATCH_K, PATCH_S, PATCH_P = 7, 4, 3
OUT_PAD = 128           # lane-dense packed output: [tokens(C) | logits | zeros]
NEG_INF = -1e30


def _gelu_exact(x):
    # matches nn.GELU() default (erf form)
    return 0.5 * x * (1.0 + jax.lax.erf(x * 0.7071067811865476))


# ----------------------------- fused kernel ----------------------------------
def _fused_pvtv2_kernel(
    col_ref,                 # (BN, Cin*49)   im2col patches
    pe_w_ref, pe_b_ref,      # (Cin*49, C), (1, C)
    ln_g_ref, ln_b_ref,      # (4, 1, C): [patch LN, norm1, norm2, norm_final]
    aw_ref, ab_ref,          # (3*heads, C, d), (3*heads, 1, d): q_h*, k_h*, v_h*
    pw_ref, pb_ref,          # (heads, d, C), (1, C)      attention proj
    mask_ref,                # (BN, BN) additive block-diagonal attention mask
    fc1_w_ref, fc1_b_ref,    # (C, Ch), (1, Ch)
    shift_ref,               # (9, BN, BN) block-diag spatial shift matrices
    dw_w_ref, dw_b_ref,      # (9, 1, Ch), (1, Ch)        depthwise 3x3 weights
    fc2_w_ref, fc2_b_ref,    # (Ch, C), (1, C)
    neck_w_ref, neck_b_ref,  # (C, NECK), (1, NECK)
    emb_w_ref,               # (C, OUT_PAD)   identity placed at lanes [0:C)
    head_w_ref, head_b_ref,  # (NECK, OUT_PAD), (1, OUT_PAD) logits at [C:C+cls)
    out_ref,                 # (BN, OUT_PAD)  lane-dense packed output
    *, heads, scale):
  f32 = jnp.float32

  def layernorm(x, idx):
      g = ln_g_ref[idx]                       # (1, C)
      b = ln_b_ref[idx]
      mean = jnp.mean(x, axis=-1, keepdims=True)
      xc = x - mean
      var = jnp.mean(xc * xc, axis=-1, keepdims=True)
      return xc * jax.lax.rsqrt(var + LN_EPS) * g + b

  def mm(x, w_ref, b_ref):
      return jnp.dot(x, w_ref[...], preferred_element_type=f32) + b_ref[...]

  # ---------------- patch embed (im2col GEMM) + LN ----------------
  tok = mm(col_ref[...], pe_w_ref, pe_b_ref)                    # (BN, C)
  tok = layernorm(tok, 0)

  # ---------------- attention (sr_ratio = 1) + residual ----------------
  # Both batch images attended together; cross-image scores are killed by the
  # additive block-diagonal mask (exp -> 0), so per-image softmax is exact.
  h1 = layernorm(tok, 1)
  mask = mask_ref[...]                                          # (BN, BN)
  acc = pb_ref[...]                                             # (1, C) proj bias
  for h in range(heads):                                        # static unroll
      q = (jnp.dot(h1, aw_ref[h], preferred_element_type=f32)
           + ab_ref[h]) * scale                                 # (BN, d)
      k = (jnp.dot(h1, aw_ref[heads + h], preferred_element_type=f32)
           + ab_ref[heads + h])
      v = (jnp.dot(h1, aw_ref[2 * heads + h], preferred_element_type=f32)
           + ab_ref[2 * heads + h])
      s = jnp.dot(q, k.T, preferred_element_type=f32) + mask    # (BN, BN)
      s = s - jnp.max(s, axis=-1, keepdims=True)
      p = jnp.exp(s)
      p = p * pl.reciprocal(jnp.sum(p, axis=-1, keepdims=True), approx=True)
      o = jnp.dot(p, v, preferred_element_type=f32)             # (BN, d)
      acc = acc + jnp.dot(o, pw_ref[h], preferred_element_type=f32)
  tok = tok + acc                                               # residual

  # ---------------- MixFFN: fc1 -> DWConv3x3 -> GELU -> fc2 + residual -------
  h2 = layernorm(tok, 2)
  f1 = mm(h2, fc1_w_ref, fc1_b_ref)                             # (BN, Ch)
  conv = dw_b_ref[...]                                          # (1, Ch)
  for kidx in range(9):                                         # 9 shift-matmuls
      shifted = jnp.dot(shift_ref[kidx], f1, preferred_element_type=f32)
      conv = conv + shifted * dw_w_ref[kidx]
  f2 = mm(_gelu_exact(conv), fc2_w_ref, fc2_b_ref)              # (BN, C)
  tok = tok + f2

  # ------- final LN, neck (1x1), head (1x1), single lane-dense output --------
  tok_n = layernorm(tok, 3)                                     # (BN, C)
  nk = mm(tok_n, neck_w_ref, neck_b_ref)                        # (BN, NECK)
  packed = (jnp.dot(tok_n, emb_w_ref[...], preferred_element_type=f32)
            + jnp.dot(nk, head_w_ref[...], preferred_element_type=f32)
            + head_b_ref[...])                                  # (BN, OUT_PAD)
  out_ref[...] = packed.astype(out_ref.dtype)


# ----------------------------- wrapper glue ----------------------------------
def _im2col(x_nchw, ksize, stride, pad):
    """Overlapping-patch im2col (plain-JAX layout plumbing)."""
    B, Cin, H, W = x_nchw.shape
    xp = jnp.pad(x_nchw, ((0, 0), (0, 0), (pad, pad), (pad, pad)))
    Ho = (H + 2 * pad - ksize) // stride + 1
    Wo = (W + 2 * pad - ksize) // stride + 1
    cols = []
    for i in range(ksize):
        for j in range(ksize):
            cols.append(xp[:, :, i:i + stride * Ho:stride, j:j + stride * Wo:stride])
    col = jnp.stack(cols, axis=2)                      # [B, Cin, k*k, Ho, Wo]
    col = col.transpose(0, 3, 4, 1, 2).reshape(B * Ho * Wo, Cin * ksize * ksize)
    return col, Ho, Wo


def _make_shift_mats(B, H, W):
    """9 block-diagonal (BN, BN) 0/1 matrices: P_k @ x == x spatially shifted by
    the k-th 3x3 tap (zero outside the image), per batch image."""
    N = H * W
    mats = np.zeros((9, B * N, B * N), dtype=np.float32)
    for di in range(3):
        for dj in range(3):
            k = di * 3 + dj
            for b in range(B):
                for i in range(H):
                    for j in range(W):
                        si, sj = i + di - 1, j + dj - 1
                        if 0 <= si < H and 0 <= sj < W:
                            mats[k, b * N + i * W + j, b * N + si * W + sj] = 1.0
    return jnp.asarray(mats)


def _make_block_mask(B, N):
    """Additive attention mask: 0 within an image, NEG_INF across images."""
    m = np.full((B * N, B * N), NEG_INF, dtype=np.float32)
    for b in range(B):
        m[b * N:(b + 1) * N, b * N:(b + 1) * N] = 0.0
    return jnp.asarray(m)


def init_params(key):
    def nrm(k, shape, scale=0.02):
        return scale * jax.random.normal(k, shape, dtype=jnp.float32)

    ks = jax.random.split(key, 9)
    C, Ch, Cn = EMBED_DIM, HIDDEN_DIM, NECK_DIM
    ones = lambda n: jnp.ones((n,), jnp.float32)
    zeros = lambda n: jnp.zeros((n,), jnp.float32)
    return {
        "pe_w": nrm(ks[0], (C, IN_CH, 7, 7)), "pe_b": zeros(C),
        "pe_ln_g": ones(C), "pe_ln_b": zeros(C),
        "n1_g": ones(C), "n1_b": zeros(C),
        "q_w": nrm(ks[1], (C, C)), "q_b": zeros(C),
        "kv_w": nrm(ks[2], (C, 2 * C)), "kv_b": zeros(2 * C),
        "proj_w": nrm(ks[3], (C, C)), "proj_b": zeros(C),
        "n2_g": ones(C), "n2_b": zeros(C),
        "fc1_w": nrm(ks[4], (C, Ch)), "fc1_b": zeros(Ch),
        "dw_w": nrm(ks[5], (3, 3, Ch)), "dw_b": zeros(Ch),
        "fc2_w": nrm(ks[6], (Ch, C)), "fc2_b": zeros(C),
        "nf_g": ones(C), "nf_b": zeros(C),
        "neck_w": nrm(ks[7], (C, Cn)), "neck_b": zeros(Cn),
        "head_w": nrm(ks[8], (Cn, NUM_CLASSES)), "head_b": zeros(NUM_CLASSES),
    }


def pvtv2_forward(params, x, is_feat=True):
    B = x.shape[0]
    C, Ch, heads = EMBED_DIM, HIDDEN_DIM, NUM_HEADS
    d = C // heads

    col, H, W = _im2col(x, PATCH_K, PATCH_S, PATCH_P)       # [B*N, Cin*49]
    N = H * W
    BN = B * N

    # ---- pack weights for the fused kernel (pure layout plumbing) ----
    pe_w = params["pe_w"].reshape(C, -1).T                  # [Cin*49, C]
    ln_g = jnp.stack([params["pe_ln_g"], params["n1_g"],
                      params["n2_g"], params["nf_g"]]).reshape(4, 1, C)
    ln_b = jnp.stack([params["pe_ln_b"], params["n1_b"],
                      params["n2_b"], params["nf_b"]]).reshape(4, 1, C)
    qw, qb = params["q_w"], params["q_b"]
    kvw, kvb = params["kv_w"], params["kv_b"]
    aw = jnp.stack([qw[:, h * d:(h + 1) * d] for h in range(heads)]
                   + [kvw[:, h * d:(h + 1) * d] for h in range(heads)]
                   + [kvw[:, C + h * d:C + (h + 1) * d] for h in range(heads)],
                   axis=0)                                  # (3*heads, C, d)
    ab = jnp.stack([qb[h * d:(h + 1) * d] for h in range(heads)]
                   + [kvb[h * d:(h + 1) * d] for h in range(heads)]
                   + [kvb[C + h * d:C + (h + 1) * d] for h in range(heads)],
                   axis=0).reshape(3 * heads, 1, d)
    pw = jnp.stack([params["proj_w"][h * d:(h + 1) * d, :] for h in range(heads)],
                   axis=0)                                  # (heads, d, C)
    pb = params["proj_b"].reshape(1, C)
    attn_mask = _make_block_mask(B, N)                      # (BN, BN)
    shift = _make_shift_mats(B, H, W)                       # (9, BN, BN)
    dw_w = params["dw_w"].reshape(9, 1, Ch)
    dw_b = params["dw_b"].reshape(1, Ch)
    # lane-dense packed readout: cols [0:C) tokens, [C:C+cls) head logits
    emb_w = jnp.zeros((C, OUT_PAD), jnp.float32
                      ).at[:, :C].set(jnp.eye(C, dtype=jnp.float32))
    head_w = jnp.zeros((NECK_DIM, OUT_PAD), jnp.float32
                       ).at[:, C:C + NUM_CLASSES].set(params["head_w"])
    head_b = jnp.zeros((1, OUT_PAD), jnp.float32
                       ).at[:, C:C + NUM_CLASSES].set(params["head_b"].reshape(1, -1))

    kernel = functools.partial(_fused_pvtv2_kernel, heads=heads,
                               scale=float(d) ** -0.5)
    vspec = pl.BlockSpec(memory_space=VMEM)
    packed = pl.pallas_call(
        kernel,
        out_shape=jax.ShapeDtypeStruct((BN, OUT_PAD), jnp.float32),
        in_specs=[vspec] * 22,
        out_specs=vspec,
    )(col, pe_w, params["pe_b"].reshape(1, C), ln_g, ln_b, aw, ab, pw, pb,
      attn_mask, params["fc1_w"], params["fc1_b"].reshape(1, Ch),
      shift, dw_w, dw_b, params["fc2_w"], params["fc2_b"].reshape(1, C),
      params["neck_w"], params["neck_b"].reshape(1, NECK_DIM),
      emb_w, head_w, head_b)

    tok_n = packed[:, :C]                                   # final-LN tokens
    logits = packed[:, C:C + NUM_CLASSES]
    embeds = tok_n.reshape(B, N, C)
    features = tok_n.reshape(B, H, W, C).transpose(0, 3, 1, 2)          # NCHW
    outs = logits.reshape(B, H, W, NUM_CLASSES).transpose(0, 3, 1, 2)   # NCHW
    if is_feat:
        return features, outs, embeds
    return outs


# ----------------------------- main ------------------------------------------
if __name__ == "__main__":
    key = jax.random.PRNGKey(0)
    kx, kp = jax.random.split(key)
    x = jax.random.normal(kx, (BATCH, IN_CH, IMG, IMG), dtype=jnp.float32)
    params = init_params(kp)

    fwd = jax.jit(lambda p, xx: pvtv2_forward(p, xx, is_feat=True))
    features, outs, embeds = fwd(params, x)
    jax.block_until_ready((features, outs, embeds))

    assert features.shape == (BATCH, EMBED_DIM, IMG // 4, IMG // 4)
    assert outs.shape == (BATCH, NUM_CLASSES, IMG // 4, IMG // 4)
    assert embeds.shape == (BATCH, (IMG // 4) * (IMG // 4), EMBED_DIM)
    assert jnp.all(jnp.isfinite(features)) and jnp.all(jnp.isfinite(outs))
    print("KERNEL_OK")
</pallas_src>

<mosaic_0001>
module attributes {stable_mosaic.version = 11 : i64} {
  func.func @_fused_pvtv2_kernel(%arg0: memref<32x147xf32, #tpu.memory_space<vmem>>, %arg1: memref<147x32xf32, #tpu.memory_space<vmem>>, %arg2: memref<1x32xf32, #tpu.memory_space<vmem>>, %arg3: memref<4x1x32xf32, #tpu.memory_space<vmem>>, %arg4: memref<4x1x32xf32, #tpu.memory_space<vmem>>, %arg5: memref<6x32x16xf32, #tpu.memory_space<vmem>>, %arg6: memref<6x1x16xf32, #tpu.memory_space<vmem>>, %arg7: memref<2x16x32xf32, #tpu.memory_space<vmem>>, %arg8: memref<1x32xf32, #tpu.memory_space<vmem>>, %arg9: memref<32x32xf32, #tpu.memory_space<vmem>>, %arg10: memref<32x64xf32, #tpu.memory_space<vmem>>, %arg11: memref<1x64xf32, #tpu.memory_space<vmem>>, %arg12: memref<9x32x32xf32, #tpu.memory_space<vmem>>, %arg13: memref<9x1x64xf32, #tpu.memory_space<vmem>>, %arg14: memref<1x64xf32, #tpu.memory_space<vmem>>, %arg15: memref<64x32xf32, #tpu.memory_space<vmem>>, %arg16: memref<1x32xf32, #tpu.memory_space<vmem>>, %arg17: memref<32x16xf32, #tpu.memory_space<vmem>>, %arg18: memref<1x16xf32, #tpu.memory_space<vmem>>, %arg19: memref<32x128xf32, #tpu.memory_space<vmem>>, %arg20: memref<16x128xf32, #tpu.memory_space<vmem>>, %arg21: memref<1x128xf32, #tpu.memory_space<vmem>>, %arg22: memref<32x128xf32, #tpu.memory_space<vmem>>) attributes {dimension_semantics = [], scalar_prefetch = 0 : i64, scratch_operands = 0 : i64, tpu.core_type = #tpu.core_type<tc>} {
    %c0 = arith.constant 0 : index
    %c0_0 = arith.constant 0 : index
    %0 = vector.load %arg0[%c0, %c0_0] : memref<32x147xf32, #tpu.memory_space<vmem>>, vector<32x147xf32>
    %c0_1 = arith.constant 0 : index
    %c0_2 = arith.constant 0 : index
    %1 = vector.load %arg1[%c0_1, %c0_2] : memref<147x32xf32, #tpu.memory_space<vmem>>, vector<147x32xf32>
    %cst = arith.constant dense<0.000000e+00> : vector<32x32xf32>
    %2 = tpu.matmul %0, %1, %cst {dimension_numbers = #tpu.dot_dimension_numbers<[1], [0], [0], [1], [0, 0, 1, 1], [], []>} : vector<32x147xf32>, vector<147x32xf32>, vector<32x32xf32> -> vector<32x32xf32>
    %c0_3 = arith.constant 0 : index
    %c0_4 = arith.constant 0 : index
    %3 = vector.load %arg2[%c0_3, %c0_4] : memref<1x32xf32, #tpu.memory_space<vmem>>, vector<1x32xf32>
    %4 = vector.broadcast %3 : vector<1x32xf32> to vector<32x32xf32>
    %5 = arith.addf %2, %4 : vector<32x32xf32>
    %c0_5 = arith.constant 0 : index
    %c0_6 = arith.constant 0 : index
    %c0_7 = arith.constant 0 : index
    %6 = vector.load %arg3[%c0_5, %c0_6, %c0_7] : memref<4x1x32xf32, #tpu.memory_space<vmem>>, vector<1x1x32xf32>
    %7 = vector.shape_cast %6 : vector<1x1x32xf32> to vector<1x32xf32>
    %c0_8 = arith.constant 0 : index
    %c0_9 = arith.constant 0 : index
    %c0_10 = arith.constant 0 : index
    %8 = vector.load %arg4[%c0_8, %c0_9, %c0_10] : memref<4x1x32xf32, #tpu.memory_space<vmem>>, vector<1x1x32xf32>
    %9 = vector.shape_cast %8 : vector<1x1x32xf32> to vector<1x32xf32>
    %cst_11 = arith.constant dense<0.000000e+00> : vector<32xf32>
    %10 = vector.multi_reduction <add>, %5, %cst_11 [1] : vector<32x32xf32> to vector<32xf32>
    %11 = vector.shape_cast %10 : vector<32xf32> to vector<32x1xf32>
    %cst_12 = arith.constant 3.200000e+01 : f32
    %12 = vector.broadcast %cst_12 : f32 to vector<32x1xf32>
    %13 = arith.divf %11, %12 : vector<32x1xf32>
    %14 = vector.broadcast %13 : vector<32x1xf32> to vector<32x32xf32>
    %15 = arith.subf %5, %14 : vector<32x32xf32>
    %16 = arith.mulf %15, %15 : vector<32x32xf32>
    %cst_13 = arith.constant dense<0.000000e+00> : vector<32xf32>
    %17 = vector.multi_reduction <add>, %16, %cst_13 [1] : vector<32x32xf32> to vector<32xf32>
    %18 = vector.shape_cast %17 : vector<32xf32> to vector<32x1xf32>
    %cst_14 = arith.constant 3.200000e+01 : f32
    %19 = vector.broadcast %cst_14 : f32 to vector<32x1xf32>
    %20 = arith.divf %18, %19 : vector<32x1xf32>
    %cst_15 = arith.constant 9.99999997E-7 : f32
    %21 = vector.broadcast %cst_15 : f32 to vector<32x1xf32>
    %22 = arith.addf %20, %21 : vector<32x1xf32>
    %23 = math.rsqrt %22 : vector<32x1xf32>
    %24 = vector.broadcast %23 : vector<32x1xf32> to vector<32x32xf32>
    %25 = arith.mulf %15, %24 : vector<32x32xf32>
    %26 = vector.broadcast %7 : vector<1x32xf32> to vector<32x32xf32>
    %27 = arith.mulf %25, %26 : vector<32x32xf32>
    %28 = vector.broadcast %9 : vector<1x32xf32> to vector<32x32xf32>
    %29 = arith.addf %27, %28 : vector<32x32xf32>
    %c1 = arith.constant 1 : index
    %c0_16 = arith.constant 0 : index
    %c0_17 = arith.constant 0 : index
    %30 = vector.load %arg3[%c1, %c0_16, %c0_17] : memref<4x1x32xf32, #tpu.memory_space<vmem>>, vector<1x1x32xf32>
    %31 = vector.shape_cast %30 : vector<1x1x32xf32> to vector<1x32xf32>
    %c1_18 = arith.constant 1 : index
    %c0_19 = arith.constant 0 : index
    %c0_20 = arith.constant 0 : index
    %32 = vector.load %arg4[%c1_18, %c0_19, %c0_20] : memref<4x1x32xf32, #tpu.memory_space<vmem>>, vector<1x1x32xf32>
    %33 = vector.shape_cast %32 : vector<1x1x32xf32> to vector<1x32xf32>
    %cst_21 = arith.constant dense<0.000000e+00> : vector<32xf32>
    %34 = vector.multi_reduction <add>, %29, %cst_21 [1] : vector<32x32xf32> to vector<32xf32>
    %35 = vector.shape_cast %34 : vector<32xf32> to vector<32x1xf32>
    %cst_22 = arith.constant 3.200000e+01 : f32
    %36 = vector.broadcast %cst_22 : f32 to vector<32x1xf32>
    %37 = arith.divf %35, %36 : vector<32x1xf32>
    %38 = vector.broadcast %37 : vector<32x1xf32> to vector<32x32xf32>
    %39 = arith.subf %29, %38 : vector<32x32xf32>
    %40 = arith.mulf %39, %39 : vector<32x32xf32>
    %cst_23 = arith.constant dense<0.000000e+00> : vector<32xf32>
    %41 = vector.multi_reduction <add>, %40, %cst_23 [1] : vector<32x32xf32> to vector<32xf32>
    %42 = vector.shape_cast %41 : vector<32xf32> to vector<32x1xf32>
    %cst_24 = arith.constant 3.200000e+01 : f32
    %43 = vector.broadcast %cst_24 : f32 to vector<32x1xf32>
    %44 = arith.divf %42, %43 : vector<32x1xf32>
    %cst_25 = arith.constant 9.99999997E-7 : f32
    %45 = vector.broadcast %cst_25 : f32 to vector<32x1xf32>
    %46 = arith.addf %44, %45 : vector<32x1xf32>
    %47 = math.rsqrt %46 : vector<32x1xf32>
    %48 = vector.broadcast %47 : vector<32x1xf32> to vector<32x32xf32>
    %49 = arith.mulf %39, %48 : vector<32x32xf32>
    %50 = vector.broadcast %31 : vector<1x32xf32> to vector<32x32xf32>
    %51 = arith.mulf %49, %50 : vector<32x32xf32>
    %52 = vector.broadcast %33 : vector<1x32xf32> to vector<32x32xf32>
    %53 = arith.addf %51, %52 : vector<32x32xf32>
    %c0_26 = arith.constant 0 : index
    %c0_27 = arith.constant 0 : index
    %54 = vector.load %arg9[%c0_26, %c0_27] : memref<32x32xf32, #tpu.memory_space<vmem>>, vector<32x32xf32>
    %c0_28 = arith.constant 0 : index
    %c0_29 = arith.constant 0 : index
    %55 = vector.load %arg8[%c0_28, %c0_29] : memref<1x32xf32, #tpu.memory_space<vmem>>, vector<1x32xf32>
    %c0_30 = arith.constant 0 : index
    %c0_31 = arith.constant 0 : index
    %c0_32 = arith.constant 0 : index
    %56 = vector.load %arg5[%c0_30, %c0_31, %c0_32] : memref<6x32x16xf32, #tpu.memory_space<vmem>>, vector<1x32x16xf32>
    %57 = vector.shape_cast %56 : vector<1x32x16xf32> to vector<32x16xf32>
    %cst_33 = arith.constant dense<0.000000e+00> : vector<32x16xf32>
    %58 = tpu.matmul %53, %57, %cst_33 {dimension_numbers = #tpu.dot_dimension_numbers<[1], [0], [0], [1], [0, 0, 1, 1], [], []>} : vector<32x32xf32>, vector<32x16xf32>, vector<32x16xf32> -> vector<32x16xf32>
    %c0_34 = arith.constant 0 : index
    %c0_35 = arith.constant 0 : index
    %c0_36 = arith.constant 0 : index
    %59 = vector.load %arg6[%c0_34, %c0_35, %c0_36] : memref<6x1x16xf32, #tpu.memory_space<vmem>>, vector<1x1x16xf32>
    %60 = vector.shape_cast %59 : vector<1x1x16xf32> to vector<1x16xf32>
    %61 = vector.broadcast %60 : vector<1x16xf32> to vector<32x16xf32>
    %62 = arith.addf %58, %61 : vector<32x16xf32>
    %cst_37 = arith.constant 2.500000e-01 : f32
    %63 = vector.broadcast %cst_37 : f32 to vector<32x16xf32>
    %64 = arith.mulf %62, %63 : vector<32x16xf32>
    %c2 = arith.constant 2 : index
    %c0_38 = arith.constant 0 : index
    %c0_39 = arith.constant 0 : index
    %65 = vector.load %arg5[%c2, %c0_38, %c0_39] : memref<6x32x16xf32, #tpu.memory_space<vmem>>, vector<1x32x16xf32>
    %66 = vector.shape_cast %65 : vector<1x32x16xf32> to vector<32x16xf32>
    %cst_40 = arith.constant dense<0.000000e+00> : vector<32x16xf32>
    %67 = tpu.matmul %53, %66, %cst_40 {dimension_numbers = #tpu.dot_dimension_numbers<[1], [0], [0], [1], [0, 0, 1, 1], [], []>} : vector<32x32xf32>, vector<32x16xf32>, vector<32x16xf32> -> vector<32x16xf32>
    %c2_41 = arith.constant 2 : index
    %c0_42 = arith.constant 0 : index
    %c0_43 = arith.constant 0 : index
    %68 = vector.load %arg6[%c2_41, %c0_42, %c0_43] : memref<6x1x16xf32, #tpu.memory_space<vmem>>, vector<1x1x16xf32>
    %69 = vector.shape_cast %68 : vector<1x1x16xf32> to vector<1x16xf32>
    %70 = vector.broadcast %69 : vector<1x16xf32> to vector<32x16xf32>
    %71 = arith.addf %67, %70 : vector<32x16xf32>
    %c4 = arith.constant 4 : index
    %c0_44 = arith.constant 0 : index
    %c0_45 = arith.constant 0 : index
    %72 = vector.load %arg5[%c4, %c0_44, %c0_45] : memref<6x32x16xf32, #tpu.memory_space<vmem>>, vector<1x32x16xf32>
    %73 = vector.shape_cast %72 : vector<1x32x16xf32> to vector<32x16xf32>
    %cst_46 = arith.constant dense<0.000000e+00> : vector<32x16xf32>
    %74 = tpu.matmul %53, %73, %cst_46 {dimension_numbers = #tpu.dot_dimension_numbers<[1], [0], [0], [1], [0, 0, 1, 1], [], []>} : vector<32x32xf32>, vector<32x16xf32>, vector<32x16xf32> -> vector<32x16xf32>
    %c4_47 = arith.constant 4 : index
    %c0_48 = arith.constant 0 : index
    %c0_49 = arith.constant 0 : index
    %75 = vector.load %arg6[%c4_47, %c0_48, %c0_49] : memref<6x1x16xf32, #tpu.memory_space<vmem>>, vector<1x1x16xf32>
    %76 = vector.shape_cast %75 : vector<1x1x16xf32> to vector<1x16xf32>
    %77 = vector.broadcast %76 : vector<1x16xf32> to vector<32x16xf32>
    %78 = arith.addf %74, %77 : vector<32x16xf32>
    %79 = tpu.transpose %71, [1, 0] : vector<32x16xf32> -> vector<16x32xf32>
    %cst_50 = arith.constant dense<0.000000e+00> : vector<32x32xf32>
    %80 = tpu.matmul %64, %79, %cst_50 {dimension_numbers = #tpu.dot_dimension_numbers<[1], [0], [0], [1], [0, 0, 1, 1], [], []>} : vector<32x16xf32>, vector<16x32xf32>, vector<32x32xf32> -> vector<32x32xf32>
    %81 = arith.addf %80, %54 : vector<32x32xf32>
    %cst_51 = arith.constant dense<0xFF800000> : vector<32xf32>
    %82 = vector.multi_reduction <maximumf>, %81, %cst_51 [1] : vector<32x32xf32> to vector<32xf32>
    %83 = vector.shape_cast %82 : vector<32xf32> to vector<32x1xf32>
    %84 = vector.broadcast %83 : vector<32x1xf32> to vector<32x32xf32>
    %85 = arith.subf %81, %84 : vector<32x32xf32>
    %86 = math.exp %85 : vector<32x32xf32>
    %cst_52 = arith.constant dense<0.000000e+00> : vector<32xf32>
    %87 = vector.multi_reduction <add>, %86, %cst_52 [1] : vector<32x32xf32> to vector<32xf32>
    %88 = vector.shape_cast %87 : vector<32xf32> to vector<32x1xf32>
    %89 = tpu.reciprocal %88 {approx = true} : vector<32x1xf32> -> vector<32x1xf32>
    %90 = vector.broadcast %89 : vector<32x1xf32> to vector<32x32xf32>
    %91 = arith.mulf %86, %90 : vector<32x32xf32>
    %cst_53 = arith.constant dense<0.000000e+00> : vector<32x16xf32>
    %92 = tpu.matmul %91, %78, %cst_53 {dimension_numbers = #tpu.dot_dimension_numbers<[1], [0], [0], [1], [0, 0, 1, 1], [], []>} : vector<32x32xf32>, vector<32x16xf32>, vector<32x16xf32> -> vector<32x16xf32>
    %c0_54 = arith.constant 0 : index
    %c0_55 = arith.constant 0 : index
    %c0_56 = arith.constant 0 : index
    %93 = vector.load %arg7[%c0_54, %c0_55, %c0_56] : memref<2x16x32xf32, #tpu.memory_space<vmem>>, vector<1x16x32xf32>
    %94 = vector.shape_cast %93 : vector<1x16x32xf32> to vector<16x32xf32>
    %cst_57 = arith.constant dense<0.000000e+00> : vector<32x32xf32>
    %95 = tpu.matmul %92, %94, %cst_57 {dimension_numbers = #tpu.dot_dimension_numbers<[1], [0], [0], [1], [0, 0, 1, 1], [], []>} : vector<32x16xf32>, vector<16x32xf32>, vector<32x32xf32> -> vector<32x32xf32>
    %96 = vector.broadcast %55 : vector<1x32xf32> to vector<32x32xf32>
    %97 = arith.addf %96, %95 : vector<32x32xf32>
    %c1_58 = arith.constant 1 : index
    %c0_59 = arith.constant 0 : index
    %c0_60 = arith.constant 0 : index
    %98 = vector.load %arg5[%c1_58, %c0_59, %c0_60] : memref<6x32x16xf32, #tpu.memory_space<vmem>>, vector<1x32x16xf32>
    %99 = vector.shape_cast %98 : vector<1x32x16xf32> to vector<32x16xf32>
    %cst_61 = arith.constant dense<0.000000e+00> : vector<32x16xf32>
    %100 = tpu.matmul %53, %99, %cst_61 {dimension_numbers = #tpu.dot_dimension_numbers<[1], [0], [0], [1], [0, 0, 1, 1], [], []>} : vector<32x32xf32>, vector<32x16xf32>, vector<32x16xf32> -> vector<32x16xf32>
    %c1_62 = arith.constant 1 : index
    %c0_63 = arith.constant 0 : index
    %c0_64 = arith.constant 0 : index
    %101 = vector.load %arg6[%c1_62, %c0_63, %c0_64] : memref<6x1x16xf32, #tpu.memory_space<vmem>>, vector<1x1x16xf32>
    %102 = vector.shape_cast %101 : vector<1x1x16xf32> to vector<1x16xf32>
    %103 = vector.broadcast %102 : vector<1x16xf32> to vector<32x16xf32>
    %104 = arith.addf %100, %103 : vector<32x16xf32>
    %cst_65 = arith.constant 2.500000e-01 : f32
    %105 = vector.broadcast %cst_65 : f32 to vector<32x16xf32>
    %106 = arith.mulf %104, %105 : vector<32x16xf32>
    %c3 = arith.constant 3 : index
    %c0_66 = arith.constant 0 : index
    %c0_67 = arith.constant 0 : index
    %107 = vector.load %arg5[%c3, %c0_66, %c0_67] : memref<6x32x16xf32, #tpu.memory_space<vmem>>, vector<1x32x16xf32>
    %108 = vector.shape_cast %107 : vector<1x32x16xf32> to vector<32x16xf32>
    %cst_68 = arith.constant dense<0.000000e+00> : vector<32x16xf32>
    %109 = tpu.matmul %53, %108, %cst_68 {dimension_numbers = #tpu.dot_dimension_numbers<[1], [0], [0], [1], [0, 0, 1, 1], [], []>} : vector<32x32xf32>, vector<32x16xf32>, vector<32x16xf32> -> vector<32x16xf32>
    %c3_69 = arith.constant 3 : index
    %c0_70 = arith.constant 0 : index
    %c0_71 = arith.constant 0 : index
    %110 = vector.load %arg6[%c3_69, %c0_70, %c0_71] : memref<6x1x16xf32, #tpu.memory_space<vmem>>, vector<1x1x16xf32>
    %111 = vector.shape_cast %110 : vector<1x1x16xf32> to vector<1x16xf32>
    %112 = vector.broadcast %111 : vector<1x16xf32> to vector<32x16xf32>
    %113 = arith.addf %109, %112 : vector<32x16xf32>
    %c5 = arith.constant 5 : index
    %c0_72 = arith.constant 0 : index
    %c0_73 = arith.constant 0 : index
    %114 = vector.load %arg5[%c5, %c0_72, %c0_73] : memref<6x32x16xf32, #tpu.memory_space<vmem>>, vector<1x32x16xf32>
    %115 = vector.shape_cast %114 : vector<1x32x16xf32> to vector<32x16xf32>
    %cst_74 = arith.constant dense<0.000000e+00> : vector<32x16xf32>
    %116 = tpu.matmul %53, %115, %cst_74 {dimension_numbers = #tpu.dot_dimension_numbers<[1], [0], [0], [1], [0, 0, 1, 1], [], []>} : vector<32x32xf32>, vector<32x16xf32>, vector<32x16xf32> -> vector<32x16xf32>
    %c5_75 = arith.constant 5 : index
    %c0_76 = arith.constant 0 : index
    %c0_77 = arith.constant 0 : index
    %117 = vector.load %arg6[%c5_75, %c0_76, %c0_77] : memref<6x1x16xf32, #tpu.memory_space<vmem>>, vector<1x1x16xf32>
    %118 = vector.shape_cast %117 : vector<1x1x16xf32> to vector<1x16xf32>
    %119 = vector.broadcast %118 : vector<1x16xf32> to vector<32x16xf32>
    %120 = arith.addf %116, %119 : vector<32x16xf32>
    %121 = tpu.transpose %113, [1, 0] : vector<32x16xf32> -> vector<16x32xf32>
    %cst_78 = arith.constant dense<0.000000e+00> : vector<32x32xf32>
    %122 = tpu.matmul %106, %121, %cst_78 {dimension_numbers = #tpu.dot_dimension_numbers<[1], [0], [0], [1], [0, 0, 1, 1], [], []>} : vector<32x16xf32>, vector<16x32xf32>, vector<32x32xf32> -> vector<32x32xf32>
    %123 = arith.addf %122, %54 : vector<32x32xf32>
    %cst_79 = arith.constant dense<0xFF800000> : vector<32xf32>
    %124 = vector.multi_reduction <maximumf>, %123, %cst_79 [1] : vector<32x32xf32> to vector<32xf32>
    %125 = vector.shape_cast %124 : vector<32xf32> to vector<32x1xf32>
    %126 = vector.broadcast %125 : vector<32x1xf32> to vector<32x32xf32>
    %127 = arith.subf %123, %126 : vector<32x32xf32>
    %128 = math.exp %127 : vector<32x32xf32>
    %cst_80 = arith.constant dense<0.000000e+00> : vector<32xf32>
    %129 = vector.multi_reduction <add>, %128, %cst_80 [1] : vector<32x32xf32> to vector<32xf32>
    %130 = vector.shape_cast %129 : vector<32xf32> to vector<32x1xf32>
    %131 = tpu.reciprocal %130 {approx = true} : vector<32x1xf32> -> vector<32x1xf32>
    %132 = vector.broadcast %131 : vector<32x1xf32> to vector<32x32xf32>
    %133 = arith.mulf %128, %132 : vector<32x32xf32>
    %cst_81 = arith.constant dense<0.000000e+00> : vector<32x16xf32>
    %134 = tpu.matmul %133, %120, %cst_81 {dimension_numbers = #tpu.dot_dimension_numbers<[1], [0], [0], [1], [0, 0, 1, 1], [], []>} : vector<32x32xf32>, vector<32x16xf32>, vector<32x16xf32> -> vector<32x16xf32>
    %c1_82 = arith.constant 1 : index
    %c0_83 = arith.constant 0 : index
    %c0_84 = arith.constant 0 : index
    %135 = vector.load %arg7[%c1_82, %c0_83, %c0_84] : memref<2x16x32xf32, #tpu.memory_space<vmem>>, vector<1x16x32xf32>
    %136 = vector.shape_cast %135 : vector<1x16x32xf32> to vector<16x32xf32>
    %cst_85 = arith.constant dense<0.000000e+00> : vector<32x32xf32>
    %137 = tpu.matmul %134, %136, %cst_85 {dimension_numbers = #tpu.dot_dimension_numbers<[1], [0], [0], [1], [0, 0, 1, 1], [], []>} : vector<32x16xf32>, vector<16x32xf32>, vector<32x32xf32> -> vector<32x32xf32>
    %138 = arith.addf %97, %137 : vector<32x32xf32>
    %139 = arith.addf %29, %138 : vector<32x32xf32>
    %c2_86 = arith.constant 2 : index
    %c0_87 = arith.constant 0 : index
    %c0_88 = arith.constant 0 : index
    %140 = vector.load %arg3[%c2_86, %c0_87, %c0_88] : memref<4x1x32xf32, #tpu.memory_space<vmem>>, vector<1x1x32xf32>
    %141 = vector.shape_cast %140 : vector<1x1x32xf32> to vector<1x32xf32>
    %c2_89 = arith.constant 2 : index
    %c0_90 = arith.constant 0 : index
    %c0_91 = arith.constant 0 : index
    %142 = vector.load %arg4[%c2_89, %c0_90, %c0_91] : memref<4x1x32xf32, #tpu.memory_space<vmem>>, vector<1x1x32xf32>
    %143 = vector.shape_cast %142 : vector<1x1x32xf32> to vector<1x32xf32>
    %cst_92 = arith.constant dense<0.000000e+00> : vector<32xf32>
    %144 = vector.multi_reduction <add>, %139, %cst_92 [1] : vector<32x32xf32> to vector<32xf32>
    %145 = vector.shape_cast %144 : vector<32xf32> to vector<32x1xf32>
    %cst_93 = arith.constant 3.200000e+01 : f32
    %146 = vector.broadcast %cst_93 : f32 to vector<32x1xf32>
    %147 = arith.divf %145, %146 : vector<32x1xf32>
    %148 = vector.broadcast %147 : vector<32x1xf32> to vector<32x32xf32>
    %149 = arith.subf %139, %148 : vector<32x32xf32>
    %150 = arith.mulf %149, %149 : vector<32x32xf32>
    %cst_94 = arith.constant dense<0.000000e+00> : vector<32xf32>
    %151 = vector.multi_reduction <add>, %150, %cst_94 [1] : vector<32x32xf32> to vector<32xf32>
    %152 = vector.shape_cast %151 : vector<32xf32> to vector<32x1xf32>
    %cst_95 = arith.constant 3.200000e+01 : f32
    %153 = vector.broadcast %cst_95 : f32 to vector<32x1xf32>
    %154 = arith.divf %152, %153 : vector<32x1xf32>
    %cst_96 = arith.constant 9.99999997E-7 : f32
    %155 = vector.broadcast %cst_96 : f32 to vector<32x1xf32>
    %156 = arith.addf %154, %155 : vector<32x1xf32>
    %157 = math.rsqrt %156 : vector<32x1xf32>
    %158 = vector.broadcast %157 : vector<32x1xf32> to vector<32x32xf32>
    %159 = arith.mulf %149, %158 : vector<32x32xf32>
    %160 = vector.broadcast %141 : vector<1x32xf32> to vector<32x32xf32>
    %161 = arith.mulf %159, %160 : vector<32x32xf32>
    %162 = vector.broadcast %143 : vector<1x32xf32> to vector<32x32xf32>
    %163 = arith.addf %161, %162 : vector<32x32xf32>
    %c0_97 = arith.constant 0 : index
    %c0_98 = arith.constant 0 : index
    %164 = vector.load %arg10[%c0_97, %c0_98] : memref<32x64xf32, #tpu.memory_space<vmem>>, vector<32x64xf32>
    %cst_99 = arith.constant dense<0.000000e+00> : vector<32x64xf32>
    %165 = tpu.matmul %163, %164, %cst_99 {dimension_numbers = #tpu.dot_dimension_numbers<[1], [0], [0], [1], [0, 0, 1, 1], [], []>} : vector<32x32xf32>, vector<32x64xf32>, vector<32x64xf32> -> vector<32x64xf32>
    %c0_100 = arith.constant 0 : index
    %c0_101 = arith.constant 0 : index
    %166 = vector.load %arg11[%c0_100, %c0_101] : memref<1x64xf32, #tpu.memory_space<vmem>>, vector<1x64xf32>
    %167 = vector.broadcast %166 : vector<1x64xf32> to vector<32x64xf32>
    %168 = arith.addf %165, %167 : vector<32x64xf32>
    %c0_102 = arith.constant 0 : index
    %c0_103 = arith.constant 0 : index
    %169 = vector.load %arg14[%c0_102, %c0_103] : memref<1x64xf32, #tpu.memory_space<vmem>>, vector<1x64xf32>
    %c0_104 = arith.constant 0 : index
    %c0_105 = arith.constant 0 : index
    %c0_106 = arith.constant 0 : index
    %170 = vector.load %arg12[%c0_104, %c0_105, %c0_106] : memref<9x32x32xf32, #tpu.memory_space<vmem>>, vector<1x32x32xf32>
    %171 = vector.shape_cast %170 : vector<1x32x32xf32> to vector<32x32xf32>
    %cst_107 = arith.constant dense<0.000000e+00> : vector<32x64xf32>
    %172 = tpu.matmul %171, %168, %cst_107 {dimension_numbers = #tpu.dot_dimension_numbers<[1], [0], [0], [1], [0, 0, 1, 1], [], []>} : vector<32x32xf32>, vector<32x64xf32>, vector<32x64xf32> -> vector<32x64xf32>
    %c0_108 = arith.constant 0 : index
    %c0_109 = arith.constant 0 : index
    %c0_110 = arith.constant 0 : index
    %173 = vector.load %arg13[%c0_108, %c0_109, %c0_110] : memref<9x1x64xf32, #tpu.memory_space<vmem>>, vector<1x1x64xf32>
    %174 = vector.shape_cast %173 : vector<1x1x64xf32> to vector<1x64xf32>
    %175 = vector.broadcast %174 : vector<1x64xf32> to vector<32x64xf32>
    %176 = arith.mulf %172, %175 : vector<32x64xf32>
    %177 = vector.broadcast %169 : vector<1x64xf32> to vector<32x64xf32>
    %178 = arith.addf %177, %176 : vector<32x64xf32>
    %c1_111 = arith.constant 1 : index
    %c0_112 = arith.constant 0 : index
    %c0_113 = arith.constant 0 : index
    %179 = vector.load %arg12[%c1_111, %c0_112, %c0_113] : memref<9x32x32xf32, #tpu.memory_space<vmem>>, vector<1x32x32xf32>
    %180 = vector.shape_cast %179 : vector<1x32x32xf32> to vector<32x32xf32>
    %cst_114 = arith.constant dense<0.000000e+00> : vector<32x64xf32>
    %181 = tpu.matmul %180, %168, %cst_114 {dimension_numbers = #tpu.dot_dimension_numbers<[1], [0], [0], [1], [0, 0, 1, 1], [], []>} : vector<32x32xf32>, vector<32x64xf32>, vector<32x64xf32> -> vector<32x64xf32>
    %c1_115 = arith.constant 1 : index
    %c0_116 = arith.constant 0 : index
    %c0_117 = arith.constant 0 : index
    %182 = vector.load %arg13[%c1_115, %c0_116, %c0_117] : memref<9x1x64xf32, #tpu.memory_space<vmem>>, vector<1x1x64xf32>
    %183 = vector.shape_cast %182 : vector<1x1x64xf32> to vector<1x64xf32>
    %184 = vector.broadcast %183 : vector<1x64xf32> to vector<32x64xf32>
    %185 = arith.mulf %181, %184 : vector<32x64xf32>
    %186 = arith.addf %178, %185 : vector<32x64xf32>
    %c2_118 = arith.constant 2 : index
    %c0_119 = arith.constant 0 : index
    %c0_120 = arith.constant 0 : index
    %187 = vector.load %arg12[%c2_118, %c0_119, %c0_120] : memref<9x32x32xf32, #tpu.memory_space<vmem>>, vector<1x32x32xf32>
    %188 = vector.shape_cast %187 : vector<1x32x32xf32> to vector<32x32xf32>
    %cst_121 = arith.constant dense<0.000000e+00> : vector<32x64xf32>
    %189 = tpu.matmul %188, %168, %cst_121 {dimension_numbers = #tpu.dot_dimension_numbers<[1], [0], [0], [1], [0, 0, 1, 1], [], []>} : vector<32x32xf32>, vector<32x64xf32>, vector<32x64xf32> -> vector<32x64xf32>
    %c2_122 = arith.constant 2 : index
    %c0_123 = arith.constant 0 : index
    %c0_124 = arith.constant 0 : index
    %190 = vector.load %arg13[%c2_122, %c0_123, %c0_124] : memref<9x1x64xf32, #tpu.memory_space<vmem>>, vector<1x1x64xf32>
    %191 = vector.shape_cast %190 : vector<1x1x64xf32> to vector<1x64xf32>
    %192 = vector.broadcast %191 : vector<1x64xf32> to vector<32x64xf32>
    %193 = arith.mulf %189, %192 : vector<32x64xf32>
    %194 = arith.addf %186, %193 : vector<32x64xf32>
    %c3_125 = arith.constant 3 : index
    %c0_126 = arith.constant 0 : index
    %c0_127 = arith.constant 0 : index
    %195 = vector.load %arg12[%c3_125, %c0_126, %c0_127] : memref<9x32x32xf32, #tpu.memory_space<vmem>>, vector<1x32x32xf32>
    %196 = vector.shape_cast %195 : vector<1x32x32xf32> to vector<32x32xf32>
    %cst_128 = arith.constant dense<0.000000e+00> : vector<32x64xf32>
    %197 = tpu.matmul %196, %168, %cst_128 {dimension_numbers = #tpu.dot_dimension_numbers<[1], [0], [0], [1], [0, 0, 1, 1], [], []>} : vector<32x32xf32>, vector<32x64xf32>, vector<32x64xf32> -> vector<32x64xf32>
    %c3_129 = arith.constant 3 : index
    %c0_130 = arith.constant 0 : index
    %c0_131 = arith.constant 0 : index
    %198 = vector.load %arg13[%c3_129, %c0_130, %c0_131] : memref<9x1x64xf32, #tpu.memory_space<vmem>>, vector<1x1x64xf32>
    %199 = vector.shape_cast %198 : vector<1x1x64xf32> to vector<1x64xf32>
    %200 = vector.broadcast %199 : vector<1x64xf32> to vector<32x64xf32>
    %201 = arith.mulf %197, %200 : vector<32x64xf32>
    %202 = arith.addf %194, %201 : vector<32x64xf32>
    %c4_132 = arith.constant 4 : index
    %c0_133 = arith.constant 0 : index
    %c0_134 = arith.constant 0 : index
    %203 = vector.load %arg12[%c4_132, %c0_133, %c0_134] : memref<9x32x32xf32, #tpu.memory_space<vmem>>, vector<1x32x32xf32>
    %204 = vector.shape_cast %203 : vector<1x32x32xf32> to vector<32x32xf32>
    %cst_135 = arith.constant dense<0.000000e+00> : vector<32x64xf32>
    %205 = tpu.matmul %204, %168, %cst_135 {dimension_numbers = #tpu.dot_dimension_numbers<[1], [0], [0], [1], [0, 0, 1, 1], [], []>} : vector<32x32xf32>, vector<32x64xf32>, vector<32x64xf32> -> vector<32x64xf32>
    %c4_136 = arith.constant 4 : index
    %c0_137 = arith.constant 0 : index
    %c0_138 = arith.constant 0 : index
    %206 = vector.load %arg13[%c4_136, %c0_137, %c0_138] : memref<9x1x64xf32, #tpu.memory_space<vmem>>, vector<1x1x64xf32>
    %207 = vector.shape_cast %206 : vector<1x1x64xf32> to vector<1x64xf32>
    %208 = vector.broadcast %207 : vector<1x64xf32> to vector<32x64xf32>
    %209 = arith.mulf %205, %208 : vector<32x64xf32>
    %210 = arith.addf %202, %209 : vector<32x64xf32>
    %c5_139 = arith.constant 5 : index
    %c0_140 = arith.constant 0 : index
    %c0_141 = arith.constant 0 : index
    %211 = vector.load %arg12[%c5_139, %c0_140, %c0_141] : memref<9x32x32xf32, #tpu.memory_space<vmem>>, vector<1x32x32xf32>
    %212 = vector.shape_cast %211 : vector<1x32x32xf32> to vector<32x32xf32>
    %cst_142 = arith.constant dense<0.000000e+00> : vector<32x64xf32>
    %213 = tpu.matmul %212, %168, %cst_142 {dimension_numbers = #tpu.dot_dimension_numbers<[1], [0], [0], [1], [0, 0, 1, 1], [], []>} : vector<32x32xf32>, vector<32x64xf32>, vector<32x64xf32> -> vector<32x64xf32>
    %c5_143 = arith.constant 5 : index
    %c0_144 = arith.constant 0 : index
    %c0_145 = arith.constant 0 : index
    %214 = vector.load %arg13[%c5_143, %c0_144, %c0_145] : memref<9x1x64xf32, #tpu.memory_space<vmem>>, vector<1x1x64xf32>
    %215 = vector.shape_cast %214 : vector<1x1x64xf32> to vector<1x64xf32>
    %216 = vector.broadcast %215 : vector<1x64xf32> to vector<32x64xf32>
    %217 = arith.mulf %213, %216 : vector<32x64xf32>
    %218 = arith.addf %210, %217 : vector<32x64xf32>
    %c6 = arith.constant 6 : index
    %c0_146 = arith.constant 0 : index
    %c0_147 = arith.constant 0 : index
    %219 = vector.load %arg12[%c6, %c0_146, %c0_147] : memref<9x32x32xf32, #tpu.memory_space<vmem>>, vector<1x32x32xf32>
    %220 = vector.shape_cast %219 : vector<1x32x32xf32> to vector<32x32xf32>
    %cst_148 = arith.constant dense<0.000000e+00> : vector<32x64xf32>
    %221 = tpu.matmul %220, %168, %cst_148 {dimension_numbers = #tpu.dot_dimension_numbers<[1], [0], [0], [1], [0, 0, 1, 1], [], []>} : vector<32x32xf32>, vector<32x64xf32>, vector<32x64xf32> -> vector<32x64xf32>
    %c6_149 = arith.constant 6 : index
    %c0_150 = arith.constant 0 : index
    %c0_151 = arith.constant 0 : index
    %222 = vector.load %arg13[%c6_149, %c0_150, %c0_151] : memref<9x1x64xf32, #tpu.memory_space<vmem>>, vector<1x1x64xf32>
    %223 = vector.shape_cast %222 : vector<1x1x64xf32> to vector<1x64xf32>
    %224 = vector.broadcast %223 : vector<1x64xf32> to vector<32x64xf32>
    %225 = arith.mulf %221, %224 : vector<32x64xf32>
    %226 = arith.addf %218, %225 : vector<32x64xf32>
    %c7 = arith.constant 7 : index
    %c0_152 = arith.constant 0 : index
    %c0_153 = arith.constant 0 : index
    %227 = vector.load %arg12[%c7, %c0_152, %c0_153] : memref<9x32x32xf32, #tpu.memory_space<vmem>>, vector<1x32x32xf32>
    %228 = vector.shape_cast %227 : vector<1x32x32xf32> to vector<32x32xf32>
    %cst_154 = arith.constant dense<0.000000e+00> : vector<32x64xf32>
    %229 = tpu.matmul %228, %168, %cst_154 {dimension_numbers = #tpu.dot_dimension_numbers<[1], [0], [0], [1], [0, 0, 1, 1], [], []>} : vector<32x32xf32>, vector<32x64xf32>, vector<32x64xf32> -> vector<32x64xf32>
    %c7_155 = arith.constant 7 : index
    %c0_156 = arith.constant 0 : index
    %c0_157 = arith.constant 0 : index
    %230 = vector.load %arg13[%c7_155, %c0_156, %c0_157] : memref<9x1x64xf32, #tpu.memory_space<vmem>>, vector<1x1x64xf32>
    %231 = vector.shape_cast %230 : vector<1x1x64xf32> to vector<1x64xf32>
    %232 = vector.broadcast %231 : vector<1x64xf32> to vector<32x64xf32>
    %233 = arith.mulf %229, %232 : vector<32x64xf32>
    %234 = arith.addf %226, %233 : vector<32x64xf32>
    %c8 = arith.constant 8 : index
    %c0_158 = arith.constant 0 : index
    %c0_159 = arith.constant 0 : index
    %235 = vector.load %arg12[%c8, %c0_158, %c0_159] : memref<9x32x32xf32, #tpu.memory_space<vmem>>, vector<1x32x32xf32>
    %236 = vector.shape_cast %235 : vector<1x32x32xf32> to vector<32x32xf32>
    %cst_160 = arith.constant dense<0.000000e+00> : vector<32x64xf32>
    %237 = tpu.matmul %236, %168, %cst_160 {dimension_numbers = #tpu.dot_dimension_numbers<[1], [0], [0], [1], [0, 0, 1, 1], [], []>} : vector<32x32xf32>, vector<32x64xf32>, vector<32x64xf32> -> vector<32x64xf32>
    %c8_161 = arith.constant 8 : index
    %c0_162 = arith.constant 0 : index
    %c0_163 = arith.constant 0 : index
    %238 = vector.load %arg13[%c8_161, %c0_162, %c0_163] : memref<9x1x64xf32, #tpu.memory_space<vmem>>, vector<1x1x64xf32>
    %239 = vector.shape_cast %238 : vector<1x1x64xf32> to vector<1x64xf32>
    %240 = vector.broadcast %239 : vector<1x64xf32> to vector<32x64xf32>
    %241 = arith.mulf %237, %240 : vector<32x64xf32>
    %242 = arith.addf %234, %241 : vector<32x64xf32>
    %cst_164 = arith.constant 5.000000e-01 : f32
    %243 = vector.broadcast %cst_164 : f32 to vector<32x64xf32>
    %244 = arith.mulf %243, %242 : vector<32x64xf32>
    %cst_165 = arith.constant 0.707106769 : f32
    %245 = vector.broadcast %cst_165 : f32 to vector<32x64xf32>
    %246 = arith.mulf %242, %245 : vector<32x64xf32>
    %247 = math.erf %246 : vector<32x64xf32>
    %cst_166 = arith.constant 1.000000e+00 : f32
    %248 = vector.broadcast %cst_166 : f32 to vector<32x64xf32>
    %249 = arith.addf %248, %247 : vector<32x64xf32>
    %250 = arith.mulf %244, %249 : vector<32x64xf32>
    %c0_167 = arith.constant 0 : index
    %c0_168 = arith.constant 0 : index
    %251 = vector.load %arg15[%c0_167, %c0_168] : memref<64x32xf32, #tpu.memory_space<vmem>>, vector<64x32xf32>
    %cst_169 = arith.constant dense<0.000000e+00> : vector<32x32xf32>
    %252 = tpu.matmul %250, %251, %cst_169 {dimension_numbers = #tpu.dot_dimension_numbers<[1], [0], [0], [1], [0, 0, 1, 1], [], []>} : vector<32x64xf32>, vector<64x32xf32>, vector<32x32xf32> -> vector<32x32xf32>
    %c0_170 = arith.constant 0 : index
    %c0_171 = arith.constant 0 : index
    %253 = vector.load %arg16[%c0_170, %c0_171] : memref<1x32xf32, #tpu.memory_space<vmem>>, vector<1x32xf32>
    %254 = vector.broadcast %253 : vector<1x32xf32> to vector<32x32xf32>
    %255 = arith.addf %252, %254 : vector<32x32xf32>
    %256 = arith.addf %139, %255 : vector<32x32xf32>
    %c3_172 = arith.constant 3 : index
    %c0_173 = arith.constant 0 : index
    %c0_174 = arith.constant 0 : index
    %257 = vector.load %arg3[%c3_172, %c0_173, %c0_174] : memref<4x1x32xf32, #tpu.memory_space<vmem>>, vector<1x1x32xf32>
    %258 = vector.shape_cast %257 : vector<1x1x32xf32> to vector<1x32xf32>
    %c3_175 = arith.constant 3 : index
    %c0_176 = arith.constant 0 : index
    %c0_177 = arith.constant 0 : index
    %259 = vector.load %arg4[%c3_175, %c0_176, %c0_177] : memref<4x1x32xf32, #tpu.memory_space<vmem>>, vector<1x1x32xf32>
    %260 = vector.shape_cast %259 : vector<1x1x32xf32> to vector<1x32xf32>
    %cst_178 = arith.constant dense<0.000000e+00> : vector<32xf32>
    %261 = vector.multi_reduction <add>, %256, %cst_178 [1] : vector<32x32xf32> to vector<32xf32>
    %262 = vector.shape_cast %261 : vector<32xf32> to vector<32x1xf32>
    %cst_179 = arith.constant 3.200000e+01 : f32
    %263 = vector.broadcast %cst_179 : f32 to vector<32x1xf32>
    %264 = arith.divf %262, %263 : vector<32x1xf32>
    %265 = vector.broadcast %264 : vector<32x1xf32> to vector<32x32xf32>
    %266 = arith.subf %256, %265 : vector<32x32xf32>
    %267 = arith.mulf %266, %266 : vector<32x32xf32>
    %cst_180 = arith.constant dense<0.000000e+00> : vector<32xf32>
    %268 = vector.multi_reduction <add>, %267, %cst_180 [1] : vector<32x32xf32> to vector<32xf32>
    %269 = vector.shape_cast %268 : vector<32xf32> to vector<32x1xf32>
    %cst_181 = arith.constant 3.200000e+01 : f32
    %270 = vector.broadcast %cst_181 : f32 to vector<32x1xf32>
    %271 = arith.divf %269, %270 : vector<32x1xf32>
    %cst_182 = arith.constant 9.99999997E-7 : f32
    %272 = vector.broadcast %cst_182 : f32 to vector<32x1xf32>
    %273 = arith.addf %271, %272 : vector<32x1xf32>
    %274 = math.rsqrt %273 : vector<32x1xf32>
    %275 = vector.broadcast %274 : vector<32x1xf32> to vector<32x32xf32>
    %276 = arith.mulf %266, %275 : vector<32x32xf32>
    %277 = vector.broadcast %258 : vector<1x32xf32> to vector<32x32xf32>
    %278 = arith.mulf %276, %277 : vector<32x32xf32>
    %279 = vector.broadcast %260 : vector<1x32xf32> to vector<32x32xf32>
    %280 = arith.addf %278, %279 : vector<32x32xf32>
    %c0_183 = arith.constant 0 : index
    %c0_184 = arith.constant 0 : index
    %281 = vector.load %arg17[%c0_183, %c0_184] : memref<32x16xf32, #tpu.memory_space<vmem>>, vector<32x16xf32>
    %cst_185 = arith.constant dense<0.000000e+00> : vector<32x16xf32>
    %282 = tpu.matmul %280, %281, %cst_185 {dimension_numbers = #tpu.dot_dimension_numbers<[1], [0], [0], [1], [0, 0, 1, 1], [], []>} : vector<32x32xf32>, vector<32x16xf32>, vector<32x16xf32> -> vector<32x16xf32>
    %c0_186 = arith.constant 0 : index
    %c0_187 = arith.constant 0 : index
    %283 = vector.load %arg18[%c0_186, %c0_187] : memref<1x16xf32, #tpu.memory_space<vmem>>, vector<1x16xf32>
    %284 = vector.broadcast %283 : vector<1x16xf32> to vector<32x16xf32>
    %285 = arith.addf %282, %284 : vector<32x16xf32>
    %c0_188 = arith.constant 0 : index
    %c0_189 = arith.constant 0 : index
    %286 = vector.load %arg19[%c0_188, %c0_189] : memref<32x128xf32, #tpu.memory_space<vmem>>, vector<32x128xf32>
    %cst_190 = arith.constant dense<0.000000e+00> : vector<32x128xf32>
    %287 = tpu.matmul %280, %286, %cst_190 {dimension_numbers = #tpu.dot_dimension_numbers<[1], [0], [0], [1], [0, 0, 1, 1], [], []>} : vector<32x32xf32>, vector<32x128xf32>, vector<32x128xf32> -> vector<32x128xf32>
    %c0_191 = arith.constant 0 : index
    %c0_192 = arith.constant 0 : index
    %288 = vector.load %arg20[%c0_191, %c0_192] : memref<16x128xf32, #tpu.memory_space<vmem>>, vector<16x128xf32>
    %cst_193 = arith.constant dense<0.000000e+00> : vector<32x128xf32>
    %289 = tpu.matmul %285, %288, %cst_193 {dimension_numbers = #tpu.dot_dimension_numbers<[1], [0], [0], [1], [0, 0, 1, 1], [], []>} : vector<32x16xf32>, vector<16x128xf32>, vector<32x128xf32> -> vector<32x128xf32>
    %290 = arith.addf %287, %289 : vector<32x128xf32>
    %c0_194 = arith.constant 0 : index
    %c0_195 = arith.constant 0 : index
    %291 = vector.load %arg21[%c0_194, %c0_195] : memref<1x128xf32, #tpu.memory_space<vmem>>, vector<1x128xf32>
    %292 = vector.broadcast %291 : vector<1x128xf32> to vector<32x128xf32>
    %293 = arith.addf %290, %292 : vector<32x128xf32>
    %c0_196 = arith.constant 0 : index
    %c0_197 = arith.constant 0 : index
    %294 = vector.load %arg22[%c0_196, %c0_197] : memref<32x128xf32, #tpu.memory_space<vmem>>, vector<32x128xf32>
    tpu.vector_store %arg22[%c0_196, %c0_197], %293 {strides = array<i32>} : memref<32x128xf32, #tpu.memory_space<vmem>>, vector<32x128xf32>,
    return
  }
}

</mosaic_0001>

<llo_original>
// kernel: _lambda_.1
$region0: #{_lambda_.1}
  #allocation0 [shape = 'u32[]', space=smem, size = 0x4, offset = 0x4, fixed_abs, tag = 'smem constant byte address 0x4 - core index']
  #allocation1 [shape = 'u32[144,128]{1,0:T(1,128)}', space=vmem, size = 0x12000, scoped, tag = 'internal scratch']
  %s0 = inlined_call_operand.vmem [shape: f32[32,147], index: 0, kind: input, shape index: {}]
  %s1 = inlined_call_operand.vmem [shape: f32[147,32], index: 1, kind: input, shape index: {}]
  %s2 = inlined_call_operand.vmem [shape: f32[1,32], index: 2, kind: input, shape index: {}]
  %s3 = inlined_call_operand.vmem [shape: f32[4,1,32], index: 3, kind: input, shape index: {}]
  %s4 = inlined_call_operand.vmem [shape: f32[4,1,32], index: 4, kind: input, shape index: {}]
  %s5 = inlined_call_operand.vmem [shape: f32[6,32,16], index: 5, kind: input, shape index: {}]
  %s6 = inlined_call_operand.vmem [shape: f32[6,1,16], index: 6, kind: input, shape index: {}]
  %s7 = inlined_call_operand.vmem [shape: f32[2,16,32], index: 7, kind: input, shape index: {}]
  %s8 = inlined_call_operand.vmem [shape: f32[1,32], index: 8, kind: input, shape index: {}]
  %s9 = inlined_call_operand.vmem [shape: f32[32,32], index: 9, kind: input, shape index: {}]
  %s10 = inlined_call_operand.vmem [shape: f32[32,64], index: 10, kind: input, shape index: {}]
  %s11 = inlined_call_operand.vmem [shape: f32[1,64], index: 11, kind: input, shape index: {}]
  %s12 = inlined_call_operand.vmem [shape: f32[9,32,32], index: 12, kind: input, shape index: {}]
  %s13 = inlined_call_operand.vmem [shape: f32[9,1,64], index: 13, kind: input, shape index: {}]
  %s14 = inlined_call_operand.vmem [shape: f32[1,64], index: 14, kind: input, shape index: {}]
  %s15 = inlined_call_operand.vmem [shape: f32[64,32], index: 15, kind: input, shape index: {}]
  %s16 = inlined_call_operand.vmem [shape: f32[1,32], index: 16, kind: input, shape index: {}]
  %s17 = inlined_call_operand.vmem [shape: f32[32,16], index: 17, kind: input, shape index: {}]
  %s18 = inlined_call_operand.vmem [shape: f32[1,16], index: 18, kind: input, shape index: {}]
  %s19 = inlined_call_operand.vmem [shape: f32[32,128], index: 19, kind: input, shape index: {}]
  %s20 = inlined_call_operand.vmem [shape: f32[16,128], index: 20, kind: input, shape index: {}]
  %s21 = inlined_call_operand.vmem [shape: f32[1,128], index: 21, kind: input, shape index: {}]
  %s22 = inlined_call_operand.vmem [shape: f32[32,128], index: 22, kind: output, shape index: {}]
  %s23 = sld [smem:[#allocation0]]
  $region98: #{_lambda_.1} parent=0
    _
  %s25 = ssub.s32 1, %s23
  %s26 = scalar_select 0, %s25, %s23
  // Predicated region
  $region2: #{_lambda_.1} parent=0 // pred_check
    _
  $region3: #{_lambda_.1} parent=0 // pred_check_branch
    %28 = sbr.rel (0) target = $region5
  $region4: #{_lambda_.1} parent=0 // pred_region
    _
  $region5: #{_lambda_.1} parent=0 // pred_fallthru
    _
  // Predicated region
  $region6: #{_lambda_.1} parent=0 // pred_check
    _
  $region7: #{_lambda_.1} parent=0 // pred_check_branch
    %30 = sbr.rel (0) target = $region9
  $region8: #{_lambda_.1} parent=0 // pred_region
    _
  $region9: #{_lambda_.1} parent=0 // pred_fallthru
    _
  // Predicated region
  $region10: #{_lambda_.1} parent=0 // pred_check
    _
  $region11: #{_lambda_.1} parent=0 // pred_check_branch
    %32 = sbr.rel (0) target = $region13
  $region12: #{_lambda_.1} parent=0 // pred_region
    _
  $region13: #{_lambda_.1} parent=0 // pred_fallthru
    _
  // Predicated region
  $region14: #{_lambda_.1} parent=0 // pred_check
    _
  $region15: #{_lambda_.1} parent=0 // pred_check_branch
    %34 = sbr.rel (0) target = $region17
  $region16: #{_lambda_.1} parent=0 // pred_region
    _
  $region17: #{_lambda_.1} parent=0 // pred_fallthru
    _
  // Predicated region
  $region18: #{_lambda_.1} parent=0 // pred_check
    _
  $region19: #{_lambda_.1} parent=0 // pred_check_branch
    %36 = sbr.rel (0) target = $region21
  $region20: #{_lambda_.1} parent=0 // pred_region
    _
  $region21: #{_lambda_.1} parent=0 // pred_fallthru
    _
  // Predicated region
  $region22: #{_lambda_.1} parent=0 // pred_check
    _
  $region23: #{_lambda_.1} parent=0 // pred_check_branch
    %38 = sbr.rel (0) target = $region25
  $region24: #{_lambda_.1} parent=0 // pred_region
    _
  $region25: #{_lambda_.1} parent=0 // pred_fallthru
    _
  // Predicated region
  $region26: #{_lambda_.1} parent=0 // pred_check
    _
  $region27: #{_lambda_.1} parent=0 // pred_check_branch
    %40 = sbr.rel (0) target = $region29
  $region28: #{_lambda_.1} parent=0 // pred_region
    _
  $region29: #{_lambda_.1} parent=0 // pred_fallthru
    _
  // Predicated region
  $region30: #{_lambda_.1} parent=0 // pred_check
    _
  $region31: #{_lambda_.1} parent=0 // pred_check_branch
    %42 = sbr.rel (0) target = $region33
  $region32: #{_lambda_.1} parent=0 // pred_region
    _
  $region33: #{_lambda_.1} parent=0 // pred_fallthru
    _
  // Predicated region
  $region34: #{_lambda_.1} parent=0 // pred_check
    _
  $region35: #{_lambda_.1} parent=0 // pred_check_branch
    %44 = sbr.rel (0) target = $region37
  $region36: #{_lambda_.1} parent=0 // pred_region
    _
  $region37: #{_lambda_.1} parent=0 // pred_fallthru
    _
  // Predicated region
  $region38: #{_lambda_.1} parent=0 // pred_check
    _
  $region39: #{_lambda_.1} parent=0 // pred_check_branch
    %46 = sbr.rel (0) target = $region41
  $region40: #{_lambda_.1} parent=0 // pred_region
    _
  $region41: #{_lambda_.1} parent=0 // pred_fallthru
    _
  // Predicated region
  $region42: #{_lambda_.1} parent=0 // pred_check
    _
  $region43: #{_lambda_.1} parent=0 // pred_check_branch
    %48 = sbr.rel (0) target = $region45
  $region44: #{_lambda_.1} parent=0 // pred_region
    _
  $region45: #{_lambda_.1} parent=0 // pred_fallthru
    _
  // Predicated region
  $region46: #{_lambda_.1} parent=0 // pred_check
    _
  $region47: #{_lambda_.1} parent=0 // pred_check_branch
    %50 = sbr.rel (0) target = $region49
  $region48: #{_lambda_.1} parent=0 // pred_region
    _
  $region49: #{_lambda_.1} parent=0 // pred_fallthru
    _
  // Predicated region
  $region50: #{_lambda_.1} parent=0 // pred_check
    _
  $region51: #{_lambda_.1} parent=0 // pred_check_branch
    %52 = sbr.rel (0) target = $region53
  $region52: #{_lambda_.1} parent=0 // pred_region
    _
  $region53: #{_lambda_.1} parent=0 // pred_fallthru
    _
  // Predicated region
  $region54: #{_lambda_.1} parent=0 // pred_check
    _
  $region55: #{_lambda_.1} parent=0 // pred_check_branch
    %54 = sbr.rel (0) target = $region57
  $region56: #{_lambda_.1} parent=0 // pred_region
    _
  $region57: #{_lambda_.1} parent=0 // pred_fallthru
    _
  // Predicated region
  $region58: #{_lambda_.1} parent=0 // pred_check
    _
  $region59: #{_lambda_.1} parent=0 // pred_check_branch
    %56 = sbr.rel (0) target = $region61
  $region60: #{_lambda_.1} parent=0 // pred_region
    _
  $region61: #{_lambda_.1} parent=0 // pred_fallthru
    _
  // Predicated region
  $region62: #{_lambda_.1} parent=0 // pred_check
    _
  $region63: #{_lambda_.1} parent=0 // pred_check_branch
    %58 = sbr.rel (0) target = $region65
  $region64: #{_lambda_.1} parent=0 // pred_region
    _
  $region65: #{_lambda_.1} parent=0 // pred_fallthru
    _
  // Predicated region
  $region66: #{_lambda_.1} parent=0 // pred_check
    _
  $region67: #{_lambda_.1} parent=0 // pred_check_branch
    %60 = sbr.rel (0) target = $region69
  $region68: #{_lambda_.1} parent=0 // pred_region
    _
  $region69: #{_lambda_.1} parent=0 // pred_fallthru
    _
  // Predicated region
  $region70: #{_lambda_.1} parent=0 // pred_check
    _
  $region71: #{_lambda_.1} parent=0 // pred_check_branch
    %62 = sbr.rel (0) target = $region73
  $region72: #{_lambda_.1} parent=0 // pred_region
    _
  $region73: #{_lambda_.1} parent=0 // pred_fallthru
    _
  // Predicated region
  $region74: #{_lambda_.1} parent=0 // pred_check
    _
  $region75: #{_lambda_.1} parent=0 // pred_check_branch
    %64 = sbr.rel (0) target = $region77
  $region76: #{_lambda_.1} parent=0 // pred_region
    _
  $region77: #{_lambda_.1} parent=0 // pred_fallthru
    _
  // Predicated region
  $region78: #{_lambda_.1} parent=0 // pred_check
    _
  $region79: #{_lambda_.1} parent=0 // pred_check_branch
    %66 = sbr.rel (0) target = $region81
  $region80: #{_lambda_.1} parent=0 // pred_region
    _
  $region81: #{_lambda_.1} parent=0 // pred_fallthru
    _
  // Predicated region
  $region82: #{_lambda_.1} parent=0 // pred_check
    _
  $region83: #{_lambda_.1} parent=0 // pred_check_branch
    %68 = sbr.rel (0) target = $region85
  $region84: #{_lambda_.1} parent=0 // pred_region
    _
  $region85: #{_lambda_.1} parent=0 // pred_fallthru
    _
  // Predicated region
  $region86: #{_lambda_.1} parent=0 // pred_check
    _
  $region87: #{_lambda_.1} parent=0 // pred_check_branch
    %70 = sbr.rel (0) target = $region89
  $region88: #{_lambda_.1} parent=0 // pred_region
    _
  $region89: #{_lambda_.1} parent=0 // pred_fallthru
    _
  %v71 = vld [vmem:[%s0] sm:$0xff]
  %v72 = vld [vmem:[%s0 + $0x8] sm:$0xff]
  %v73 = vld [vmem:[%s0 + $0x10] sm:$0xff]
  %v74 = vld [vmem:[%s0 + $0x18] sm:$0xff]
  %v75 = vld [vmem:[%s0 + $0x20] sm:$0xff]
  %v76 = vld [vmem:[%s0 + $0x28] sm:$0xff]
  %v77 = vld [vmem:[%s0 + $0x30] sm:$0xff]
  %v78 = vld [vmem:[%s0 + $0x38] sm:$0xff]
  %v79 = vld [vmem:[%s1] sm:$0xff]
  %v80 = vld [vmem:[%s1 + $0x8] sm:$0xff]
  %v81 = vld [vmem:[%s1 + $0x10] sm:$0xff]
  %v82 = vld [vmem:[%s1 + $0x18] sm:$0xff]
  %v83 = vld [vmem:[%s1 + $0x20] sm:$0xff]
  %v84 = vld [vmem:[%s1 + $0x28] sm:$0xff]
  %v85 = vld [vmem:[%s1 + $0x30] sm:$0xff]
  %v86 = vld [vmem:[%s1 + $0x38] sm:$0xff]
  %v87 = vld [vmem:[%s1 + $0x40] sm:$0xff]
  %v88 = vld [vmem:[%s1 + $0x48] sm:$0xff]
  %v89 = vld [vmem:[%s1 + $0x50] sm:$0xff]
  %v90 = vld [vmem:[%s1 + $0x58] sm:$0xff]
  %v91 = vld [vmem:[%s1 + $0x60] sm:$0xff]
  %v92 = vld [vmem:[%s1 + $0x68] sm:$0xff]
  %v93 = vld [vmem:[%s1 + $0x70] sm:$0xff]
  %v94 = vld [vmem:[%s1 + $0x78] sm:$0xff]
  %v95 = vld [vmem:[%s1 + $0x80] sm:$0xff]
  %v96 = vld [vmem:[%s1 + $0x88] sm:$0xff]
  %v97 = vld [vmem:[%s1 + $0x90] sm:$0x7]
  %v98 = vld [vmem:[%s2] sm:$0x1]
  %v100 = vlaneseq
  %v101 = vshrl.u32 %v100, 7
  %v102 = vsub.s32 0, %v101
  %v103 = vrot.slane %v98, %v102
  %vm105 = vcmask 154624
  %v107 = vsel %vm105, %v72, 0
  %v110 = vsel %vm105, %v74, 0
  %v113 = vsel %vm105, %v76, 0
  %v116 = vsel %vm105, %v78, 0
  %vm118 = vcmask 1042432
  %v120 = vsel %vm118, %v97, 0
  %122 = vmatprep.subr.mxu0 0.0
  %123 = vmatpush1.msra.mxu0 %v94
  %124 = vmatprep.subr.mxu0 0.0
  %125 = vmatpush1.msra.mxu0 %v93
  %126 = vmatprep.subr.mxu0 0.0
  %127 = vmatpush1.msra.mxu0 %v92
  %128 = vmatprep.subr.mxu0 0.0
  %129 = vmatpush1.msra.mxu0 %v91
  %130 = vmatprep.subr.mxu0 0.0
  %131 = vmatpush1.msra.mxu0 %v90
  %132 = vmatprep.subr.mxu0 0.0
  %133 = vmatpush1.msra.mxu0 %v89
  %134 = vmatprep.subr.mxu0 0.0
  %135 = vmatpush1.msra.mxu0 %v88
  %136 = vmatprep.subr.mxu0 0.0
  %137 = vmatpush1.msra.mxu0 %v87
  %138 = vmatprep.subr.mxu0 0.0
  %139 = vmatpush1.msra.mxu0 %v86
  %140 = vmatprep.subr.mxu0 0.0
  %141 = vmatpush1.msra.mxu0 %v85
  %142 = vmatprep.subr.mxu0 0.0
  %143 = vmatpush1.msra.mxu0 %v84
  %144 = vmatprep.subr.mxu0 0.0
  %145 = vmatpush1.msra.mxu0 %v83
  %146 = vmatprep.subr.mxu0 0.0
  %147 = vmatpush1.msra.mxu0 %v82
  %148 = vmatprep.subr.mxu0 0.0
  %149 = vmatpush1.msra.mxu0 %v81
  %150 = vmatprep.subr.mxu0 0.0
  %151 = vmatpush1.msra.mxu0 %v80
  %152 = vmatprep.subr.mxu0 0.0
  %153 = vmatpush1.msra.mxu0 %v79
  %154 = vmatprep.subr.mxu0 0.0
  %155 = vmatpush2.msra.mxu0 0.0
  %156 = vmatprep.subr.mxu0 0.0
  %157 = vmatpush2.msra.mxu0 0.0
  %158 = vmatprep.subr.mxu0 0.0
  %159 = vmatpush2.msra.mxu0 0.0
  %160 = vmatprep.subr.mxu0 0.0
  %161 = vmatpush2.msra.mxu0 0.0
  %162 = vmatprep.subr.mxu0 0.0
  %163 = vmatpush2.msra.mxu0 0.0
  %164 = vmatprep.subr.mxu0 0.0
  %165 = vmatpush2.msra.mxu0 0.0
  %166 = vmatprep.subr.mxu0 0.0
  %167 = vmatpush2.msra.mxu0 0.0
  %168 = vmatprep.subr.mxu0 0.0
  %169 = vmatpush2.msra.mxu0 0.0
  %170 = vmatprep.subr.mxu0 0.0
  %171 = vmatpush2.msra.mxu0 0.0
  %172 = vmatprep.subr.mxu0 0.0
  %173 = vmatpush2.msra.mxu0 0.0
  %174 = vmatprep.subr.mxu0 0.0
  %175 = vmatpush2.msra.mxu0 0.0
  %176 = vmatprep.subr.mxu0 0.0
  %177 = vmatpush2.msra.mxu0 0.0
  %178 = vmatprep.subr.mxu0 0.0
  %179 = vmatpush2.msra.mxu0 0.0
  %180 = vmatprep.subr.mxu0 0.0
  %181 = vmatpush2.msra.mxu0 %v120
  %182 = vmatprep.subr.mxu0 0.0
  %183 = vmatpush2.msra.mxu0 %v96
  %184 = vmatprep.subr.mxu0 0.0
  %185 = vmatpush2.msra.mxu0 %v95
  %186 = vmatprep.mubr.f32.mxu0 %v107
  %187 = vmatmul.mubr.f32.gmra.mxu0 %v71
  %v188 = vpop.f32.mrf.mxu0
  %v189 = vadd.f32 %v103, %v188
  %v190 = vpop.f32.mrf.mxu0
  %191 = vmatprep.mubr.f32.mxu0 %v110
  %192 = vmatmul.mubr.f32.gmra.mxu0 %v73
  %v193 = vpop.f32.mrf.mxu0
  %v194 = vadd.f32 %v103, %v193
  %v195 = vpop.f32.mrf.mxu0
  %196 = vmatprep.mubr.f32.mxu0 %v113
  %197 = vmatmul.mubr.f32.gmra.mxu0 %v75
  %v198 = vpop.f32.mrf.mxu0
  %v199 = vadd.f32 %v103, %v198
  %v200 = vpop.f32.mrf.mxu0
  %201 = vmatprep.mubr.f32.mxu0 %v116
  %202 = vmatmul.mubr.f32.gmra.mxu0 %v77
  %v203 = vpop.f32.mrf.mxu0
  %v204 = vadd.f32 %v103, %v203
  %v205 = vpop.f32.mrf.mxu0
  %206 = vdwg.mxu0
  %v207 = vld [vmem:[%s3] sm:$0x1]
  %v208 = vld [vmem:[%s4] sm:$0x1]
  %vm209 = vcmask 261120
  %v210 = vsel %vm209, %v189, 0.0
  %211 = vadd.xlane.f32.xlu0 %v210
  %v212 = vpop.xlane.xlu0 %211
  %v213 = vsel %vm209, %v194, 0.0
  %214 = vadd.xlane.f32.xlu0 %v213
  %v215 = vpop.xlane.xlu0 %214
  %v216 = vsel %vm209, %v199, 0.0
  %217 = vadd.xlane.f32.xlu0 %v216
  %v218 = vpop.xlane.xlu0 %217
  %v219 = vsel %vm209, %v204, 0.0
  %220 = vadd.xlane.f32.xlu0 %v219
  %v221 = vpop.xlane.xlu0 %220
  %v222 = vrcp.pop 32.0
  %v223 = vmul.f32 %v212, %v222
  %v224 = vmul.f32 %v215, %v222
  %v225 = vmul.f32 %v218, %v222
  %v226 = vmul.f32 %v221, %v222
  %v227 = vsub.f32 %v189, %v223
  %v228 = vsub.f32 %v194, %v224
  %v229 = vsub.f32 %v199, %v225
  %v230 = vsub.f32 %v204, %v226
  %v231 = vmul.f32 %v227, %v227
  %v232 = vmul.f32 %v228, %v228
  %v233 = vmul.f32 %v229, %v229
  %v234 = vmul.f32 %v230, %v230
  %v235 = vsel %vm209, %v231, 0.0
  %236 = vadd.xlane.f32.xlu0 %v235
  %v237 = vpop.xlane.xlu0 %236
  %v238 = vsel %vm209, %v232, 0.0
  %239 = vadd.xlane.f32.xlu0 %v238
  %v240 = vpop.xlane.xlu0 %239
  %v241 = vsel %vm209, %v233, 0.0
  %242 = vadd.xlane.f32.xlu0 %v241
  %v243 = vpop.xlane.xlu0 %242
  %v244 = vsel %vm209, %v234, 0.0
  %245 = vadd.xlane.f32.xlu0 %v244
  %v246 = vpop.xlane.xlu0 %245
  %v247 = vmul.f32 %v237, %v222
  %v248 = vmul.f32 %v240, %v222
  %v249 = vmul.f32 %v243, %v222
  %v250 = vmul.f32 %v246, %v222
  %v251 = vadd.f32 %v247, 1e-06
  %v252 = vadd.f32 %v248, 1e-06
  %v253 = vadd.f32 %v249, 1e-06
  %v254 = vadd.f32 %v250, 1e-06
  %v255 = vrsqrt.pop %v251
  %v256 = vrsqrt.pop %v252
  %v257 = vrsqrt.pop %v253
  %v258 = vrsqrt.pop %v254
  %v259 = vmul.f32 %v227, %v255
  %v260 = vmul.f32 %v228, %v256
  %v261 = vmul.f32 %v229, %v257
  %v262 = vmul.f32 %v230, %v258
  %v264 = vlaneseq
  %v265 = vshrl.u32 %v264, 7
  %v266 = vsub.s32 0, %v265
  %v267 = vrot.slane %v207, %v266
  %v269 = vmul.f32 %v259, %v267
  %v270 = vmul.f32 %v260, %v267
  %v271 = vmul.f32 %v261, %v267
  %v272 = vmul.f32 %v262, %v267
  %v274 = vlaneseq
  %v275 = vshrl.u32 %v274, 7
  %v276 = vsub.s32 0, %v275
  %v277 = vrot.slane %v208, %v276
  %v279 = vadd.f32 %v269, %v277
  %v280 = vadd.f32 %v270, %v277
  %v281 = vadd.f32 %v271, %v277
  %v282 = vadd.f32 %v272, %v277
  %s283 = scalar_lea.vmem %s3, 1
  %v284 = vld [vmem:[%s283] sm:$0x1]
  %s285 = scalar_lea.vmem %s4, 1
  %v286 = vld [vmem:[%s285] sm:$0x1]
  %v287 = vsel %vm209, %v279, 0.0
  %288 = vadd.xlane.f32.xlu0 %v287
  %v289 = vpop.xlane.xlu0 %288
  %v290 = vsel %vm209, %v280, 0.0
  %291 = vadd.xlane.f32.xlu0 %v290
  %v292 = vpop.xlane.xlu0 %291
  %v293 = vsel %vm209, %v281, 0.0
  %294 = vadd.xlane.f32.xlu0 %v293
  %v295 = vpop.xlane.xlu0 %294
  %v296 = vsel %vm209, %v282, 0.0
  %297 = vadd.xlane.f32.xlu0 %v296
  %v298 = vpop.xlane.xlu0 %297
  %v299 = vmul.f32 %v289, %v222
  %v300 = vmul.f32 %v292, %v222
  %v301 = vmul.f32 %v295, %v222
  %v302 = vmul.f32 %v298, %v222
  %v303 = vsub.f32 %v279, %v299
  %v304 = vsub.f32 %v280, %v300
  %v305 = vsub.f32 %v281, %v301
  %v306 = vsub.f32 %v282, %v302
  %v307 = vmul.f32 %v303, %v303
  %v308 = vmul.f32 %v304, %v304
  %v309 = vmul.f32 %v305, %v305
  %v310 = vmul.f32 %v306, %v306
  %v311 = vsel %vm209, %v307, 0.0
  %312 = vadd.xlane.f32.xlu0 %v311
  %v313 = vpop.xlane.xlu0 %312
  %v314 = vsel %vm209, %v308, 0.0
  %315 = vadd.xlane.f32.xlu0 %v314
  %v316 = vpop.xlane.xlu0 %315
  %v317 = vsel %vm209, %v309, 0.0
  %318 = vadd.xlane.f32.xlu0 %v317
  %v319 = vpop.xlane.xlu0 %318
  %v320 = vsel %vm209, %v310, 0.0
  %321 = vadd.xlane.f32.xlu0 %v320
  %v322 = vpop.xlane.xlu0 %321
  %v323 = vmul.f32 %v313, %v222
  %v324 = vmul.f32 %v316, %v222
  %v325 = vmul.f32 %v319, %v222
  %v326 = vmul.f32 %v322, %v222
  %v327 = vadd.f32 %v323, 1e-06
  %v328 = vadd.f32 %v324, 1e-06
  %v329 = vadd.f32 %v325, 1e-06
  %v330 = vadd.f32 %v326, 1e-06
  %v331 = vrsqrt.pop %v327
  %v332 = vrsqrt.pop %v328
  %v333 = vrsqrt.pop %v329
  %v334 = vrsqrt.pop %v330
  %v335 = vmul.f32 %v303, %v331
  %v336 = vmul.f32 %v304, %v332
  %v337 = vmul.f32 %v305, %v333
  %v338 = vmul.f32 %v306, %v334
  %v340 = vlaneseq
  %v341 = vshrl.u32 %v340, 7
  %v342 = vsub.s32 0, %v341
  %v343 = vrot.slane %v284, %v342
  %v345 = vmul.f32 %v335, %v343
  %v346 = vmul.f32 %v336, %v343
  %v347 = vmul.f32 %v337, %v343
  %v348 = vmul.f32 %v338, %v343
  %v350 = vlaneseq
  %v351 = vshrl.u32 %v350, 7
  %v352 = vsub.s32 0, %v351
  %v353 = vrot.slane %v286, %v352
  %v355 = vadd.f32 %v345, %v353
  %v356 = vadd.f32 %v346, %v353
  %v357 = vadd.f32 %v347, %v353
  %v358 = vadd.f32 %v348, %v353
  %v359 = vld [vmem:[%s9] sm:$0xff]
  %v360 = vld [vmem:[%s9 + $0x8] sm:$0xff]
  %v361 = vld [vmem:[%s9 + $0x10] sm:$0xff]
  %v362 = vld [vmem:[%s9 + $0x18] sm:$0xff]
  %v363 = vld [vmem:[%s8] sm:$0x1]
  %v364 = vld [vmem:[%s5] sm:$0xff]
  %v365 = vld [vmem:[%s5 + $0x8] sm:$0xff]
  %v366 = vld [vmem:[%s5 + $0x10] sm:$0xff]
  %v367 = vld [vmem:[%s5 + $0x18] sm:$0xff]
  %v368 = vld [vmem:[%s6] sm:$0x1]
  %v370 = vlaneseq
  %v371 = vshrl.u32 %v370, 7
  %v372 = vsub.s32 0, %v371
  %v373 = vrot.slane %v368, %v372
  %v376 = vsel %vm209, %v355, 0
  %v379 = vsel %vm209, %v356, 0
  %v382 = vsel %vm209, %v357, 0
  %v385 = vsel %vm209, %v358, 0
  %387 = vmatprep.subr.mxu0 0.0
  %388 = vmatpush1.msra.mxu0 0.0
  %389 = vmatprep.subr.mxu0 0.0
  %390 = vmatpush1.msra.mxu0 0.0
  %391 = vmatprep.subr.mxu0 0.0
  %392 = vmatpush1.msra.mxu0 0.0
  %393 = vmatprep.subr.mxu0 0.0
  %394 = vmatpush1.msra.mxu0 0.0
  %395 = vmatprep.subr.mxu0 0.0
  %396 = vmatpush1.msra.mxu0 0.0
  %397 = vmatprep.subr.mxu0 0.0
  %398 = vmatpush1.msra.mxu0 0.0
  %399 = vmatprep.subr.mxu0 0.0
  %400 = vmatpush1.msra.mxu0 0.0
  %401 = vmatprep.subr.mxu0 0.0
  %402 = vmatpush1.msra.mxu0 0.0
  %403 = vmatprep.subr.mxu0 0.0
  %404 = vmatpush1.msra.mxu0 0.0
  %405 = vmatprep.subr.mxu0 0.0
  %406 = vmatpush1.msra.mxu0 0.0
  %407 = vmatprep.subr.mxu0 0.0
  %408 = vmatpush1.msra.mxu0 0.0
  %409 = vmatprep.subr.mxu0 0.0
  %410 = vmatpush1.msra.mxu0 0.0
  %411 = vmatprep.subr.mxu0 0.0
  %412 = vmatpush1.msra.mxu0 %v367
  %413 = vmatprep.subr.mxu0 0.0
  %414 = vmatpush1.msra.mxu0 %v366
  %415 = vmatprep.subr.mxu0 0.0
  %416 = vmatpush1.msra.mxu0 %v365
  %417 = vmatprep.subr.mxu0 0.0
  %418 = vmatpush1.msra.mxu0 %v364
  %419 = vmatprep.subr.mxu0 0.0
  %420 = vmatpush2.msra.mxu0 0.0
  %421 = vmatprep.subr.mxu0 0.0
  %422 = vmatpush2.msra.mxu0 0.0
  %423 = vmatprep.subr.mxu0 0.0
  %424 = vmatpush2.msra.mxu0 0.0
  %425 = vmatprep.subr.mxu0 0.0
  %426 = vmatpush2.msra.mxu0 0.0
  %427 = vmatprep.subr.mxu0 0.0
  %428 = vmatpush2.msra.mxu0 0.0
  %429 = vmatprep.subr.mxu0 0.0
  %430 = vmatpush2.msra.mxu0 0.0
  %431 = vmatprep.subr.mxu0 0.0
  %432 = vmatpush2.msra.mxu0 0.0
  %433 = vmatprep.subr.mxu0 0.0
  %434 = vmatpush2.msra.mxu0 0.0
  %435 = vmatprep.subr.mxu0 0.0
  %436 = vmatpush2.msra.mxu0 0.0
  %437 = vmatprep.subr.mxu0 0.0
  %438 = vmatpush2.msra.mxu0 0.0
  %439 = vmatprep.subr.mxu0 0.0
  %440 = vmatpush2.msra.mxu0 0.0
  %441 = vmatprep.subr.mxu0 0.0
  %442 = vmatpush2.msra.mxu0 0.0
  %443 = vmatprep.subr.mxu0 0.0
  %444 = vmatpush2.msra.mxu0 0.0
  %445 = vmatprep.subr.mxu0 0.0
  %446 = vmatpush2.msra.mxu0 0.0
  %447 = vmatprep.subr.mxu0 0.0
  %448 = vmatpush2.msra.mxu0 0.0
  %449 = vmatprep.subr.mxu0 0.0
  %450 = vmatpush2.msra.mxu0 0.0
  %451 = vmatprep.mubr.f32.mxu0 0.0
  %452 = vmatmul.mubr.f32.gmra.mxu0 %v376
  %v453 = vpop.f32.mrf.mxu0
  %v454 = vadd.f32 %v373, %v453
  %v455 = vpop.f32.mrf.mxu0
  %456 = vmatprep.mubr.f32.mxu0 0.0
  %457 = vmatmul.mubr.f32.gmra.mxu0 %v379
  %v458 = vpop.f32.mrf.mxu0
  %v459 = vadd.f32 %v373, %v458
  %v460 = vpop.f32.mrf.mxu0
  %461 = vmatprep.mubr.f32.mxu0 0.0
  %462 = vmatmul.mubr.f32.gmra.mxu0 %v382
  %v463 = vpop.f32.mrf.mxu0
  %v464 = vadd.f32 %v373, %v463
  %v465 = vpop.f32.mrf.mxu0
  %466 = vmatprep.mubr.f32.mxu0 0.0
  %467 = vmatmul.mubr.f32.gmra.mxu0 %v385
  %v468 = vpop.f32.mrf.mxu0
  %v469 = vadd.f32 %v373, %v468
  %v470 = vpop.f32.mrf.mxu0
  %471 = vdwg.mxu0
  %v472 = vmul.f32 %v454, 0.25
  %v473 = vmul.f32 %v459, 0.25
  %v474 = vmul.f32 %v464, 0.25
  %v475 = vmul.f32 %v469, 0.25
  %s476 = scalar_lea.vmem %s5, 64
  %v477 = vld [vmem:[%s476] sm:$0xff]
  %v478 = vld [vmem:[%s476 + $0x8] sm:$0xff]
  %v479 = vld [vmem:[%s476 + $0x10] sm:$0xff]
  %v480 = vld [vmem:[%s476 + $0x18] sm:$0xff]
  %s481 = scalar_lea.vmem %s6, 2
  %v482 = vld [vmem:[%s481] sm:$0x1]
  %v484 = vlaneseq
  %v485 = vshrl.u32 %v484, 7
  %v486 = vsub.s32 0, %v485
  %v487 = vrot.slane %v482, %v486
  %489 = vmatprep.subr.mxu0 0.0
  %490 = vmatpush1.msra.mxu0 0.0
  %491 = vmatprep.subr.mxu0 0.0
  %492 = vmatpush1.msra.mxu0 0.0
  %493 = vmatprep.subr.mxu0 0.0
  %494 = vmatpush1.msra.mxu0 0.0
  %495 = vmatprep.subr.mxu0 0.0
  %496 = vmatpush1.msra.mxu0 0.0
  %497 = vmatprep.subr.mxu0 0.0
  %498 = vmatpush1.msra.mxu0 0.0
  %499 = vmatprep.subr.mxu0 0.0
  %500 = vmatpush1.msra.mxu0 0.0
  %501 = vmatprep.subr.mxu0 0.0
  %502 = vmatpush1.msra.mxu0 0.0
  %503 = vmatprep.subr.mxu0 0.0
  %504 = vmatpush1.msra.mxu0 0.0
  %505 = vmatprep.subr.mxu0 0.0
  %506 = vmatpush1.msra.mxu0 0.0
  %507 = vmatprep.subr.mxu0 0.0
  %508 = vmatpush1.msra.mxu0 0.0
  %509 = vmatprep.subr.mxu0 0.0
  %510 = vmatpush1.msra.mxu0 0.0
  %511 = vmatprep.subr.mxu0 0.0
  %512 = vmatpush1.msra.mxu0 0.0
  %513 = vmatprep.subr.mxu0 0.0
  %514 = vmatpush1.msra.mxu0 %v480
  %515 = vmatprep.subr.mxu0 0.0
  %516 = vmatpush1.msra.mxu0 %v479
  %517 = vmatprep.subr.mxu0 0.0
  %518 = vmatpush1.msra.mxu0 %v478
  %519 = vmatprep.subr.mxu0 0.0
  %520 = vmatpush1.msra.mxu0 %v477
  %521 = vmatprep.subr.mxu0 0.0
  %522 = vmatpush2.msra.mxu0 0.0
  %523 = vmatprep.subr.mxu0 0.0
  %524 = vmatpush2.msra.mxu0 0.0
  %525 = vmatprep.subr.mxu0 0.0
  %526 = vmatpush2.msra.mxu0 0.0
  %527 = vmatprep.subr.mxu0 0.0
  %528 = vmatpush2.msra.mxu0 0.0
  %529 = vmatprep.subr.mxu0 0.0
  %530 = vmatpush2.msra.mxu0 0.0
  %531 = vmatprep.subr.mxu0 0.0
  %532 = vmatpush2.msra.mxu0 0.0
  %533 = vmatprep.subr.mxu0 0.0
  %534 = vmatpush2.msra.mxu0 0.0
  %535 = vmatprep.subr.mxu0 0.0
  %536 = vmatpush2.msra.mxu0 0.0
  %537 = vmatprep.subr.mxu0 0.0
  %538 = vmatpush2.msra.mxu0 0.0
  %539 = vmatprep.subr.mxu0 0.0
  %540 = vmatpush2.msra.mxu0 0.0
  %541 = vmatprep.subr.mxu0 0.0
  %542 = vmatpush2.msra.mxu0 0.0
  %543 = vmatprep.subr.mxu0 0.0
  %544 = vmatpush2.msra.mxu0 0.0
  %545 = vmatprep.subr.mxu0 0.0
  %546 = vmatpush2.msra.mxu0 0.0
  %547 = vmatprep.subr.mxu0 0.0
  %548 = vmatpush2.msra.mxu0 0.0
  %549 = vmatprep.subr.mxu0 0.0
  %550 = vmatpush2.msra.mxu0 0.0
  %551 = vmatprep.subr.mxu0 0.0
  %552 = vmatpush2.msra.mxu0 0.0
  %553 = vmatprep.mubr.f32.mxu0 0.0
  %554 = vmatmul.mubr.f32.gmra.mxu0 %v376
  %v555 = vpop.f32.mrf.mxu0
  %v556 = vadd.f32 %v487, %v555
  %v557 = vpop.f32.mrf.mxu0
  %558 = vmatprep.mubr.f32.mxu0 0.0
  %559 = vmatmul.mubr.f32.gmra.mxu0 %v379
  %v560 = vpop.f32.mrf.mxu0
  %v561 = vadd.f32 %v487, %v560
  %v562 = vpop.f32.mrf.mxu0
  %563 = vmatprep.mubr.f32.mxu0 0.0
  %564 = vmatmul.mubr.f32.gmra.mxu0 %v382
  %v565 = vpop.f32.mrf.mxu0
  %v566 = vadd.f32 %v487, %v565
  %v567 = vpop.f32.mrf.mxu0
  %568 = vmatprep.mubr.f32.mxu0 0.0
  %569 = vmatmul.mubr.f32.gmra.mxu0 %v385
  %v570 = vpop.f32.mrf.mxu0
  %v571 = vadd.f32 %v487, %v570
  %v572 = vpop.f32.mrf.mxu0
  %573 = vdwg.mxu0
  %s574 = scalar_lea.vmem %s5, 128
  %v575 = vld [vmem:[%s574] sm:$0xff]
  %v576 = vld [vmem:[%s574 + $0x8] sm:$0xff]
  %v577 = vld [vmem:[%s574 + $0x10] sm:$0xff]
  %v578 = vld [vmem:[%s574 + $0x18] sm:$0xff]
  %s579 = scalar_lea.vmem %s6, 4
  %v580 = vld [vmem:[%s579] sm:$0x1]
  %v582 = vlaneseq
  %v583 = vshrl.u32 %v582, 7
  %v584 = vsub.s32 0, %v583
  %v585 = vrot.slane %v580, %v584
  %587 = vmatprep.subr.mxu0 0.0
  %588 = vmatpush1.msra.mxu0 0.0
  %589 = vmatprep.subr.mxu0 0.0
  %590 = vmatpush1.msra.mxu0 0.0
  %591 = vmatprep.subr.mxu0 0.0
  %592 = vmatpush1.msra.mxu0 0.0
  %593 = vmatprep.subr.mxu0 0.0
  %594 = vmatpush1.msra.mxu0 0.0
  %595 = vmatprep.subr.mxu0 0.0
  %596 = vmatpush1.msra.mxu0 0.0
  %597 = vmatprep.subr.mxu0 0.0
  %598 = vmatpush1.msra.mxu0 0.0
  %599 = vmatprep.subr.mxu0 0.0
  %600 = vmatpush1.msra.mxu0 0.0
  %601 = vmatprep.subr.mxu0 0.0
  %602 = vmatpush1.msra.mxu0 0.0
  %603 = vmatprep.subr.mxu0 0.0
  %604 = vmatpush1.msra.mxu0 0.0
  %605 = vmatprep.subr.mxu0 0.0
  %606 = vmatpush1.msra.mxu0 0.0
  %607 = vmatprep.subr.mxu0 0.0
  %608 = vmatpush1.msra.mxu0 0.0
  %609 = vmatprep.subr.mxu0 0.0
  %610 = vmatpush1.msra.mxu0 0.0
  %611 = vmatprep.subr.mxu0 0.0
  %612 = vmatpush1.msra.mxu0 %v578
  %613 = vmatprep.subr.mxu0 0.0
  %614 = vmatpush1.msra.mxu0 %v577
  %615 = vmatprep.subr.mxu0 0.0
  %616 = vmatpush1.msra.mxu0 %v576
  %617 = vmatprep.subr.mxu0 0.0
  %618 = vmatpush1.msra.mxu0 %v575
  %619 = vmatprep.subr.mxu0 0.0
  %620 = vmatpush2.msra.mxu0 0.0
  %621 = vmatprep.subr.mxu0 0.0
  %622 = vmatpush2.msra.mxu0 0.0
  %623 = vmatprep.subr.mxu0 0.0
  %624 = vmatpush2.msra.mxu0 0.0
  %625 = vmatprep.subr.mxu0 0.0
  %626 = vmatpush2.msra.mxu0 0.0
  %627 = vmatprep.subr.mxu0 0.0
  %628 = vmatpush2.msra.mxu0 0.0
  %629 = vmatprep.subr.mxu0 0.0
  %630 = vmatpush2.msra.mxu0 0.0
  %631 = vmatprep.subr.mxu0 0.0
  %632 = vmatpush2.msra.mxu0 0.0
  %633 = vmatprep.subr.mxu0 0.0
  %634 = vmatpush2.msra.mxu0 0.0
  %635 = vmatprep.subr.mxu0 0.0
  %636 = vmatpush2.msra.mxu0 0.0
  %637 = vmatprep.subr.mxu0 0.0
  %638 = vmatpush2.msra.mxu0 0.0
  %639 = vmatprep.subr.mxu0 0.0
  %640 = vmatpush2.msra.mxu0 0.0
  %641 = vmatprep.subr.mxu0 0.0
  %642 = vmatpush2.msra.mxu0 0.0
  %643 = vmatprep.subr.mxu0 0.0
  %644 = vmatpush2.msra.mxu0 0.0
  %645 = vmatprep.subr.mxu0 0.0
  %646 = vmatpush2.msra.mxu0 0.0
  %647 = vmatprep.subr.mxu0 0.0
  %648 = vmatpush2.msra.mxu0 0.0
  %649 = vmatprep.subr.mxu0 0.0
  %650 = vmatpush2.msra.mxu0 0.0
  %651 = vmatprep.mubr.f32.mxu0 0.0
  %652 = vmatmul.mubr.f32.gmra.mxu0 %v376
  %v653 = vpop.f32.mrf.mxu0
  %v654 = vadd.f32 %v585, %v653
  %v655 = vpop.f32.mrf.mxu0
  %656 = vmatprep.mubr.f32.mxu0 0.0
  %657 = vmatmul.mubr.f32.gmra.mxu0 %v379
  %v658 = vpop.f32.mrf.mxu0
  %v659 = vadd.f32 %v585, %v658
  %v660 = vpop.f32.mrf.mxu0
  %661 = vmatprep.mubr.f32.mxu0 0.0
  %662 = vmatmul.mubr.f32.gmra.mxu0 %v382
  %v663 = vpop.f32.mrf.mxu0
  %v664 = vadd.f32 %v585, %v663
  %v665 = vpop.f32.mrf.mxu0
  %666 = vmatprep.mubr.f32.mxu0 0.0
  %667 = vmatmul.mubr.f32.gmra.mxu0 %v385
  %v668 = vpop.f32.mrf.mxu0
  %v669 = vadd.f32 %v585, %v668
  %v670 = vpop.f32.mrf.mxu0
  %671 = vdwg.mxu0
  %vm672 = vcmask 130048
  %v674 = vsel %vm672, %v472, 0
  %v677 = vsel %vm672, %v473, 0
  %v680 = vsel %vm672, %v474, 0
  %v683 = vsel %vm672, %v475, 0
  %v686 = vsel %vm672, %v556, 0
  %v689 = vsel %vm672, %v561, 0
  %v692 = vsel %vm672, %v566, 0
  %v695 = vsel %vm672, %v571, 0
  %697 = vmatprep.subr.mxu0 0.0
  %698 = vmatpush1.xpose.msra.mxu0 0.0
  %699 = vmatprep.subr.mxu0 0.0
  %700 = vmatpush1.xpose.msra.mxu0 0.0
  %701 = vmatprep.subr.mxu0 0.0
  %702 = vmatpush1.xpose.msra.mxu0 0.0
  %703 = vmatprep.subr.mxu0 0.0
  %704 = vmatpush1.xpose.msra.mxu0 0.0
  %705 = vmatprep.subr.mxu0 0.0
  %706 = vmatpush1.xpose.msra.mxu0 0.0
  %707 = vmatprep.subr.mxu0 0.0
  %708 = vmatpush1.xpose.msra.mxu0 0.0
  %709 = vmatprep.subr.mxu0 0.0
  %710 = vmatpush1.xpose.msra.mxu0 0.0
  %711 = vmatprep.subr.mxu0 0.0
  %712 = vmatpush1.xpose.msra.mxu0 0.0
  %713 = vmatprep.subr.mxu0 0.0
  %714 = vmatpush1.xpose.msra.mxu0 0.0
  %715 = vmatprep.subr.mxu0 0.0
  %716 = vmatpush1.xpose.msra.mxu0 0.0
  %717 = vmatprep.subr.mxu0 0.0
  %718 = vmatpush1.xpose.msra.mxu0 0.0
  %719 = vmatprep.subr.mxu0 0.0
  %720 = vmatpush1.xpose.msra.mxu0 0.0
  %721 = vmatprep.subr.mxu0 0.0
  %722 = vmatpush1.xpose.msra.mxu0 %v695
  %723 = vmatprep.subr.mxu0 0.0
  %724 = vmatpush1.xpose.msra.mxu0 %v692
  %725 = vmatprep.subr.mxu0 0.0
  %726 = vmatpush1.xpose.msra.mxu0 %v689
  %727 = vmatprep.subr.mxu0 0.0
  %728 = vmatpush1.xpose.msra.mxu0 %v686
  %729 = vmatprep.subr.mxu0 0.0
  %730 = vmatpush2.xpose.msra.mxu0 0.0
  %731 = vmatprep.subr.mxu0 0.0
  %732 = vmatpush2.xpose.msra.mxu0 0.0
  %733 = vmatprep.subr.mxu0 0.0
  %734 = vmatpush2.xpose.msra.mxu0 0.0
  %735 = vmatprep.subr.mxu0 0.0
  %736 = vmatpush2.xpose.msra.mxu0 0.0
  %737 = vmatprep.subr.mxu0 0.0
  %738 = vmatpush2.xpose.msra.mxu0 0.0
  %739 = vmatprep.subr.mxu0 0.0
  %740 = vmatpush2.xpose.msra.mxu0 0.0
  %741 = vmatprep.subr.mxu0 0.0
  %742 = vmatpush2.xpose.msra.mxu0 0.0
  %743 = vmatprep.subr.mxu0 0.0
  %744 = vmatpush2.xpose.msra.mxu0 0.0
  %745 = vmatprep.subr.mxu0 0.0
  %746 = vmatpush2.xpose.msra.mxu0 0.0
  %747 = vmatprep.subr.mxu0 0.0
  %748 = vmatpush2.xpose.msra.mxu0 0.0
  %749 = vmatprep.subr.mxu0 0.0
  %750 = vmatpush2.xpose.msra.mxu0 0.0
  %751 = vmatprep.subr.mxu0 0.0
  %752 = vmatpush2.xpose.msra.mxu0 0.0
  %753 = vmatprep.subr.mxu0 0.0
  %754 = vmatpush2.xpose.msra.mxu0 0.0
  %755 = vmatprep.subr.mxu0 0.0
  %756 = vmatpush2.xpose.msra.mxu0 0.0
  %757 = vmatprep.subr.mxu0 0.0
  %758 = vmatpush2.xpose.msra.mxu0 0.0
  %759 = vmatprep.subr.mxu0 0.0
  %760 = vmatpush2.xpose.msra.mxu0 0.0
  %761 = vmatprep.mubr.f32.mxu0 0.0
  %762 = vmatmul.mubr.f32.gmra.mxu0 %v674
  %v763 = vpop.f32.mrf.mxu0
  %v764 = vadd.f32 %v359, %v763
  %v765 = vpop.f32.mrf.mxu0
  %766 = vmatprep.mubr.f32.mxu0 0.0
  %767 = vmatmul.mubr.f32.gmra.mxu0 %v677
  %v768 = vpop.f32.mrf.mxu0
  %v769 = vadd.f32 %v360, %v768
  %v770 = vpop.f32.mrf.mxu0
  %771 = vmatprep.mubr.f32.mxu0 0.0
  %772 = vmatmul.mubr.f32.gmra.mxu0 %v680
  %v773 = vpop.f32.mrf.mxu0
  %v774 = vadd.f32 %v361, %v773
  %v775 = vpop.f32.mrf.mxu0
  %776 = vmatprep.mubr.f32.mxu0 0.0
  %777 = vmatmul.mubr.f32.gmra.mxu0 %v683
  %v778 = vpop.f32.mrf.mxu0
  %v779 = vadd.f32 %v362, %v778
  %v780 = vpop.f32.mrf.mxu0
  %781 = vdwg.mxu0
  %v782 = vsel %vm209, %v764, -inf
  %783 = vmax.xlane.f32.xlu0 %v782
  %v784 = vpop.xlane.xlu0 %783
  %v785 = vsel %vm209, %v769, -inf
  %786 = vmax.xlane.f32.xlu0 %v785
  %v787 = vpop.xlane.xlu0 %786
  %v788 = vsel %vm209, %v774, -inf
  %789 = vmax.xlane.f32.xlu0 %v788
  %v790 = vpop.xlane.xlu0 %789
  %v791 = vsel %vm209, %v779, -inf
  %792 = vmax.xlane.f32.xlu0 %v791
  %v793 = vpop.xlane.xlu0 %792
  %v794 = vsub.f32 %v764, %v784
  %v795 = vsub.f32 %v769, %v787
  %v796 = vsub.f32 %v774, %v790
  %v797 = vsub.f32 %v779, %v793
  %v798 = vmul.f32 %v794, 1.442695
  %v799 = vpow.pop %v798
  %v800 = vmul.f32 %v795, 1.442695
  %v801 = vpow.pop %v800
  %v802 = vmul.f32 %v796, 1.442695
  %v803 = vpow.pop %v802
  %v804 = vmul.f32 %v797, 1.442695
  %v805 = vpow.pop %v804
  %v806 = vsel %vm209, %v799, 0.0
  %807 = vadd.xlane.f32.xlu0 %v806
  %v808 = vpop.xlane.xlu0 %807
  %v809 = vsel %vm209, %v801, 0.0
  %810 = vadd.xlane.f32.xlu0 %v809
  %v811 = vpop.xlane.xlu0 %810
  %v812 = vsel %vm209, %v803, 0.0
  %813 = vadd.xlane.f32.xlu0 %v812
  %v814 = vpop.xlane.xlu0 %813
  %v815 = vsel %vm209, %v805, 0.0
  %816 = vadd.xlane.f32.xlu0 %v815
  %v817 = vpop.xlane.xlu0 %816
  %v818 = vrcp.pop %v808
  %v819 = vrcp.pop %v811
  %v820 = vrcp.pop %v814
  %v821 = vrcp.pop %v817
  %v822 = vmul.f32 %v799, %v818
  %v823 = vmul.f32 %v801, %v819
  %v824 = vmul.f32 %v803, %v820
  %v825 = vmul.f32 %v805, %v821
  %v827 = vsel %vm209, %v822, 0
  %v830 = vsel %vm209, %v823, 0
  %v833 = vsel %vm209, %v824, 0
  %v836 = vsel %vm209, %v825, 0
  %838 = vmatprep.subr.mxu0 0.0
  %839 = vmatpush1.msra.mxu0 0.0
  %840 = vmatprep.subr.mxu0 0.0
  %841 = vmatpush1.msra.mxu0 0.0
  %842 = vmatprep.subr.mxu0 0.0
  %843 = vmatpush1.msra.mxu0 0.0
  %844 = vmatprep.subr.mxu0 0.0
  %845 = vmatpush1.msra.mxu0 0.0
  %846 = vmatprep.subr.mxu0 0.0
  %847 = vmatpush1.msra.mxu0 0.0
  %848 = vmatprep.subr.mxu0 0.0
  %849 = vmatpush1.msra.mxu0 0.0
  %850 = vmatprep.subr.mxu0 0.0
  %851 = vmatpush1.msra.mxu0 0.0
  %852 = vmatprep.subr.mxu0 0.0
  %853 = vmatpush1.msra.mxu0 0.0
  %854 = vmatprep.subr.mxu0 0.0
  %855 = vmatpush1.msra.mxu0 0.0
  %856 = vmatprep.subr.mxu0 0.0
  %857 = vmatpush1.msra.mxu0 0.0
  %858 = vmatprep.subr.mxu0 0.0
  %859 = vmatpush1.msra.mxu0 0.0
  %860 = vmatprep.subr.mxu0 0.0
  %861 = vmatpush1.msra.mxu0 0.0
  %862 = vmatprep.subr.mxu0 0.0
  %863 = vmatpush1.msra.mxu0 %v669
  %864 = vmatprep.subr.mxu0 0.0
  %865 = vmatpush1.msra.mxu0 %v664
  %866 = vmatprep.subr.mxu0 0.0
  %867 = vmatpush1.msra.mxu0 %v659
  %868 = vmatprep.subr.mxu0 0.0
  %869 = vmatpush1.msra.mxu0 %v654
  %870 = vmatprep.subr.mxu0 0.0
  %871 = vmatpush2.msra.mxu0 0.0
  %872 = vmatprep.subr.mxu0 0.0
  %873 = vmatpush2.msra.mxu0 0.0
  %874 = vmatprep.subr.mxu0 0.0
  %875 = vmatpush2.msra.mxu0 0.0
  %876 = vmatprep.subr.mxu0 0.0
  %877 = vmatpush2.msra.mxu0 0.0
  %878 = vmatprep.subr.mxu0 0.0
  %879 = vmatpush2.msra.mxu0 0.0
  %880 = vmatprep.subr.mxu0 0.0
  %881 = vmatpush2.msra.mxu0 0.0
  %882 = vmatprep.subr.mxu0 0.0
  %883 = vmatpush2.msra.mxu0 0.0
  %884 = vmatprep.subr.mxu0 0.0
  %885 = vmatpush2.msra.mxu0 0.0
  %886 = vmatprep.subr.mxu0 0.0
  %887 = vmatpush2.msra.mxu0 0.0
  %888 = vmatprep.subr.mxu0 0.0
  %889 = vmatpush2.msra.mxu0 0.0
  %890 = vmatprep.subr.mxu0 0.0
  %891 = vmatpush2.msra.mxu0 0.0
  %892 = vmatprep.subr.mxu0 0.0
  %893 = vmatpush2.msra.mxu0 0.0
  %894 = vmatprep.subr.mxu0 0.0
  %895 = vmatpush2.msra.mxu0 0.0
  %896 = vmatprep.subr.mxu0 0.0
  %897 = vmatpush2.msra.mxu0 0.0
  %898 = vmatprep.subr.mxu0 0.0
  %899 = vmatpush2.msra.mxu0 0.0
  %900 = vmatprep.subr.mxu0 0.0
  %901 = vmatpush2.msra.mxu0 0.0
  %902 = vmatprep.mubr.f32.mxu0 0.0
  %903 = vmatmul.mubr.f32.gmra.mxu0 %v827
  %v904 = vpop.f32.mrf.mxu0
  %v905 = vadd.f32 0.0, %v904
  %v906 = vpop.f32.mrf.mxu0
  %907 = vmatprep.mubr.f32.mxu0 0.0
  %908 = vmatmul.mubr.f32.gmra.mxu0 %v830
  %v909 = vpop.f32.mrf.mxu0
  %v910 = vadd.f32 0.0, %v909
  %v911 = vpop.f32.mrf.mxu0
  %912 = vmatprep.mubr.f32.mxu0 0.0
  %913 = vmatmul.mubr.f32.gmra.mxu0 %v833
  %v914 = vpop.f32.mrf.mxu0
  %v915 = vadd.f32 0.0, %v914
  %v916 = vpop.f32.mrf.mxu0
  %917 = vmatprep.mubr.f32.mxu0 0.0
  %918 = vmatmul.mubr.f32.gmra.mxu0 %v836
  %v919 = vpop.f32.mrf.mxu0
  %v920 = vadd.f32 0.0, %v919
  %v921 = vpop.f32.mrf.mxu0
  %922 = vdwg.mxu0
  %v923 = vld [vmem:[%s7] sm:$0xff]
  %v924 = vld [vmem:[%s7 + $0x8] sm:$0xff]
  %v926 = vsel %vm672, %v905, 0
  %v929 = vsel %vm672, %v910, 0
  %v932 = vsel %vm672, %v915, 0
  %v935 = vsel %vm672, %v920, 0
  %937 = vmatprep.subr.mxu0 0.0
  %938 = vmatpush1.msra.mxu0 0.0
  %939 = vmatprep.subr.mxu0 0.0
  %940 = vmatpush1.msra.mxu0 0.0
  %941 = vmatprep.subr.mxu0 0.0
  %942 = vmatpush1.msra.mxu0 0.0
  %943 = vmatprep.subr.mxu0 0.0
  %944 = vmatpush1.msra.mxu0 0.0
  %945 = vmatprep.subr.mxu0 0.0
  %946 = vmatpush1.msra.mxu0 0.0
  %947 = vmatprep.subr.mxu0 0.0
  %948 = vmatpush1.msra.mxu0 0.0
  %949 = vmatprep.subr.mxu0 0.0
  %950 = vmatpush1.msra.mxu0 0.0
  %951 = vmatprep.subr.mxu0 0.0
  %952 = vmatpush1.msra.mxu0 0.0
  %953 = vmatprep.subr.mxu0 0.0
  %954 = vmatpush1.msra.mxu0 0.0
  %955 = vmatprep.subr.mxu0 0.0
  %956 = vmatpush1.msra.mxu0 0.0
  %957 = vmatprep.subr.mxu0 0.0
  %958 = vmatpush1.msra.mxu0 0.0
  %959 = vmatprep.subr.mxu0 0.0
  %960 = vmatpush1.msra.mxu0 0.0
  %961 = vmatprep.subr.mxu0 0.0
  %962 = vmatpush1.msra.mxu0 0.0
  %963 = vmatprep.subr.mxu0 0.0
  %964 = vmatpush1.msra.mxu0 0.0
  %965 = vmatprep.subr.mxu0 0.0
  %966 = vmatpush1.msra.mxu0 %v924
  %967 = vmatprep.subr.mxu0 0.0
  %968 = vmatpush1.msra.mxu0 %v923
  %969 = vmatprep.subr.mxu0 0.0
  %970 = vmatpush2.msra.mxu0 0.0
  %971 = vmatprep.subr.mxu0 0.0
  %972 = vmatpush2.msra.mxu0 0.0
  %973 = vmatprep.subr.mxu0 0.0
  %974 = vmatpush2.msra.mxu0 0.0
  %975 = vmatprep.subr.mxu0 0.0
  %976 = vmatpush2.msra.mxu0 0.0
  %977 = vmatprep.subr.mxu0 0.0
  %978 = vmatpush2.msra.mxu0 0.0
  %979 = vmatprep.subr.mxu0 0.0
  %980 = vmatpush2.msra.mxu0 0.0
  %981 = vmatprep.subr.mxu0 0.0
  %982 = vmatpush2.msra.mxu0 0.0
  %983 = vmatprep.subr.mxu0 0.0
  %984 = vmatpush2.msra.mxu0 0.0
  %985 = vmatprep.subr.mxu0 0.0
  %986 = vmatpush2.msra.mxu0 0.0
  %987 = vmatprep.subr.mxu0 0.0
  %988 = vmatpush2.msra.mxu0 0.0
  %989 = vmatprep.subr.mxu0 0.0
  %990 = vmatpush2.msra.mxu0 0.0
  %991 = vmatprep.subr.mxu0 0.0
  %992 = vmatpush2.msra.mxu0 0.0
  %993 = vmatprep.subr.mxu0 0.0
  %994 = vmatpush2.msra.mxu0 0.0
  %995 = vmatprep.subr.mxu0 0.0
  %996 = vmatpush2.msra.mxu0 0.0
  %997 = vmatprep.subr.mxu0 0.0
  %998 = vmatpush2.msra.mxu0 0.0
  %999 = vmatprep.subr.mxu0 0.0
  %1000 = vmatpush2.msra.mxu0 0.0
  %1001 = vmatprep.mubr.f32.mxu0 0.0
  %1002 = vmatmul.mubr.f32.gmra.mxu0 %v926
  %v1003 = vpop.f32.mrf.mxu0
  %v1004 = vadd.f32 0.0, %v1003
  %v1005 = vpop.f32.mrf.mxu0
  %1006 = vmatprep.mubr.f32.mxu0 0.0
  %1007 = vmatmul.mubr.f32.gmra.mxu0 %v929
  %v1008 = vpop.f32.mrf.mxu0
  %v1009 = vadd.f32 0.0, %v1008
  %v1010 = vpop.f32.mrf.mxu0
  %1011 = vmatprep.mubr.f32.mxu0 0.0
  %1012 = vmatmul.mubr.f32.gmra.mxu0 %v932
  %v1013 = vpop.f32.mrf.mxu0
  %v1014 = vadd.f32 0.0, %v1013
  %v1015 = vpop.f32.mrf.mxu0
  %1016 = vmatprep.mubr.f32.mxu0 0.0
  %1017 = vmatmul.mubr.f32.gmra.mxu0 %v935
  %v1018 = vpop.f32.mrf.mxu0
  %v1019 = vadd.f32 0.0, %v1018
  %v1020 = vpop.f32.mrf.mxu0
  %1021 = vdwg.mxu0
  %v1023 = vlaneseq
  %v1024 = vshrl.u32 %v1023, 7
  %v1025 = vsub.s32 0, %v1024
  %v1026 = vrot.slane %v363, %v1025
  %v1028 = vadd.f32 %v1026, %v1004
  %v1029 = vadd.f32 %v1026, %v1009
  %v1030 = vadd.f32 %v1026, %v1014
  %v1031 = vadd.f32 %v1026, %v1019
  %s1032 = scalar_lea.vmem %s5, 32
  %v1033 = vld [vmem:[%s1032] sm:$0xff]
  %v1034 = vld [vmem:[%s1032 + $0x8] sm:$0xff]
  %v1035 = vld [vmem:[%s1032 + $0x10] sm:$0xff]
  %v1036 = vld [vmem:[%s1032 + $0x18] sm:$0xff]
  %s1037 = scalar_lea.vmem %s6, 1
  %v1038 = vld [vmem:[%s1037] sm:$0x1]
  %v1040 = vlaneseq
  %v1041 = vshrl.u32 %v1040, 7
  %v1042 = vsub.s32 0, %v1041
  %v1043 = vrot.slane %v1038, %v1042
  %1045 = vmatprep.subr.mxu0 0.0
  %1046 = vmatpush1.msra.mxu0 0.0
  %1047 = vmatprep.subr.mxu0 0.0
  %1048 = vmatpush1.msra.mxu0 0.0
  %1049 = vmatprep.subr.mxu0 0.0
  %1050 = vmatpush1.msra.mxu0 0.0
  %1051 = vmatprep.subr.mxu0 0.0
  %1052 = vmatpush1.msra.mxu0 0.0
  %1053 = vmatprep.subr.mxu0 0.0
  %1054 = vmatpush1.msra.mxu0 0.0
  %1055 = vmatprep.subr.mxu0 0.0
  %1056 = vmatpush1.msra.mxu0 0.0
  %1057 = vmatprep.subr.mxu0 0.0
  %1058 = vmatpush1.msra.mxu0 0.0
  %1059 = vmatprep.subr.mxu0 0.0
  %1060 = vmatpush1.msra.mxu0 0.0
  %1061 = vmatprep.subr.mxu0 0.0
  %1062 = vmatpush1.msra.mxu0 0.0
  %1063 = vmatprep.subr.mxu0 0.0
  %1064 = vmatpush1.msra.mxu0 0.0
  %1065 = vmatprep.subr.mxu0 0.0
  %1066 = vmatpush1.msra.mxu0 0.0
  %1067 = vmatprep.subr.mxu0 0.0
  %1068 = vmatpush1.msra.mxu0 0.0
  %1069 = vmatprep.subr.mxu0 0.0
  %1070 = vmatpush1.msra.mxu0 %v1036
  %1071 = vmatprep.subr.mxu0 0.0
  %1072 = vmatpush1.msra.mxu0 %v1035
  %1073 = vmatprep.subr.mxu0 0.0
  %1074 = vmatpush1.msra.mxu0 %v1034
  %1075 = vmatprep.subr.mxu0 0.0
  %1076 = vmatpush1.msra.mxu0 %v1033
  %1077 = vmatprep.subr.mxu0 0.0
  %1078 = vmatpush2.msra.mxu0 0.0
  %1079 = vmatprep.subr.mxu0 0.0
  %1080 = vmatpush2.msra.mxu0 0.0
  %1081 = vmatprep.subr.mxu0 0.0
  %1082 = vmatpush2.msra.mxu0 0.0
  %1083 = vmatprep.subr.mxu0 0.0
  %1084 = vmatpush2.msra.mxu0 0.0
  %1085 = vmatprep.subr.mxu0 0.0
  %1086 = vmatpush2.msra.mxu0 0.0
  %1087 = vmatprep.subr.mxu0 0.0
  %1088 = vmatpush2.msra.mxu0 0.0
  %1089 = vmatprep.subr.mxu0 0.0
  %1090 = vmatpush2.msra.mxu0 0.0
  %1091 = vmatprep.subr.mxu0 0.0
  %1092 = vmatpush2.msra.mxu0 0.0
  %1093 = vmatprep.subr.mxu0 0.0
  %1094 = vmatpush2.msra.mxu0 0.0
  %1095 = vmatprep.subr.mxu0 0.0
  %1096 = vmatpush2.msra.mxu0 0.0
  %1097 = vmatprep.subr.mxu0 0.0
  %1098 = vmatpush2.msra.mxu0 0.0
  %1099 = vmatprep.subr.mxu0 0.0
  %1100 = vmatpush2.msra.mxu0 0.0
  %1101 = vmatprep.subr.mxu0 0.0
  %1102 = vmatpush2.msra.mxu0 0.0
  %1103 = vmatprep.subr.mxu0 0.0
  %1104 = vmatpush2.msra.mxu0 0.0
  %1105 = vmatprep.subr.mxu0 0.0
  %1106 = vmatpush2.msra.mxu0 0.0
  %1107 = vmatprep.subr.mxu0 0.0
  %1108 = vmatpush2.msra.mxu0 0.0
  %1109 = vmatprep.mubr.f32.mxu0 0.0
  %1110 = vmatmul.mubr.f32.gmra.mxu0 %v376
  %v1111 = vpop.f32.mrf.mxu0
  %v1112 = vadd.f32 %v1043, %v1111
  %v1113 = vpop.f32.mrf.mxu0
  %1114 = vmatprep.mubr.f32.mxu0 0.0
  %1115 = vmatmul.mubr.f32.gmra.mxu0 %v379
  %v1116 = vpop.f32.mrf.mxu0
  %v1117 = vadd.f32 %v1043, %v1116
  %v1118 = vpop.f32.mrf.mxu0
  %1119 = vmatprep.mubr.f32.mxu0 0.0
  %1120 = vmatmul.mubr.f32.gmra.mxu0 %v382
  %v1121 = vpop.f32.mrf.mxu0
  %v1122 = vadd.f32 %v1043, %v1121
  %v1123 = vpop.f32.mrf.mxu0
  %1124 = vmatprep.mubr.f32.mxu0 0.0
  %1125 = vmatmul.mubr.f32.gmra.mxu0 %v385
  %v1126 = vpop.f32.mrf.mxu0
  %v1127 = vadd.f32 %v1043, %v1126
  %v1128 = vpop.f32.mrf.mxu0
  %1129 = vdwg.mxu0
  %v1130 = vmul.f32 %v1112, 0.25
  %v1131 = vmul.f32 %v1117, 0.25
  %v1132 = vmul.f32 %v1122, 0.25
  %v1133 = vmul.f32 %v1127, 0.25
  %s1134 = scalar_lea.vmem %s5, 96
  %v1135 = vld [vmem:[%s1134] sm:$0xff]
  %v1136 = vld [vmem:[%s1134 + $0x8] sm:$0xff]
  %v1137 = vld [vmem:[%s1134 + $0x10] sm:$0xff]
  %v1138 = vld [vmem:[%s1134 + $0x18] sm:$0xff]
  %s1139 = scalar_lea.vmem %s6, 3
  %v1140 = vld [vmem:[%s1139] sm:$0x1]
  %v1142 = vlaneseq
  %v1143 = vshrl.u32 %v1142, 7
  %v1144 = vsub.s32 0, %v1143
  %v1145 = vrot.slane %v1140, %v1144
  %1147 = vmatprep.subr.mxu0 0.0
  %1148 = vmatpush1.msra.mxu0 0.0
  %1149 = vmatprep.subr.mxu0 0.0
  %1150 = vmatpush1.msra.mxu0 0.0
  %1151 = vmatprep.subr.mxu0 0.0
  %1152 = vmatpush1.msra.mxu0 0.0
  %1153 = vmatprep.subr.mxu0 0.0
  %1154 = vmatpush1.msra.mxu0 0.0
  %1155 = vmatprep.subr.mxu0 0.0
  %1156 = vmatpush1.msra.mxu0 0.0
  %1157 = vmatprep.subr.mxu0 0.0
  %1158 = vmatpush1.msra.mxu0 0.0
  %1159 = vmatprep.subr.mxu0 0.0
  %1160 = vmatpush1.msra.mxu0 0.0
  %1161 = vmatprep.subr.mxu0 0.0
  %1162 = vmatpush1.msra.mxu0 0.0
  %1163 = vmatprep.subr.mxu0 0.0
  %1164 = vmatpush1.msra.mxu0 0.0
  %1165 = vmatprep.subr.mxu0 0.0
  %1166 = vmatpush1.msra.mxu0 0.0
  %1167 = vmatprep.subr.mxu0 0.0
  %1168 = vmatpush1.msra.mxu0 0.0
  %1169 = vmatprep.subr.mxu0 0.0
  %1170 = vmatpush1.msra.mxu0 0.0
  %1171 = vmatprep.subr.mxu0 0.0
  %1172 = vmatpush1.msra.mxu0 %v1138
  %1173 = vmatprep.subr.mxu0 0.0
  %1174 = vmatpush1.msra.mxu0 %v1137
  %1175 = vmatprep.subr.mxu0 0.0
  %1176 = vmatpush1.msra.mxu0 %v1136
  %1177 = vmatprep.subr.mxu0 0.0
  %1178 = vmatpush1.msra.mxu0 %v1135
  %1179 = vmatprep.subr.mxu0 0.0
  %1180 = vmatpush2.msra.mxu0 0.0
  %1181 = vmatprep.subr.mxu0 0.0
  %1182 = vmatpush2.msra.mxu0 0.0
  %1183 = vmatprep.subr.mxu0 0.0
  %1184 = vmatpush2.msra.mxu0 0.0
  %1185 = vmatprep.subr.mxu0 0.0
  %1186 = vmatpush2.msra.mxu0 0.0
  %1187 = vmatprep.subr.mxu0 0.0
  %1188 = vmatpush2.msra.mxu0 0.0
  %1189 = vmatprep.subr.mxu0 0.0
  %1190 = vmatpush2.msra.mxu0 0.0
  %1191 = vmatprep.subr.mxu0 0.0
  %1192 = vmatpush2.msra.mxu0 0.0
  %1193 = vmatprep.subr.mxu0 0.0
  %1194 = vmatpush2.msra.mxu0 0.0
  %1195 = vmatprep.subr.mxu0 0.0
  %1196 = vmatpush2.msra.mxu0 0.0
  %1197 = vmatprep.subr.mxu0 0.0
  %1198 = vmatpush2.msra.mxu0 0.0
  %1199 = vmatprep.subr.mxu0 0.0
  %1200 = vmatpush2.msra.mxu0 0.0
  %1201 = vmatprep.subr.mxu0 0.0
  %1202 = vmatpush2.msra.mxu0 0.0
  %1203 = vmatprep.subr.mxu0 0.0
  %1204 = vmatpush2.msra.mxu0 0.0
  %1205 = vmatprep.subr.mxu0 0.0
  %1206 = vmatpush2.msra.mxu0 0.0
  %1207 = vmatprep.subr.mxu0 0.0
  %1208 = vmatpush2.msra.mxu0 0.0
  %1209 = vmatprep.subr.mxu0 0.0
  %1210 = vmatpush2.msra.mxu0 0.0
  %1211 = vmatprep.mubr.f32.mxu0 0.0
  %1212 = vmatmul.mubr.f32.gmra.mxu0 %v376
  %v1213 = vpop.f32.mrf.mxu0
  %v1214 = vadd.f32 %v1145, %v1213
  %v1215 = vpop.f32.mrf.mxu0
  %1216 = vmatprep.mubr.f32.mxu0 0.0
  %1217 = vmatmul.mubr.f32.gmra.mxu0 %v379
  %v1218 = vpop.f32.mrf.mxu0
  %v1219 = vadd.f32 %v1145, %v1218
  %v1220 = vpop.f32.mrf.mxu0
  %1221 = vmatprep.mubr.f32.mxu0 0.0
  %1222 = vmatmul.mubr.f32.gmra.mxu0 %v382
  %v1223 = vpop.f32.mrf.mxu0
  %v1224 = vadd.f32 %v1145, %v1223
  %v1225 = vpop.f32.mrf.mxu0
  %1226 = vmatprep.mubr.f32.mxu0 0.0
  %1227 = vmatmul.mubr.f32.gmra.mxu0 %v385
  %v1228 = vpop.f32.mrf.mxu0
  %v1229 = vadd.f32 %v1145, %v1228
  %v1230 = vpop.f32.mrf.mxu0
  %1231 = vdwg.mxu0
  %s1232 = scalar_lea.vmem %s5, 160
  %v1233 = vld [vmem:[%s1232] sm:$0xff]
  %v1234 = vld [vmem:[%s1232 + $0x8] sm:$0xff]
  %v1235 = vld [vmem:[%s1232 + $0x10] sm:$0xff]
  %v1236 = vld [vmem:[%s1232 + $0x18] sm:$0xff]
  %s1237 = scalar_lea.vmem %s6, 5
  %v1238 = vld [vmem:[%s1237] sm:$0x1]
  %v1240 = vlaneseq
  %v1241 = vshrl.u32 %v1240, 7
  %v1242 = vsub.s32 0, %v1241
  %v1243 = vrot.slane %v1238, %v1242
  %1245 = vmatprep.subr.mxu0 0.0
  %1246 = vmatpush1.msra.mxu0 0.0
  %1247 = vmatprep.subr.mxu0 0.0
  %1248 = vmatpush1.msra.mxu0 0.0
  %1249 = vmatprep.subr.mxu0 0.0
  %1250 = vmatpush1.msra.mxu0 0.0
  %1251 = vmatprep.subr.mxu0 0.0
  %1252 = vmatpush1.msra.mxu0 0.0
  %1253 = vmatprep.subr.mxu0 0.0
  %1254 = vmatpush1.msra.mxu0 0.0
  %1255 = vmatprep.subr.mxu0 0.0
  %1256 = vmatpush1.msra.mxu0 0.0
  %1257 = vmatprep.subr.mxu0 0.0
  %1258 = vmatpush1.msra.mxu0 0.0
  %1259 = vmatprep.subr.mxu0 0.0
  %1260 = vmatpush1.msra.mxu0 0.0
  %1261 = vmatprep.subr.mxu0 0.0
  %1262 = vmatpush1.msra.mxu0 0.0
  %1263 = vmatprep.subr.mxu0 0.0
  %1264 = vmatpush1.msra.mxu0 0.0
  %1265 = vmatprep.subr.mxu0 0.0
  %1266 = vmatpush1.msra.mxu0 0.0
  %1267 = vmatprep.subr.mxu0 0.0
  %1268 = vmatpush1.msra.mxu0 0.0
  %1269 = vmatprep.subr.mxu0 0.0
  %1270 = vmatpush1.msra.mxu0 %v1236
  %1271 = vmatprep.subr.mxu0 0.0
  %1272 = vmatpush1.msra.mxu0 %v1235
  %1273 = vmatprep.subr.mxu0 0.0
  %1274 = vmatpush1.msra.mxu0 %v1234
  %1275 = vmatprep.subr.mxu0 0.0
  %1276 = vmatpush1.msra.mxu0 %v1233
  %1277 = vmatprep.subr.mxu0 0.0
  %1278 = vmatpush2.msra.mxu0 0.0
  %1279 = vmatprep.subr.mxu0 0.0
  %1280 = vmatpush2.msra.mxu0 0.0
  %1281 = vmatprep.subr.mxu0 0.0
  %1282 = vmatpush2.msra.mxu0 0.0
  %1283 = vmatprep.subr.mxu0 0.0
  %1284 = vmatpush2.msra.mxu0 0.0
  %1285 = vmatprep.subr.mxu0 0.0
  %1286 = vmatpush2.msra.mxu0 0.0
  %1287 = vmatprep.subr.mxu0 0.0
  %1288 = vmatpush2.msra.mxu0 0.0
  %1289 = vmatprep.subr.mxu0 0.0
  %1290 = vmatpush2.msra.mxu0 0.0
  %1291 = vmatprep.subr.mxu0 0.0
  %1292 = vmatpush2.msra.mxu0 0.0
  %1293 = vmatprep.subr.mxu0 0.0
  %1294 = vmatpush2.msra.mxu0 0.0
  %1295 = vmatprep.subr.mxu0 0.0
  %1296 = vmatpush2.msra.mxu0 0.0
  %1297 = vmatprep.subr.mxu0 0.0
  %1298 = vmatpush2.msra.mxu0 0.0
  %1299 = vmatprep.subr.mxu0 0.0
  %1300 = vmatpush2.msra.mxu0 0.0
  %1301 = vmatprep.subr.mxu0 0.0
  %1302 = vmatpush2.msra.mxu0 0.0
  %1303 = vmatprep.subr.mxu0 0.0
  %1304 = vmatpush2.msra.mxu0 0.0
  %1305 = vmatprep.subr.mxu0 0.0
  %1306 = vmatpush2.msra.mxu0 0.0
  %1307 = vmatprep.subr.mxu0 0.0
  %1308 = vmatpush2.msra.mxu0 0.0
  %1309 = vmatprep.mubr.f32.mxu0 0.0
  %1310 = vmatmul.mubr.f32.gmra.mxu0 %v376
  %v1311 = vpop.f32.mrf.mxu0
  %v1312 = vadd.f32 %v1243, %v1311
  %v1313 = vpop.f32.mrf.mxu0
  %1314 = vmatprep.mubr.f32.mxu0 0.0
  %1315 = vmatmul.mubr.f32.gmra.mxu0 %v379
  %v1316 = vpop.f32.mrf.mxu0
  %v1317 = vadd.f32 %v1243, %v1316
  %v1318 = vpop.f32.mrf.mxu0
  %1319 = vmatprep.mubr.f32.mxu0 0.0
  %1320 = vmatmul.mubr.f32.gmra.mxu0 %v382
  %v1321 = vpop.f32.mrf.mxu0
  %v1322 = vadd.f32 %v1243, %v1321
  %v1323 = vpop.f32.mrf.mxu0
  %1324 = vmatprep.mubr.f32.mxu0 0.0
  %1325 = vmatmul.mubr.f32.gmra.mxu0 %v385
  %v1326 = vpop.f32.mrf.mxu0
  %v1327 = vadd.f32 %v1243, %v1326
  %v1328 = vpop.f32.mrf.mxu0
  %1329 = vdwg.mxu0
  %v1331 = vsel %vm672, %v1130, 0
  %v1334 = vsel %vm672, %v1131, 0
  %v1337 = vsel %vm672, %v1132, 0
  %v1340 = vsel %vm672, %v1133, 0
  %v1343 = vsel %vm672, %v1214, 0
  %v1346 = vsel %vm672, %v1219, 0
  %v1349 = vsel %vm672, %v1224, 0
  %v1352 = vsel %vm672, %v1229, 0
  %1354 = vmatprep.subr.mxu0 0.0
  %1355 = vmatpush1.xpose.msra.mxu0 0.0
  %1356 = vmatprep.subr.mxu0 0.0
  %1357 = vmatpush1.xpose.msra.mxu0 0.0
  %1358 = vmatprep.subr.mxu0 0.0
  %1359 = vmatpush1.xpose.msra.mxu0 0.0
  %1360 = vmatprep.subr.mxu0 0.0
  %1361 = vmatpush1.xpose.msra.mxu0 0.0
  %1362 = vmatprep.subr.mxu0 0.0
  %1363 = vmatpush1.xpose.msra.mxu0 0.0
  %1364 = vmatprep.subr.mxu0 0.0
  %1365 = vmatpush1.xpose.msra.mxu0 0.0
  %1366 = vmatprep.subr.mxu0 0.0
  %1367 = vmatpush1.xpose.msra.mxu0 0.0
  %1368 = vmatprep.subr.mxu0 0.0
  %1369 = vmatpush1.xpose.msra.mxu0 0.0
  %1370 = vmatprep.subr.mxu0 0.0
  %1371 = vmatpush1.xpose.msra.mxu0 0.0
  %1372 = vmatprep.subr.mxu0 0.0
  %1373 = vmatpush1.xpose.msra.mxu0 0.0
  %1374 = vmatprep.subr.mxu0 0.0
  %1375 = vmatpush1.xpose.msra.mxu0 0.0
  %1376 = vmatprep.subr.mxu0 0.0
  %1377 = vmatpush1.xpose.msra.mxu0 0.0
  %1378 = vmatprep.subr.mxu0 0.0
  %1379 = vmatpush1.xpose.msra.mxu0 %v1352
  %1380 = vmatprep.subr.mxu0 0.0
  %1381 = vmatpush1.xpose.msra.mxu0 %v1349
  %1382 = vmatprep.subr.mxu0 0.0
  %1383 = vmatpush1.xpose.msra.mxu0 %v1346
  %1384 = vmatprep.subr.mxu0 0.0
  %1385 = vmatpush1.xpose.msra.mxu0 %v1343
  %1386 = vmatprep.subr.mxu0 0.0
  %1387 = vmatpush2.xpose.msra.mxu0 0.0
  %1388 = vmatprep.subr.mxu0 0.0
  %1389 = vmatpush2.xpose.msra.mxu0 0.0
  %1390 = vmatprep.subr.mxu0 0.0
  %1391 = vmatpush2.xpose.msra.mxu0 0.0
  %1392 = vmatprep.subr.mxu0 0.0
  %1393 = vmatpush2.xpose.msra.mxu0 0.0
  %1394 = vmatprep.subr.mxu0 0.0
  %1395 = vmatpush2.xpose.msra.mxu0 0.0
  %1396 = vmatprep.subr.mxu0 0.0
  %1397 = vmatpush2.xpose.msra.mxu0 0.0
  %1398 = vmatprep.subr.mxu0 0.0
  %1399 = vmatpush2.xpose.msra.mxu0 0.0
  %1400 = vmatprep.subr.mxu0 0.0
  %1401 = vmatpush2.xpose.msra.mxu0 0.0
  %1402 = vmatprep.subr.mxu0 0.0
  %1403 = vmatpush2.xpose.msra.mxu0 0.0
  %1404 = vmatprep.subr.mxu0 0.0
  %1405 = vmatpush2.xpose.msra.mxu0 0.0
  %1406 = vmatprep.subr.mxu0 0.0
  %1407 = vmatpush2.xpose.msra.mxu0 0.0
  %1408 = vmatprep.subr.mxu0 0.0
  %1409 = vmatpush2.xpose.msra.mxu0 0.0
  %1410 = vmatprep.subr.mxu0 0.0
  %1411 = vmatpush2.xpose.msra.mxu0 0.0
  %1412 = vmatprep.subr.mxu0 0.0
  %1413 = vmatpush2.xpose.msra.mxu0 0.0
  %1414 = vmatprep.subr.mxu0 0.0
  %1415 = vmatpush2.xpose.msra.mxu0 0.0
  %1416 = vmatprep.subr.mxu0 0.0
  %1417 = vmatpush2.xpose.msra.mxu0 0.0
  %1418 = vmatprep.mubr.f32.mxu0 0.0
  %1419 = vmatmul.mubr.f32.gmra.mxu0 %v1331
  %v1420 = vpop.f32.mrf.mxu0
  %v1421 = vadd.f32 %v359, %v1420
  %v1422 = vpop.f32.mrf.mxu0
  %1423 = vmatprep.mubr.f32.mxu0 0.0
  %1424 = vmatmul.mubr.f32.gmra.mxu0 %v1334
  %v1425 = vpop.f32.mrf.mxu0
  %v1426 = vadd.f32 %v360, %v1425
  %v1427 = vpop.f32.mrf.mxu0
  %1428 = vmatprep.mubr.f32.mxu0 0.0
  %1429 = vmatmul.mubr.f32.gmra.mxu0 %v1337
  %v1430 = vpop.f32.mrf.mxu0
  %v1431 = vadd.f32 %v361, %v1430
  %v1432 = vpop.f32.mrf.mxu0
  %1433 = vmatprep.mubr.f32.mxu0 0.0
  %1434 = vmatmul.mubr.f32.gmra.mxu0 %v1340
  %v1435 = vpop.f32.mrf.mxu0
  %v1436 = vadd.f32 %v362, %v1435
  %v1437 = vpop.f32.mrf.mxu0
  %1438 = vdwg.mxu0
  %v1439 = vsel %vm209, %v1421, -inf
  %1440 = vmax.xlane.f32.xlu0 %v1439
  %v1441 = vpop.xlane.xlu0 %1440
  %v1442 = vsel %vm209, %v1426, -inf
  %1443 = vmax.xlane.f32.xlu0 %v1442
  %v1444 = vpop.xlane.xlu0 %1443
  %v1445 = vsel %vm209, %v1431, -inf
  %1446 = vmax.xlane.f32.xlu0 %v1445
  %v1447 = vpop.xlane.xlu0 %1446
  %v1448 = vsel %vm209, %v1436, -inf
  %1449 = vmax.xlane.f32.xlu0 %v1448
  %v1450 = vpop.xlane.xlu0 %1449
  %v1451 = vsub.f32 %v1421, %v1441
  %v1452 = vsub.f32 %v1426, %v1444
  %v1453 = vsub.f32 %v1431, %v1447
  %v1454 = vsub.f32 %v1436, %v1450
  %v1455 = vmul.f32 %v1451, 1.442695
  %v1456 = vpow.pop %v1455
  %v1457 = vmul.f32 %v1452, 1.442695
  %v1458 = vpow.pop %v1457
  %v1459 = vmul.f32 %v1453, 1.442695
  %v1460 = vpow.pop %v1459
  %v1461 = vmul.f32 %v1454, 1.442695
  %v1462 = vpow.pop %v1461
  %v1463 = vsel %vm209, %v1456, 0.0
  %1464 = vadd.xlane.f32.xlu0 %v1463
  %v1465 = vpop.xlane.xlu0 %1464
  %v1466 = vsel %vm209, %v1458, 0.0
  %1467 = vadd.xlane.f32.xlu0 %v1466
  %v1468 = vpop.xlane.xlu0 %1467
  %v1469 = vsel %vm209, %v1460, 0.0
  %1470 = vadd.xlane.f32.xlu0 %v1469
  %v1471 = vpop.xlane.xlu0 %1470
  %v1472 = vsel %vm209, %v1462, 0.0
  %1473 = vadd.xlane.f32.xlu0 %v1472
  %v1474 = vpop.xlane.xlu0 %1473
  %v1475 = vrcp.pop %v1465
  %v1476 = vrcp.pop %v1468
  %v1477 = vrcp.pop %v1471
  %v1478 = vrcp.pop %v1474
  %v1479 = vmul.f32 %v1456, %v1475
  %v1480 = vmul.f32 %v1458, %v1476
  %v1481 = vmul.f32 %v1460, %v1477
  %v1482 = vmul.f32 %v1462, %v1478
  %v1484 = vsel %vm209, %v1479, 0
  %v1487 = vsel %vm209, %v1480, 0
  %v1490 = vsel %vm209, %v1481, 0
  %v1493 = vsel %vm209, %v1482, 0
  %1495 = vmatprep.subr.mxu0 0.0
  %1496 = vmatpush1.msra.mxu0 0.0
  %1497 = vmatprep.subr.mxu0 0.0
  %1498 = vmatpush1.msra.mxu0 0.0
  %1499 = vmatprep.subr.mxu0 0.0
  %1500 = vmatpush1.msra.mxu0 0.0
  %1501 = vmatprep.subr.mxu0 0.0
  %1502 = vmatpush1.msra.mxu0 0.0
  %1503 = vmatprep.subr.mxu0 0.0
  %1504 = vmatpush1.msra.mxu0 0.0
  %1505 = vmatprep.subr.mxu0 0.0
  %1506 = vmatpush1.msra.mxu0 0.0
  %1507 = vmatprep.subr.mxu0 0.0
  %1508 = vmatpush1.msra.mxu0 0.0
  %1509 = vmatprep.subr.mxu0 0.0
  %1510 = vmatpush1.msra.mxu0 0.0
  %1511 = vmatprep.subr.mxu0 0.0
  %1512 = vmatpush1.msra.mxu0 0.0
  %1513 = vmatprep.subr.mxu0 0.0
  %1514 = vmatpush1.msra.mxu0 0.0
  %1515 = vmatprep.subr.mxu0 0.0
  %1516 = vmatpush1.msra.mxu0 0.0
  %1517 = vmatprep.subr.mxu0 0.0
  %1518 = vmatpush1.msra.mxu0 0.0
  %1519 = vmatprep.subr.mxu0 0.0
  %1520 = vmatpush1.msra.mxu0 %v1327
  %1521 = vmatprep.subr.mxu0 0.0
  %1522 = vmatpush1.msra.mxu0 %v1322
  %1523 = vmatprep.subr.mxu0 0.0
  %1524 = vmatpush1.msra.mxu0 %v1317
  %1525 = vmatprep.subr.mxu0 0.0
  %1526 = vmatpush1.msra.mxu0 %v1312
  %1527 = vmatprep.subr.mxu0 0.0
  %1528 = vmatpush2.msra.mxu0 0.0
  %1529 = vmatprep.subr.mxu0 0.0
  %1530 = vmatpush2.msra.mxu0 0.0
  %1531 = vmatprep.subr.mxu0 0.0
  %1532 = vmatpush2.msra.mxu0 0.0
  %1533 = vmatprep.subr.mxu0 0.0
  %1534 = vmatpush2.msra.mxu0 0.0
  %1535 = vmatprep.subr.mxu0 0.0
  %1536 = vmatpush2.msra.mxu0 0.0
  %1537 = vmatprep.subr.mxu0 0.0
  %1538 = vmatpush2.msra.mxu0 0.0
  %1539 = vmatprep.subr.mxu0 0.0
  %1540 = vmatpush2.msra.mxu0 0.0
  %1541 = vmatprep.subr.mxu0 0.0
  %1542 = vmatpush2.msra.mxu0 0.0
  %1543 = vmatprep.subr.mxu0 0.0
  %1544 = vmatpush2.msra.mxu0 0.0
  %1545 = vmatprep.subr.mxu0 0.0
  %1546 = vmatpush2.msra.mxu0 0.0
  %1547 = vmatprep.subr.mxu0 0.0
  %1548 = vmatpush2.msra.mxu0 0.0
  %1549 = vmatprep.subr.mxu0 0.0
  %1550 = vmatpush2.msra.mxu0 0.0
  %1551 = vmatprep.subr.mxu0 0.0
  %1552 = vmatpush2.msra.mxu0 0.0
  %1553 = vmatprep.subr.mxu0 0.0
  %1554 = vmatpush2.msra.mxu0 0.0
  %1555 = vmatprep.subr.mxu0 0.0
  %1556 = vmatpush2.msra.mxu0 0.0
  %1557 = vmatprep.subr.mxu0 0.0
  %1558 = vmatpush2.msra.mxu0 0.0
  %1559 = vmatprep.mubr.f32.mxu0 0.0
  %1560 = vmatmul.mubr.f32.gmra.mxu0 %v1484
  %v1561 = vpop.f32.mrf.mxu0
  %v1562 = vadd.f32 0.0, %v1561
  %v1563 = vpop.f32.mrf.mxu0
  %1564 = vmatprep.mubr.f32.mxu0 0.0
  %1565 = vmatmul.mubr.f32.gmra.mxu0 %v1487
  %v1566 = vpop.f32.mrf.mxu0
  %v1567 = vadd.f32 0.0, %v1566
  %v1568 = vpop.f32.mrf.mxu0
  %1569 = vmatprep.mubr.f32.mxu0 0.0
  %1570 = vmatmul.mubr.f32.gmra.mxu0 %v1490
  %v1571 = vpop.f32.mrf.mxu0
  %v1572 = vadd.f32 0.0, %v1571
  %v1573 = vpop.f32.mrf.mxu0
  %1574 = vmatprep.mubr.f32.mxu0 0.0
  %1575 = vmatmul.mubr.f32.gmra.mxu0 %v1493
  %v1576 = vpop.f32.mrf.mxu0
  %v1577 = vadd.f32 0.0, %v1576
  %v1578 = vpop.f32.mrf.mxu0
  %1579 = vdwg.mxu0
  %s1580 = scalar_lea.vmem %s7, 16
  %v1581 = vld [vmem:[%s1580] sm:$0xff]
  %v1582 = vld [vmem:[%s1580 + $0x8] sm:$0xff]
  %v1584 = vsel %vm672, %v1562, 0
  %v1587 = vsel %vm672, %v1567, 0
  %v1590 = vsel %vm672, %v1572, 0
  %v1593 = vsel %vm672, %v1577, 0
  %1595 = vmatprep.subr.mxu0 0.0
  %1596 = vmatpush1.msra.mxu0 0.0
  %1597 = vmatprep.subr.mxu0 0.0
  %1598 = vmatpush1.msra.mxu0 0.0
  %1599 = vmatprep.subr.mxu0 0.0
  %1600 = vmatpush1.msra.mxu0 0.0
  %1601 = vmatprep.subr.mxu0 0.0
  %1602 = vmatpush1.msra.mxu0 0.0
  %1603 = vmatprep.subr.mxu0 0.0
  %1604 = vmatpush1.msra.mxu0 0.0
  %1605 = vmatprep.subr.mxu0 0.0
  %1606 = vmatpush1.msra.mxu0 0.0
  %1607 = vmatprep.subr.mxu0 0.0
  %1608 = vmatpush1.msra.mxu0 0.0
  %1609 = vmatprep.subr.mxu0 0.0
  %1610 = vmatpush1.msra.mxu0 0.0
  %1611 = vmatprep.subr.mxu0 0.0
  %1612 = vmatpush1.msra.mxu0 0.0
  %1613 = vmatprep.subr.mxu0 0.0
  %1614 = vmatpush1.msra.mxu0 0.0
  %1615 = vmatprep.subr.mxu0 0.0
  %1616 = vmatpush1.msra.mxu0 0.0
  %1617 = vmatprep.subr.mxu0 0.0
  %1618 = vmatpush1.msra.mxu0 0.0
  %1619 = vmatprep.subr.mxu0 0.0
  %1620 = vmatpush1.msra.mxu0 0.0
  %1621 = vmatprep.subr.mxu0 0.0
  %1622 = vmatpush1.msra.mxu0 0.0
  %1623 = vmatprep.subr.mxu0 0.0
  %1624 = vmatpush1.msra.mxu0 %v1582
  %1625 = vmatprep.subr.mxu0 0.0
  %1626 = vmatpush1.msra.mxu0 %v1581
  %1627 = vmatprep.subr.mxu0 0.0
  %1628 = vmatpush2.msra.mxu0 0.0
  %1629 = vmatprep.subr.mxu0 0.0
  %1630 = vmatpush2.msra.mxu0 0.0
  %1631 = vmatprep.subr.mxu0 0.0
  %1632 = vmatpush2.msra.mxu0 0.0
  %1633 = vmatprep.subr.mxu0 0.0
  %1634 = vmatpush2.msra.mxu0 0.0
  %1635 = vmatprep.subr.mxu0 0.0
  %1636 = vmatpush2.msra.mxu0 0.0
  %1637 = vmatprep.subr.mxu0 0.0
  %1638 = vmatpush2.msra.mxu0 0.0
  %1639 = vmatprep.subr.mxu0 0.0
  %1640 = vmatpush2.msra.mxu0 0.0
  %1641 = vmatprep.subr.mxu0 0.0
  %1642 = vmatpush2.msra.mxu0 0.0
  %1643 = vmatprep.subr.mxu0 0.0
  %1644 = vmatpush2.msra.mxu0 0.0
  %1645 = vmatprep.subr.mxu0 0.0
  %1646 = vmatpush2.msra.mxu0 0.0
  %1647 = vmatprep.subr.mxu0 0.0
  %1648 = vmatpush2.msra.mxu0 0.0
  %1649 = vmatprep.subr.mxu0 0.0
  %1650 = vmatpush2.msra.mxu0 0.0
  %1651 = vmatprep.subr.mxu0 0.0
  %1652 = vmatpush2.msra.mxu0 0.0
  %1653 = vmatprep.subr.mxu0 0.0
  %1654 = vmatpush2.msra.mxu0 0.0
  %1655 = vmatprep.subr.mxu0 0.0
  %1656 = vmatpush2.msra.mxu0 0.0
  %1657 = vmatprep.subr.mxu0 0.0
  %1658 = vmatpush2.msra.mxu0 0.0
  %1659 = vmatprep.mubr.f32.mxu0 0.0
  %1660 = vmatmul.mubr.f32.gmra.mxu0 %v1584
  %v1661 = vpop.f32.mrf.mxu0
  %v1662 = vadd.f32 0.0, %v1661
  %v1663 = vpop.f32.mrf.mxu0
  %1664 = vmatprep.mubr.f32.mxu0 0.0
  %1665 = vmatmul.mubr.f32.gmra.mxu0 %v1587
  %v1666 = vpop.f32.mrf.mxu0
  %v1667 = vadd.f32 0.0, %v1666
  %v1668 = vpop.f32.mrf.mxu0
  %1669 = vmatprep.mubr.f32.mxu0 0.0
  %1670 = vmatmul.mubr.f32.gmra.mxu0 %v1590
  %v1671 = vpop.f32.mrf.mxu0
  %v1672 = vadd.f32 0.0, %v1671
  %v1673 = vpop.f32.mrf.mxu0
  %1674 = vmatprep.mubr.f32.mxu0 0.0
  %1675 = vmatmul.mubr.f32.gmra.mxu0 %v1593
  %v1676 = vpop.f32.mrf.mxu0
  %v1677 = vadd.f32 0.0, %v1676
  %v1678 = vpop.f32.mrf.mxu0
  %1679 = vdwg.mxu0
  %v1680 = vadd.f32 %v1028, %v1662
  %v1681 = vadd.f32 %v1029, %v1667
  %v1682 = vadd.f32 %v1030, %v1672
  %v1683 = vadd.f32 %v1031, %v1677
  %v1684 = vadd.f32 %v279, %v1680
  %v1685 = vadd.f32 %v280, %v1681
  %v1686 = vadd.f32 %v281, %v1682
  %v1687 = vadd.f32 %v282, %v1683
  %s1688 = scalar_lea.vmem %s3, 2
  %v1689 = vld [vmem:[%s1688] sm:$0x1]
  %s1690 = scalar_lea.vmem %s4, 2
  %v1691 = vld [vmem:[%s1690] sm:$0x1]
  %v1692 = vsel %vm209, %v1684, 0.0
  %1693 = vadd.xlane.f32.xlu0 %v1692
  %v1694 = vpop.xlane.xlu0 %1693
  %v1695 = vsel %vm209, %v1685, 0.0
  %1696 = vadd.xlane.f32.xlu0 %v1695
  %v1697 = vpop.xlane.xlu0 %1696
  %v1698 = vsel %vm209, %v1686, 0.0
  %1699 = vadd.xlane.f32.xlu0 %v1698
  %v1700 = vpop.xlane.xlu0 %1699
  %v1701 = vsel %vm209, %v1687, 0.0
  %1702 = vadd.xlane.f32.xlu0 %v1701
  %v1703 = vpop.xlane.xlu0 %1702
  %v1704 = vmul.f32 %v1694, %v222
  %v1705 = vmul.f32 %v1697, %v222
  %v1706 = vmul.f32 %v1700, %v222
  %v1707 = vmul.f32 %v1703, %v222
  %v1708 = vsub.f32 %v1684, %v1704
  %v1709 = vsub.f32 %v1685, %v1705
  %v1710 = vsub.f32 %v1686, %v1706
  %v1711 = vsub.f32 %v1687, %v1707
  %v1712 = vmul.f32 %v1708, %v1708
  %v1713 = vmul.f32 %v1709, %v1709
  %v1714 = vmul.f32 %v1710, %v1710
  %v1715 = vmul.f32 %v1711, %v1711
  %v1716 = vsel %vm209, %v1712, 0.0
  %1717 = vadd.xlane.f32.xlu0 %v1716
  %v1718 = vpop.xlane.xlu0 %1717
  %v1719 = vsel %vm209, %v1713, 0.0
  %1720 = vadd.xlane.f32.xlu0 %v1719
  %v1721 = vpop.xlane.xlu0 %1720
  %v1722 = vsel %vm209, %v1714, 0.0
  %1723 = vadd.xlane.f32.xlu0 %v1722
  %v1724 = vpop.xlane.xlu0 %1723
  %v1725 = vsel %vm209, %v1715, 0.0
  %1726 = vadd.xlane.f32.xlu0 %v1725
  %v1727 = vpop.xlane.xlu0 %1726
  %v1728 = vmul.f32 %v1718, %v222
  %v1729 = vmul.f32 %v1721, %v222
  %v1730 = vmul.f32 %v1724, %v222
  %v1731 = vmul.f32 %v1727, %v222
  %v1732 = vadd.f32 %v1728, 1e-06
  %v1733 = vadd.f32 %v1729, 1e-06
  %v1734 = vadd.f32 %v1730, 1e-06
  %v1735 = vadd.f32 %v1731, 1e-06
  %v1736 = vrsqrt.pop %v1732
  %v1737 = vrsqrt.pop %v1733
  %v1738 = vrsqrt.pop %v1734
  %v1739 = vrsqrt.pop %v1735
  %v1740 = vmul.f32 %v1708, %v1736
  %v1741 = vmul.f32 %v1709, %v1737
  %v1742 = vmul.f32 %v1710, %v1738
  %v1743 = vmul.f32 %v1711, %v1739
  %v1745 = vlaneseq
  %v1746 = vshrl.u32 %v1745, 7
  %v1747 = vsub.s32 0, %v1746
  %v1748 = vrot.slane %v1689, %v1747
  %v1750 = vmul.f32 %v1740, %v1748
  %v1751 = vmul.f32 %v1741, %v1748
  %v1752 = vmul.f32 %v1742, %v1748
  %v1753 = vmul.f32 %v1743, %v1748
  %v1755 = vlaneseq
  %v1756 = vshrl.u32 %v1755, 7
  %v1757 = vsub.s32 0, %v1756
  %v1758 = vrot.slane %v1691, %v1757
  %v1760 = vadd.f32 %v1750, %v1758
  %v1761 = vadd.f32 %v1751, %v1758
  %v1762 = vadd.f32 %v1752, %v1758
  %v1763 = vadd.f32 %v1753, %v1758
  %v1764 = vld [vmem:[%s10] sm:$0xff]
  %v1765 = vld [vmem:[%s10 + $0x8] sm:$0xff]
  %v1766 = vld [vmem:[%s10 + $0x10] sm:$0xff]
  %v1767 = vld [vmem:[%s10 + $0x18] sm:$0xff]
  %v1768 = vld [vmem:[%s11] sm:$0x1]
  %v1770 = vlaneseq
  %v1771 = vshrl.u32 %v1770, 7
  %v1772 = vsub.s32 0, %v1771
  %v1773 = vrot.slane %v1768, %v1772
  %v1776 = vsel %vm209, %v1760, 0
  %v1779 = vsel %vm209, %v1761, 0
  %v1782 = vsel %vm209, %v1762, 0
  %v1785 = vsel %vm209, %v1763, 0
  %1787 = vmatprep.subr.mxu0 0.0
  %1788 = vmatpush1.msra.mxu0 0.0
  %1789 = vmatprep.subr.mxu0 0.0
  %1790 = vmatpush1.msra.mxu0 0.0
  %1791 = vmatprep.subr.mxu0 0.0
  %1792 = vmatpush1.msra.mxu0 0.0
  %1793 = vmatprep.subr.mxu0 0.0
  %1794 = vmatpush1.msra.mxu0 0.0
  %1795 = vmatprep.subr.mxu0 0.0
  %1796 = vmatpush1.msra.mxu0 0.0
  %1797 = vmatprep.subr.mxu0 0.0
  %1798 = vmatpush1.msra.mxu0 0.0
  %1799 = vmatprep.subr.mxu0 0.0
  %1800 = vmatpush1.msra.mxu0 0.0
  %1801 = vmatprep.subr.mxu0 0.0
  %1802 = vmatpush1.msra.mxu0 0.0
  %1803 = vmatprep.subr.mxu0 0.0
  %1804 = vmatpush1.msra.mxu0 0.0
  %1805 = vmatprep.subr.mxu0 0.0
  %1806 = vmatpush1.msra.mxu0 0.0
  %1807 = vmatprep.subr.mxu0 0.0
  %1808 = vmatpush1.msra.mxu0 0.0
  %1809 = vmatprep.subr.mxu0 0.0
  %1810 = vmatpush1.msra.mxu0 0.0
  %1811 = vmatprep.subr.mxu0 0.0
  %1812 = vmatpush1.msra.mxu0 %v1767
  %1813 = vmatprep.subr.mxu0 0.0
  %1814 = vmatpush1.msra.mxu0 %v1766
  %1815 = vmatprep.subr.mxu0 0.0
  %1816 = vmatpush1.msra.mxu0 %v1765
  %1817 = vmatprep.subr.mxu0 0.0
  %1818 = vmatpush1.msra.mxu0 %v1764
  %1819 = vmatprep.subr.mxu0 0.0
  %1820 = vmatpush2.msra.mxu0 0.0
  %1821 = vmatprep.subr.mxu0 0.0
  %1822 = vmatpush2.msra.mxu0 0.0
  %1823 = vmatprep.subr.mxu0 0.0
  %1824 = vmatpush2.msra.mxu0 0.0
  %1825 = vmatprep.subr.mxu0 0.0
  %1826 = vmatpush2.msra.mxu0 0.0
  %1827 = vmatprep.subr.mxu0 0.0
  %1828 = vmatpush2.msra.mxu0 0.0
  %1829 = vmatprep.subr.mxu0 0.0
  %1830 = vmatpush2.msra.mxu0 0.0
  %1831 = vmatprep.subr.mxu0 0.0
  %1832 = vmatpush2.msra.mxu0 0.0
  %1833 = vmatprep.subr.mxu0 0.0
  %1834 = vmatpush2.msra.mxu0 0.0
  %1835 = vmatprep.subr.mxu0 0.0
  %1836 = vmatpush2.msra.mxu0 0.0
  %1837 = vmatprep.subr.mxu0 0.0
  %1838 = vmatpush2.msra.mxu0 0.0
  %1839 = vmatprep.subr.mxu0 0.0
  %1840 = vmatpush2.msra.mxu0 0.0
  %1841 = vmatprep.subr.mxu0 0.0
  %1842 = vmatpush2.msra.mxu0 0.0
  %1843 = vmatprep.subr.mxu0 0.0
  %1844 = vmatpush2.msra.mxu0 0.0
  %1845 = vmatprep.subr.mxu0 0.0
  %1846 = vmatpush2.msra.mxu0 0.0
  %1847 = vmatprep.subr.mxu0 0.0
  %1848 = vmatpush2.msra.mxu0 0.0
  %1849 = vmatprep.subr.mxu0 0.0
  %1850 = vmatpush2.msra.mxu0 0.0
  %1851 = vmatprep.mubr.f32.mxu0 0.0
  %1852 = vmatmul.mubr.f32.gmra.mxu0 %v1776
  %v1853 = vpop.f32.mrf.mxu0
  %v1854 = vadd.f32 %v1773, %v1853
  %v1855 = vpop.f32.mrf.mxu0
  %1856 = vmatprep.mubr.f32.mxu0 0.0
  %1857 = vmatmul.mubr.f32.gmra.mxu0 %v1779
  %v1858 = vpop.f32.mrf.mxu0
  %v1859 = vadd.f32 %v1773, %v1858
  %v1860 = vpop.f32.mrf.mxu0
  %1861 = vmatprep.mubr.f32.mxu0 0.0
  %1862 = vmatmul.mubr.f32.gmra.mxu0 %v1782
  %v1863 = vpop.f32.mrf.mxu0
  %v1864 = vadd.f32 %v1773, %v1863
  %v1865 = vpop.f32.mrf.mxu0
  %1866 = vmatprep.mubr.f32.mxu0 0.0
  %1867 = vmatmul.mubr.f32.gmra.mxu0 %v1785
  %v1868 = vpop.f32.mrf.mxu0
  %v1869 = vadd.f32 %v1773, %v1868
  %v1870 = vpop.f32.mrf.mxu0
  %1871 = vdwg.mxu0
  %v1872 = vld [vmem:[%s14] sm:$0x1]
  %v1873 = vld [vmem:[%s12] sm:$0xff]
  %v1874 = vld [vmem:[%s12 + $0x8] sm:$0xff]
  %v1875 = vld [vmem:[%s12 + $0x10] sm:$0xff]
  %v1876 = vld [vmem:[%s12 + $0x18] sm:$0xff]
  %v1878 = vsel %vm209, %v1873, 0
  %v1881 = vsel %vm209, %v1874, 0
  %v1884 = vsel %vm209, %v1875, 0
  %v1887 = vsel %vm209, %v1876, 0
  %1889 = vmatprep.subr.mxu0 0.0
  %1890 = vmatpush1.msra.mxu0 0.0
  %1891 = vmatprep.subr.mxu0 0.0
  %1892 = vmatpush1.msra.mxu0 0.0
  %1893 = vmatprep.subr.mxu0 0.0
  %1894 = vmatpush1.msra.mxu0 0.0
  %1895 = vmatprep.subr.mxu0 0.0
  %1896 = vmatpush1.msra.mxu0 0.0
  %1897 = vmatprep.subr.mxu0 0.0
  %1898 = vmatpush1.msra.mxu0 0.0
  %1899 = vmatprep.subr.mxu0 0.0
  %1900 = vmatpush1.msra.mxu0 0.0
  %1901 = vmatprep.subr.mxu0 0.0
  %1902 = vmatpush1.msra.mxu0 0.0
  %1903 = vmatprep.subr.mxu0 0.0
  %1904 = vmatpush1.msra.mxu0 0.0
  %1905 = vmatprep.subr.mxu0 0.0
  %1906 = vmatpush1.msra.mxu0 0.0
  %1907 = vmatprep.subr.mxu0 0.0
  %1908 = vmatpush1.msra.mxu0 0.0
  %1909 = vmatprep.subr.mxu0 0.0
  %1910 = vmatpush1.msra.mxu0 0.0
  %1911 = vmatprep.subr.mxu0 0.0
  %1912 = vmatpush1.msra.mxu0 0.0
  %1913 = vmatprep.subr.mxu0 0.0
  %1914 = vmatpush1.msra.mxu0 %v1869
  %1915 = vmatprep.subr.mxu0 0.0
  %1916 = vmatpush1.msra.mxu0 %v1864
  %1917 = vmatprep.subr.mxu0 0.0
  %1918 = vmatpush1.msra.mxu0 %v1859
  %1919 = vmatprep.subr.mxu0 0.0
  %1920 = vmatpush1.msra.mxu0 %v1854
  %1921 = vmatprep.subr.mxu0 0.0
  %1922 = vmatpush2.msra.mxu0 0.0
  %1923 = vmatprep.subr.mxu0 0.0
  %1924 = vmatpush2.msra.mxu0 0.0
  %1925 = vmatprep.subr.mxu0 0.0
  %1926 = vmatpush2.msra.mxu0 0.0
  %1927 = vmatprep.subr.mxu0 0.0
  %1928 = vmatpush2.msra.mxu0 0.0
  %1929 = vmatprep.subr.mxu0 0.0
  %1930 = vmatpush2.msra.mxu0 0.0
  %1931 = vmatprep.subr.mxu0 0.0
  %1932 = vmatpush2.msra.mxu0 0.0
  %1933 = vmatprep.subr.mxu0 0.0
  %1934 = vmatpush2.msra.mxu0 0.0
  %1935 = vmatprep.subr.mxu0 0.0
  %1936 = vmatpush2.msra.mxu0 0.0
  %1937 = vmatprep.subr.mxu0 0.0
  %1938 = vmatpush2.msra.mxu0 0.0
  %1939 = vmatprep.subr.mxu0 0.0
  %1940 = vmatpush2.msra.mxu0 0.0
  %1941 = vmatprep.subr.mxu0 0.0
  %1942 = vmatpush2.msra.mxu0 0.0
  %1943 = vmatprep.subr.mxu0 0.0
  %1944 = vmatpush2.msra.mxu0 0.0
  %1945 = vmatprep.subr.mxu0 0.0
  %1946 = vmatpush2.msra.mxu0 0.0
  %1947 = vmatprep.subr.mxu0 0.0
  %1948 = vmatpush2.msra.mxu0 0.0
  %1949 = vmatprep.subr.mxu0 0.0
  %1950 = vmatpush2.msra.mxu0 0.0
  %1951 = vmatprep.subr.mxu0 0.0
  %1952 = vmatpush2.msra.mxu0 0.0
  %1953 = vmatprep.mubr.f32.mxu0 0.0
  %1954 = vmatmul.mubr.f32.gmra.mxu0 %v1878
  %v1955 = vpop.f32.mrf.mxu0
  %v1956 = vadd.f32 0.0, %v1955
  %v1957 = vpop.f32.mrf.mxu0
  %1958 = vmatprep.mubr.f32.mxu0 0.0
  %1959 = vmatmul.mubr.f32.gmra.mxu0 %v1881
  %v1960 = vpop.f32.mrf.mxu0
  %v1961 = vadd.f32 0.0, %v1960
  %v1962 = vpop.f32.mrf.mxu0
  %1963 = vmatprep.mubr.f32.mxu0 0.0
  %1964 = vmatmul.mubr.f32.gmra.mxu0 %v1884
  %v1965 = vpop.f32.mrf.mxu0
  %v1966 = vadd.f32 0.0, %v1965
  %v1967 = vpop.f32.mrf.mxu0
  %1968 = vmatprep.mubr.f32.mxu0 0.0
  %1969 = vmatmul.mubr.f32.gmra.mxu0 %v1887
  %v1970 = vpop.f32.mrf.mxu0
  %v1971 = vadd.f32 0.0, %v1970
  %v1972 = vpop.f32.mrf.mxu0
  %1973 = vdwg.mxu0
  %v1974 = vld [vmem:[%s13] sm:$0x1]
  %v1976 = vlaneseq
  %v1977 = vshrl.u32 %v1976, 7
  %v1978 = vsub.s32 0, %v1977
  %v1979 = vrot.slane %v1974, %v1978
  %v1981 = vmul.f32 %v1956, %v1979
  %v1982 = vmul.f32 %v1961, %v1979
  %v1983 = vmul.f32 %v1966, %v1979
  %v1984 = vmul.f32 %v1971, %v1979
  %v1986 = vlaneseq
  %v1987 = vshrl.u32 %v1986, 7
  %v1988 = vsub.s32 0, %v1987
  %v1989 = vrot.slane %v1872, %v1988
  %v1991 = vadd.f32 %v1989, %v1981
  %v1992 = vadd.f32 %v1989, %v1982
  %v1993 = vadd.f32 %v1989, %v1983
  %v1994 = vadd.f32 %v1989, %v1984
  %s1995 = scalar_lea.vmem %s12, 32
  %v1996 = vld [vmem:[%s1995] sm:$0xff]
  %v1997 = vld [vmem:[%s1995 + $0x8] sm:$0xff]
  %v1998 = vld [vmem:[%s1995 + $0x10] sm:$0xff]
  %v1999 = vld [vmem:[%s1995 + $0x18] sm:$0xff]
  %v2001 = vsel %vm209, %v1996, 0
  %v2004 = vsel %vm209, %v1997, 0
  %v2007 = vsel %vm209, %v1998, 0
  %v2010 = vsel %vm209, %v1999, 0
  %2012 = vmatprep.subr.mxu0 0.0
  %2013 = vmatpush1.msra.mxu0 0.0
  %2014 = vmatprep.subr.mxu0 0.0
  %2015 = vmatpush1.msra.mxu0 0.0
  %2016 = vmatprep.subr.mxu0 0.0
  %2017 = vmatpush1.msra.mxu0 0.0
  %2018 = vmatprep.subr.mxu0 0.0
  %2019 = vmatpush1.msra.mxu0 0.0
  %2020 = vmatprep.subr.mxu0 0.0
  %2021 = vmatpush1.msra.mxu0 0.0
  %2022 = vmatprep.subr.mxu0 0.0
  %2023 = vmatpush1.msra.mxu0 0.0
  %2024 = vmatprep.subr.mxu0 0.0
  %2025 = vmatpush1.msra.mxu0 0.0
  %2026 = vmatprep.subr.mxu0 0.0
  %2027 = vmatpush1.msra.mxu0 0.0
  %2028 = vmatprep.subr.mxu0 0.0
  %2029 = vmatpush1.msra.mxu0 0.0
  %2030 = vmatprep.subr.mxu0 0.0
  %2031 = vmatpush1.msra.mxu0 0.0
  %2032 = vmatprep.subr.mxu0 0.0
  %2033 = vmatpush1.msra.mxu0 0.0
  %2034 = vmatprep.subr.mxu0 0.0
  %2035 = vmatpush1.msra.mxu0 0.0
  %2036 = vmatprep.subr.mxu0 0.0
  %2037 = vmatpush1.msra.mxu0 %v1869
  %2038 = vmatprep.subr.mxu0 0.0
  %2039 = vmatpush1.msra.mxu0 %v1864
  %2040 = vmatprep.subr.mxu0 0.0
  %2041 = vmatpush1.msra.mxu0 %v1859
  %2042 = vmatprep.subr.mxu0 0.0
  %2043 = vmatpush1.msra.mxu0 %v1854
  %2044 = vmatprep.subr.mxu0 0.0
  %2045 = vmatpush2.msra.mxu0 0.0
  %2046 = vmatprep.subr.mxu0 0.0
  %2047 = vmatpush2.msra.mxu0 0.0
  %2048 = vmatprep.subr.mxu0 0.0
  %2049 = vmatpush2.msra.mxu0 0.0
  %2050 = vmatprep.subr.mxu0 0.0
  %2051 = vmatpush2.msra.mxu0 0.0
  %2052 = vmatprep.subr.mxu0 0.0
  %2053 = vmatpush2.msra.mxu0 0.0
  %2054 = vmatprep.subr.mxu0 0.0
  %2055 = vmatpush2.msra.mxu0 0.0
  %2056 = vmatprep.subr.mxu0 0.0
  %2057 = vmatpush2.msra.mxu0 0.0
  %2058 = vmatprep.subr.mxu0 0.0
  %2059 = vmatpush2.msra.mxu0 0.0
  %2060 = vmatprep.subr.mxu0 0.0
  %2061 = vmatpush2.msra.mxu0 0.0
  %2062 = vmatprep.subr.mxu0 0.0
  %2063 = vmatpush2.msra.mxu0 0.0
  %2064 = vmatprep.subr.mxu0 0.0
  %2065 = vmatpush2.msra.mxu0 0.0
  %2066 = vmatprep.subr.mxu0 0.0
  %2067 = vmatpush2.msra.mxu0 0.0
  %2068 = vmatprep.subr.mxu0 0.0
  %2069 = vmatpush2.msra.mxu0 0.0
  %2070 = vmatprep.subr.mxu0 0.0
  %2071 = vmatpush2.msra.mxu0 0.0
  %2072 = vmatprep.subr.mxu0 0.0
  %2073 = vmatpush2.msra.mxu0 0.0
  %2074 = vmatprep.subr.mxu0 0.0
  %2075 = vmatpush2.msra.mxu0 0.0
  %2076 = vmatprep.mubr.f32.mxu0 0.0
  %2077 = vmatmul.mubr.f32.gmra.mxu0 %v2001
  %v2078 = vpop.f32.mrf.mxu0
  %v2079 = vadd.f32 0.0, %v2078
  %v2080 = vpop.f32.mrf.mxu0
  %2081 = vmatprep.mubr.f32.mxu0 0.0
  %2082 = vmatmul.mubr.f32.gmra.mxu0 %v2004
  %v2083 = vpop.f32.mrf.mxu0
  %v2084 = vadd.f32 0.0, %v2083
  %v2085 = vpop.f32.mrf.mxu0
  %2086 = vmatprep.mubr.f32.mxu0 0.0
  %2087 = vmatmul.mubr.f32.gmra.mxu0 %v2007
  %v2088 = vpop.f32.mrf.mxu0
  %v2089 = vadd.f32 0.0, %v2088
  %v2090 = vpop.f32.mrf.mxu0
  %2091 = vmatprep.mubr.f32.mxu0 0.0
  %2092 = vmatmul.mubr.f32.gmra.mxu0 %v2010
  %v2093 = vpop.f32.mrf.mxu0
  %v2094 = vadd.f32 0.0, %v2093
  %v2095 = vpop.f32.mrf.mxu0
  %2096 = vdwg.mxu0
  %s2097 = scalar_lea.vmem %s13, 1
  %v2098 = vld [vmem:[%s2097] sm:$0x1]
  %v2100 = vlaneseq
  %v2101 = vshrl.u32 %v2100, 7
  %v2102 = vsub.s32 0, %v2101
  %v2103 = vrot.slane %v2098, %v2102
  %v2105 = vmul.f32 %v2079, %v2103
  %v2106 = vmul.f32 %v2084, %v2103
  %v2107 = vmul.f32 %v2089, %v2103
  %v2108 = vmul.f32 %v2094, %v2103
  %v2109 = vadd.f32 %v1991, %v2105
  %v2110 = vadd.f32 %v1992, %v2106
  %v2111 = vadd.f32 %v1993, %v2107
  %v2112 = vadd.f32 %v1994, %v2108
  %s2113 = scalar_lea.vmem %s12, 64
  %v2114 = vld [vmem:[%s2113] sm:$0xff]
  %v2115 = vld [vmem:[%s2113 + $0x8] sm:$0xff]
  %v2116 = vld [vmem:[%s2113 + $0x10] sm:$0xff]
  %v2117 = vld [vmem:[%s2113 + $0x18] sm:$0xff]
  %v2119 = vsel %vm209, %v2114, 0
  %v2122 = vsel %vm209, %v2115, 0
  %v2125 = vsel %vm209, %v2116, 0
  %v2128 = vsel %vm209, %v2117, 0
  %2130 = vmatprep.subr.mxu0 0.0
  %2131 = vmatpush1.msra.mxu0 0.0
  %2132 = vmatprep.subr.mxu0 0.0
  %2133 = vmatpush1.msra.mxu0 0.0
  %2134 = vmatprep.subr.mxu0 0.0
  %2135 = vmatpush1.msra.mxu0 0.0
  %2136 = vmatprep.subr.mxu0 0.0
  %2137 = vmatpush1.msra.mxu0 0.0
  %2138 = vmatprep.subr.mxu0 0.0
  %2139 = vmatpush1.msra.mxu0 0.0
  %2140 = vmatprep.subr.mxu0 0.0
  %2141 = vmatpush1.msra.mxu0 0.0
  %2142 = vmatprep.subr.mxu0 0.0
  %2143 = vmatpush1.msra.mxu0 0.0
  %2144 = vmatprep.subr.mxu0 0.0
  %2145 = vmatpush1.msra.mxu0 0.0
  %2146 = vmatprep.subr.mxu0 0.0
  %2147 = vmatpush1.msra.mxu0 0.0
  %2148 = vmatprep.subr.mxu0 0.0
  %2149 = vmatpush1.msra.mxu0 0.0
  %2150 = vmatprep.subr.mxu0 0.0
  %2151 = vmatpush1.msra.mxu0 0.0
  %2152 = vmatprep.subr.mxu0 0.0
  %2153 = vmatpush1.msra.mxu0 0.0
  %2154 = vmatprep.subr.mxu0 0.0
  %2155 = vmatpush1.msra.mxu0 %v1869
  %2156 = vmatprep.subr.mxu0 0.0
  %2157 = vmatpush1.msra.mxu0 %v1864
  %2158 = vmatprep.subr.mxu0 0.0
  %2159 = vmatpush1.msra.mxu0 %v1859
  %2160 = vmatprep.subr.mxu0 0.0
  %2161 = vmatpush1.msra.mxu0 %v1854
  %2162 = vmatprep.subr.mxu0 0.0
  %2163 = vmatpush2.msra.mxu0 0.0
  %2164 = vmatprep.subr.mxu0 0.0
  %2165 = vmatpush2.msra.mxu0 0.0
  %2166 = vmatprep.subr.mxu0 0.0
  %2167 = vmatpush2.msra.mxu0 0.0
  %2168 = vmatprep.subr.mxu0 0.0
  %2169 = vmatpush2.msra.mxu0 0.0
  %2170 = vmatprep.subr.mxu0 0.0
  %2171 = vmatpush2.msra.mxu0 0.0
  %2172 = vmatprep.subr.mxu0 0.0
  %2173 = vmatpush2.msra.mxu0 0.0
  %2174 = vmatprep.subr.mxu0 0.0
  %2175 = vmatpush2.msra.mxu0 0.0
  %2176 = vmatprep.subr.mxu0 0.0
  %2177 = vmatpush2.msra.mxu0 0.0
  %2178 = vmatprep.subr.mxu0 0.0
  %2179 = vmatpush2.msra.mxu0 0.0
  %2180 = vmatprep.subr.mxu0 0.0
  %2181 = vmatpush2.msra.mxu0 0.0
  %2182 = vmatprep.subr.mxu0 0.0
  %2183 = vmatpush2.msra.mxu0 0.0
  %2184 = vmatprep.subr.mxu0 0.0
  %2185 = vmatpush2.msra.mxu0 0.0
  %2186 = vmatprep.subr.mxu0 0.0
  %2187 = vmatpush2.msra.mxu0 0.0
  %2188 = vmatprep.subr.mxu0 0.0
  %2189 = vmatpush2.msra.mxu0 0.0
  %2190 = vmatprep.subr.mxu0 0.0
  %2191 = vmatpush2.msra.mxu0 0.0
  %2192 = vmatprep.subr.mxu0 0.0
  %2193 = vmatpush2.msra.mxu0 0.0
  %2194 = vmatprep.mubr.f32.mxu0 0.0
  %2195 = vmatmul.mubr.f32.gmra.mxu0 %v2119
  %v2196 = vpop.f32.mrf.mxu0
  %v2197 = vadd.f32 0.0, %v2196
  %v2198 = vpop.f32.mrf.mxu0
  %2199 = vmatprep.mubr.f32.mxu0 0.0
  %2200 = vmatmul.mubr.f32.gmra.mxu0 %v2122
  %v2201 = vpop.f32.mrf.mxu0
  %v2202 = vadd.f32 0.0, %v2201
  %v2203 = vpop.f32.mrf.mxu0
  %2204 = vmatprep.mubr.f32.mxu0 0.0
  %2205 = vmatmul.mubr.f32.gmra.mxu0 %v2125
  %v2206 = vpop.f32.mrf.mxu0
  %v2207 = vadd.f32 0.0, %v2206
  %v2208 = vpop.f32.mrf.mxu0
  %2209 = vmatprep.mubr.f32.mxu0 0.0
  %2210 = vmatmul.mubr.f32.gmra.mxu0 %v2128
  %v2211 = vpop.f32.mrf.mxu0
  %v2212 = vadd.f32 0.0, %v2211
  %v2213 = vpop.f32.mrf.mxu0
  %2214 = vdwg.mxu0
  %s2215 = scalar_lea.vmem %s13, 2
  %v2216 = vld [vmem:[%s2215] sm:$0x1]
  %v2218 = vlaneseq
  %v2219 = vshrl.u32 %v2218, 7
  %v2220 = vsub.s32 0, %v2219
  %v2221 = vrot.slane %v2216, %v2220
  %v2223 = vmul.f32 %v2197, %v2221
  %v2224 = vmul.f32 %v2202, %v2221
  %v2225 = vmul.f32 %v2207, %v2221
  %v2226 = vmul.f32 %v2212, %v2221
  %v2227 = vadd.f32 %v2109, %v2223
  %v2228 = vadd.f32 %v2110, %v2224
  %v2229 = vadd.f32 %v2111, %v2225
  %v2230 = vadd.f32 %v2112, %v2226
  %s2231 = scalar_lea.vmem %s12, 96
  %v2232 = vld [vmem:[%s2231] sm:$0xff]
  %v2233 = vld [vmem:[%s2231 + $0x8] sm:$0xff]
  %v2234 = vld [vmem:[%s2231 + $0x10] sm:$0xff]
  %v2235 = vld [vmem:[%s2231 + $0x18] sm:$0xff]
  %v2237 = vsel %vm209, %v2232, 0
  %v2240 = vsel %vm209, %v2233, 0
  %v2243 = vsel %vm209, %v2234, 0
  %v2246 = vsel %vm209, %v2235, 0
  %2248 = vmatprep.subr.mxu0 0.0
  %2249 = vmatpush1.msra.mxu0 0.0
  %2250 = vmatprep.subr.mxu0 0.0
  %2251 = vmatpush1.msra.mxu0 0.0
  %2252 = vmatprep.subr.mxu0 0.0
  %2253 = vmatpush1.msra.mxu0 0.0
  %2254 = vmatprep.subr.mxu0 0.0
  %2255 = vmatpush1.msra.mxu0 0.0
  %2256 = vmatprep.subr.mxu0 0.0
  %2257 = vmatpush1.msra.mxu0 0.0
  %2258 = vmatprep.subr.mxu0 0.0
  %2259 = vmatpush1.msra.mxu0 0.0
  %2260 = vmatprep.subr.mxu0 0.0
  %2261 = vmatpush1.msra.mxu0 0.0
  %2262 = vmatprep.subr.mxu0 0.0
  %2263 = vmatpush1.msra.mxu0 0.0
  %2264 = vmatprep.subr.mxu0 0.0
  %2265 = vmatpush1.msra.mxu0 0.0
  %2266 = vmatprep.subr.mxu0 0.0
  %2267 = vmatpush1.msra.mxu0 0.0
  %2268 = vmatprep.subr.mxu0 0.0
  %2269 = vmatpush1.msra.mxu0 0.0
  %2270 = vmatprep.subr.mxu0 0.0
  %2271 = vmatpush1.msra.mxu0 0.0
  %2272 = vmatprep.subr.mxu0 0.0
  %2273 = vmatpush1.msra.mxu0 %v1869
  %2274 = vmatprep.subr.mxu0 0.0
  %2275 = vmatpush1.msra.mxu0 %v1864
  %2276 = vmatprep.subr.mxu0 0.0
  %2277 = vmatpush1.msra.mxu0 %v1859
  %2278 = vmatprep.subr.mxu0 0.0
  %2279 = vmatpush1.msra.mxu0 %v1854
  %2280 = vmatprep.subr.mxu0 0.0
  %2281 = vmatpush2.msra.mxu0 0.0
  %2282 = vmatprep.subr.mxu0 0.0
  %2283 = vmatpush2.msra.mxu0 0.0
  %2284 = vmatprep.subr.mxu0 0.0
  %2285 = vmatpush2.msra.mxu0 0.0
  %2286 = vmatprep.subr.mxu0 0.0
  %2287 = vmatpush2.msra.mxu0 0.0
  %2288 = vmatprep.subr.mxu0 0.0
  %2289 = vmatpush2.msra.mxu0 0.0
  %2290 = vmatprep.subr.mxu0 0.0
  %2291 = vmatpush2.msra.mxu0 0.0
  %2292 = vmatprep.subr.mxu0 0.0
  %2293 = vmatpush2.msra.mxu0 0.0
  %2294 = vmatprep.subr.mxu0 0.0
  %2295 = vmatpush2.msra.mxu0 0.0
  %2296 = vmatprep.subr.mxu0 0.0
  %2297 = vmatpush2.msra.mxu0 0.0
  %2298 = vmatprep.subr.mxu0 0.0
  %2299 = vmatpush2.msra.mxu0 0.0
  %2300 = vmatprep.subr.mxu0 0.0
  %2301 = vmatpush2.msra.mxu0 0.0
  %2302 = vmatprep.subr.mxu0 0.0
  %2303 = vmatpush2.msra.mxu0 0.0
  %2304 = vmatprep.subr.mxu0 0.0
  %2305 = vmatpush2.msra.mxu0 0.0
  %2306 = vmatprep.subr.mxu0 0.0
  %2307 = vmatpush2.msra.mxu0 0.0
  %2308 = vmatprep.subr.mxu0 0.0
  %2309 = vmatpush2.msra.mxu0 0.0
  %2310 = vmatprep.subr.mxu0 0.0
  %2311 = vmatpush2.msra.mxu0 0.0
  %2312 = vmatprep.mubr.f32.mxu0 0.0
  %2313 = vmatmul.mubr.f32.gmra.mxu0 %v2237
  %v2314 = vpop.f32.mrf.mxu0
  %v2315 = vadd.f32 0.0, %v2314
  %v2316 = vpop.f32.mrf.mxu0
  %2317 = vmatprep.mubr.f32.mxu0 0.0
  %2318 = vmatmul.mubr.f32.gmra.mxu0 %v2240
  %v2319 = vpop.f32.mrf.mxu0
  %v2320 = vadd.f32 0.0, %v2319
  %v2321 = vpop.f32.mrf.mxu0
  %2322 = vmatprep.mubr.f32.mxu0 0.0
  %2323 = vmatmul.mubr.f32.gmra.mxu0 %v2243
  %v2324 = vpop.f32.mrf.mxu0
  %v2325 = vadd.f32 0.0, %v2324
  %v2326 = vpop.f32.mrf.mxu0
  %2327 = vmatprep.mubr.f32.mxu0 0.0
  %2328 = vmatmul.mubr.f32.gmra.mxu0 %v2246
  %v2329 = vpop.f32.mrf.mxu0
  %v2330 = vadd.f32 0.0, %v2329
  %v2331 = vpop.f32.mrf.mxu0
  %2332 = vdwg.mxu0
  %s2333 = scalar_lea.vmem %s13, 3
  %v2334 = vld [vmem:[%s2333] sm:$0x1]
  %v2336 = vlaneseq
  %v2337 = vshrl.u32 %v2336, 7
  %v2338 = vsub.s32 0, %v2337
  %v2339 = vrot.slane %v2334, %v2338
  %v2341 = vmul.f32 %v2315, %v2339
  %v2342 = vmul.f32 %v2320, %v2339
  %v2343 = vmul.f32 %v2325, %v2339
  %v2344 = vmul.f32 %v2330, %v2339
  %v2345 = vadd.f32 %v2227, %v2341
  %v2346 = vadd.f32 %v2228, %v2342
  %v2347 = vadd.f32 %v2229, %v2343
  %v2348 = vadd.f32 %v2230, %v2344
  %s2349 = scalar_lea.vmem %s12, 128
  %v2350 = vld [vmem:[%s2349] sm:$0xff]
  %v2351 = vld [vmem:[%s2349 + $0x8] sm:$0xff]
  %v2352 = vld [vmem:[%s2349 + $0x10] sm:$0xff]
  %v2353 = vld [vmem:[%s2349 + $0x18] sm:$0xff]
  %v2355 = vsel %vm209, %v2350, 0
  %v2358 = vsel %vm209, %v2351, 0
  %v2361 = vsel %vm209, %v2352, 0
  %v2364 = vsel %vm209, %v2353, 0
  %2366 = vmatprep.subr.mxu0 0.0
  %2367 = vmatpush1.msra.mxu0 0.0
  %2368 = vmatprep.subr.mxu0 0.0
  %2369 = vmatpush1.msra.mxu0 0.0
  %2370 = vmatprep.subr.mxu0 0.0
  %2371 = vmatpush1.msra.mxu0 0.0
  %2372 = vmatprep.subr.mxu0 0.0
  %2373 = vmatpush1.msra.mxu0 0.0
  %2374 = vmatprep.subr.mxu0 0.0
  %2375 = vmatpush1.msra.mxu0 0.0
  %2376 = vmatprep.subr.mxu0 0.0
  %2377 = vmatpush1.msra.mxu0 0.0
  %2378 = vmatprep.subr.mxu0 0.0
  %2379 = vmatpush1.msra.mxu0 0.0
  %2380 = vmatprep.subr.mxu0 0.0
  %2381 = vmatpush1.msra.mxu0 0.0
  %2382 = vmatprep.subr.mxu0 0.0
  %2383 = vmatpush1.msra.mxu0 0.0
  %2384 = vmatprep.subr.mxu0 0.0
  %2385 = vmatpush1.msra.mxu0 0.0
  %2386 = vmatprep.subr.mxu0 0.0
  %2387 = vmatpush1.msra.mxu0 0.0
  %2388 = vmatprep.subr.mxu0 0.0
  %2389 = vmatpush1.msra.mxu0 0.0
  %2390 = vmatprep.subr.mxu0 0.0
  %2391 = vmatpush1.msra.mxu0 %v1869
  %2392 = vmatprep.subr.mxu0 0.0
  %2393 = vmatpush1.msra.mxu0 %v1864
  %2394 = vmatprep.subr.mxu0 0.0
  %2395 = vmatpush1.msra.mxu0 %v1859
  %2396 = vmatprep.subr.mxu0 0.0
  %2397 = vmatpush1.msra.mxu0 %v1854
  %2398 = vmatprep.subr.mxu0 0.0
  %2399 = vmatpush2.msra.mxu0 0.0
  %2400 = vmatprep.subr.mxu0 0.0
  %2401 = vmatpush2.msra.mxu0 0.0
  %2402 = vmatprep.subr.mxu0 0.0
  %2403 = vmatpush2.msra.mxu0 0.0
  %2404 = vmatprep.subr.mxu0 0.0
  %2405 = vmatpush2.msra.mxu0 0.0
  %2406 = vmatprep.subr.mxu0 0.0
  %2407 = vmatpush2.msra.mxu0 0.0
  %2408 = vmatprep.subr.mxu0 0.0
  %2409 = vmatpush2.msra.mxu0 0.0
  %2410 = vmatprep.subr.mxu0 0.0
  %2411 = vmatpush2.msra.mxu0 0.0
  %2412 = vmatprep.subr.mxu0 0.0
  %2413 = vmatpush2.msra.mxu0 0.0
  %2414 = vmatprep.subr.mxu0 0.0
  %2415 = vmatpush2.msra.mxu0 0.0
  %2416 = vmatprep.subr.mxu0 0.0
  %2417 = vmatpush2.msra.mxu0 0.0
  %2418 = vmatprep.subr.mxu0 0.0
  %2419 = vmatpush2.msra.mxu0 0.0
  %2420 = vmatprep.subr.mxu0 0.0
  %2421 = vmatpush2.msra.mxu0 0.0
  %2422 = vmatprep.subr.mxu0 0.0
  %2423 = vmatpush2.msra.mxu0 0.0
  %2424 = vmatprep.subr.mxu0 0.0
  %2425 = vmatpush2.msra.mxu0 0.0
  %2426 = vmatprep.subr.mxu0 0.0
  %2427 = vmatpush2.msra.mxu0 0.0
  %2428 = vmatprep.subr.mxu0 0.0
  %2429 = vmatpush2.msra.mxu0 0.0
  %2430 = vmatprep.mubr.f32.mxu0 0.0
  %2431 = vmatmul.mubr.f32.gmra.mxu0 %v2355
  %v2432 = vpop.f32.mrf.mxu0
  %v2433 = vadd.f32 0.0, %v2432
  %v2434 = vpop.f32.mrf.mxu0
  %2435 = vmatprep.mubr.f32.mxu0 0.0
  %2436 = vmatmul.mubr.f32.gmra.mxu0 %v2358
  %v2437 = vpop.f32.mrf.mxu0
  %v2438 = vadd.f32 0.0, %v2437
  %v2439 = vpop.f32.mrf.mxu0
  %2440 = vmatprep.mubr.f32.mxu0 0.0
  %2441 = vmatmul.mubr.f32.gmra.mxu0 %v2361
  %v2442 = vpop.f32.mrf.mxu0
  %v2443 = vadd.f32 0.0, %v2442
  %v2444 = vpop.f32.mrf.mxu0
  %2445 = vmatprep.mubr.f32.mxu0 0.0
  %2446 = vmatmul.mubr.f32.gmra.mxu0 %v2364
  %v2447 = vpop.f32.mrf.mxu0
  %v2448 = vadd.f32 0.0, %v2447
  %v2449 = vpop.f32.mrf.mxu0
  %2450 = vdwg.mxu0
  %s2451 = scalar_lea.vmem %s13, 4
  %v2452 = vld [vmem:[%s2451] sm:$0x1]
  %v2454 = vlaneseq
  %v2455 = vshrl.u32 %v2454, 7
  %v2456 = vsub.s32 0, %v2455
  %v2457 = vrot.slane %v2452, %v2456
  %v2459 = vmul.f32 %v2433, %v2457
  %v2460 = vmul.f32 %v2438, %v2457
  %v2461 = vmul.f32 %v2443, %v2457
  %v2462 = vmul.f32 %v2448, %v2457
  %v2463 = vadd.f32 %v2345, %v2459
  %v2464 = vadd.f32 %v2346, %v2460
  %v2465 = vadd.f32 %v2347, %v2461
  %v2466 = vadd.f32 %v2348, %v2462
  %s2467 = scalar_lea.vmem %s12, 160
  %v2468 = vld [vmem:[%s2467] sm:$0xff]
  %v2469 = vld [vmem:[%s2467 + $0x8] sm:$0xff]
  %v2470 = vld [vmem:[%s2467 + $0x10] sm:$0xff]
  %v2471 = vld [vmem:[%s2467 + $0x18] sm:$0xff]
  %v2473 = vsel %vm209, %v2468, 0
  %v2476 = vsel %vm209, %v2469, 0
  %v2479 = vsel %vm209, %v2470, 0
  %v2482 = vsel %vm209, %v2471, 0
  %2484 = vmatprep.subr.mxu0 0.0
  %2485 = vmatpush1.msra.mxu0 0.0
  %2486 = vmatprep.subr.mxu0 0.0
  %2487 = vmatpush1.msra.mxu0 0.0
  %2488 = vmatprep.subr.mxu0 0.0
  %2489 = vmatpush1.msra.mxu0 0.0
  %2490 = vmatprep.subr.mxu0 0.0
  %2491 = vmatpush1.msra.mxu0 0.0
  %2492 = vmatprep.subr.mxu0 0.0
  %2493 = vmatpush1.msra.mxu0 0.0
  %2494 = vmatprep.subr.mxu0 0.0
  %2495 = vmatpush1.msra.mxu0 0.0
  %2496 = vmatprep.subr.mxu0 0.0
  %2497 = vmatpush1.msra.mxu0 0.0
  %2498 = vmatprep.subr.mxu0 0.0
  %2499 = vmatpush1.msra.mxu0 0.0
  %2500 = vmatprep.subr.mxu0 0.0
  %2501 = vmatpush1.msra.mxu0 0.0
  %2502 = vmatprep.subr.mxu0 0.0
  %2503 = vmatpush1.msra.mxu0 0.0
  %2504 = vmatprep.subr.mxu0 0.0
  %2505 = vmatpush1.msra.mxu0 0.0
  %2506 = vmatprep.subr.mxu0 0.0
  %2507 = vmatpush1.msra.mxu0 0.0
  %2508 = vmatprep.subr.mxu0 0.0
  %2509 = vmatpush1.msra.mxu0 %v1869
  %2510 = vmatprep.subr.mxu0 0.0
  %2511 = vmatpush1.msra.mxu0 %v1864
  %2512 = vmatprep.subr.mxu0 0.0
  %2513 = vmatpush1.msra.mxu0 %v1859
  %2514 = vmatprep.subr.mxu0 0.0
  %2515 = vmatpush1.msra.mxu0 %v1854
  %2516 = vmatprep.subr.mxu0 0.0
  %2517 = vmatpush2.msra.mxu0 0.0
  %2518 = vmatprep.subr.mxu0 0.0
  %2519 = vmatpush2.msra.mxu0 0.0
  %2520 = vmatprep.subr.mxu0 0.0
  %2521 = vmatpush2.msra.mxu0 0.0
  %2522 = vmatprep.subr.mxu0 0.0
  %2523 = vmatpush2.msra.mxu0 0.0
  %2524 = vmatprep.subr.mxu0 0.0
  %2525 = vmatpush2.msra.mxu0 0.0
  %2526 = vmatprep.subr.mxu0 0.0
  %2527 = vmatpush2.msra.mxu0 0.0
  %2528 = vmatprep.subr.mxu0 0.0
  %2529 = vmatpush2.msra.mxu0 0.0
  %2530 = vmatprep.subr.mxu0 0.0
  %2531 = vmatpush2.msra.mxu0 0.0
  %2532 = vmatprep.subr.mxu0 0.0
  %2533 = vmatpush2.msra.mxu0 0.0
  %2534 = vmatprep.subr.mxu0 0.0
  %2535 = vmatpush2.msra.mxu0 0.0
  %2536 = vmatprep.subr.mxu0 0.0
  %2537 = vmatpush2.msra.mxu0 0.0
  %2538 = vmatprep.subr.mxu0 0.0
  %2539 = vmatpush2.msra.mxu0 0.0
  %2540 = vmatprep.subr.mxu0 0.0
  %2541 = vmatpush2.msra.mxu0 0.0
  %2542 = vmatprep.subr.mxu0 0.0
  %2543 = vmatpush2.msra.mxu0 0.0
  %2544 = vmatprep.subr.mxu0 0.0
  %2545 = vmatpush2.msra.mxu0 0.0
  %2546 = vmatprep.subr.mxu0 0.0
  %2547 = vmatpush2.msra.mxu0 0.0
  %2548 = vmatprep.mubr.f32.mxu0 0.0
  %2549 = vmatmul.mubr.f32.gmra.mxu0 %v2473
  %v2550 = vpop.f32.mrf.mxu0
  %v2551 = vadd.f32 0.0, %v2550
  %v2552 = vpop.f32.mrf.mxu0
  %2553 = vmatprep.mubr.f32.mxu0 0.0
  %2554 = vmatmul.mubr.f32.gmra.mxu0 %v2476
  %v2555 = vpop.f32.mrf.mxu0
  %v2556 = vadd.f32 0.0, %v2555
  %v2557 = vpop.f32.mrf.mxu0
  %2558 = vmatprep.mubr.f32.mxu0 0.0
  %2559 = vmatmul.mubr.f32.gmra.mxu0 %v2479
  %v2560 = vpop.f32.mrf.mxu0
  %v2561 = vadd.f32 0.0, %v2560
  %v2562 = vpop.f32.mrf.mxu0
  %2563 = vmatprep.mubr.f32.mxu0 0.0
  %2564 = vmatmul.mubr.f32.gmra.mxu0 %v2482
  %v2565 = vpop.f32.mrf.mxu0
  %v2566 = vadd.f32 0.0, %v2565
  %v2567 = vpop.f32.mrf.mxu0
  %2568 = vdwg.mxu0
  %s2569 = scalar_lea.vmem %s13, 5
  %v2570 = vld [vmem:[%s2569] sm:$0x1]
  %v2572 = vlaneseq
  %v2573 = vshrl.u32 %v2572, 7
  %v2574 = vsub.s32 0, %v2573
  %v2575 = vrot.slane %v2570, %v2574
  %v2577 = vmul.f32 %v2551, %v2575
  %v2578 = vmul.f32 %v2556, %v2575
  %v2579 = vmul.f32 %v2561, %v2575
  %v2580 = vmul.f32 %v2566, %v2575
  %v2581 = vadd.f32 %v2463, %v2577
  %v2582 = vadd.f32 %v2464, %v2578
  %v2583 = vadd.f32 %v2465, %v2579
  %v2584 = vadd.f32 %v2466, %v2580
  %s2585 = scalar_lea.vmem %s12, 192
  %v2586 = vld [vmem:[%s2585] sm:$0xff]
  %v2587 = vld [vmem:[%s2585 + $0x8] sm:$0xff]
  %v2588 = vld [vmem:[%s2585 + $0x10] sm:$0xff]
  %v2589 = vld [vmem:[%s2585 + $0x18] sm:$0xff]
  %v2591 = vsel %vm209, %v2586, 0
  %v2594 = vsel %vm209, %v2587, 0
  %v2597 = vsel %vm209, %v2588, 0
  %v2600 = vsel %vm209, %v2589, 0
  %2602 = vmatprep.subr.mxu0 0.0
  %2603 = vmatpush1.msra.mxu0 0.0
  %2604 = vmatprep.subr.mxu0 0.0
  %2605 = vmatpush1.msra.mxu0 0.0
  %2606 = vmatprep.subr.mxu0 0.0
  %2607 = vmatpush1.msra.mxu0 0.0
  %2608 = vmatprep.subr.mxu0 0.0
  %2609 = vmatpush1.msra.mxu0 0.0
  %2610 = vmatprep.subr.mxu0 0.0
  %2611 = vmatpush1.msra.mxu0 0.0
  %2612 = vmatprep.subr.mxu0 0.0
  %2613 = vmatpush1.msra.mxu0 0.0
  %2614 = vmatprep.subr.mxu0 0.0
  %2615 = vmatpush1.msra.mxu0 0.0
  %2616 = vmatprep.subr.mxu0 0.0
  %2617 = vmatpush1.msra.mxu0 0.0
  %2618 = vmatprep.subr.mxu0 0.0
  %2619 = vmatpush1.msra.mxu0 0.0
  %2620 = vmatprep.subr.mxu0 0.0
  %2621 = vmatpush1.msra.mxu0 0.0
  %2622 = vmatprep.subr.mxu0 0.0
  %2623 = vmatpush1.msra.mxu0 0.0
  %2624 = vmatprep.subr.mxu0 0.0
  %2625 = vmatpush1.msra.mxu0 0.0
  %2626 = vmatprep.subr.mxu0 0.0
  %2627 = vmatpush1.msra.mxu0 %v1869
  %2628 = vmatprep.subr.mxu0 0.0
  %2629 = vmatpush1.msra.mxu0 %v1864
  %2630 = vmatprep.subr.mxu0 0.0
  %2631 = vmatpush1.msra.mxu0 %v1859
  %2632 = vmatprep.subr.mxu0 0.0
  %2633 = vmatpush1.msra.mxu0 %v1854
  %2634 = vmatprep.subr.mxu0 0.0
  %2635 = vmatpush2.msra.mxu0 0.0
  %2636 = vmatprep.subr.mxu0 0.0
  %2637 = vmatpush2.msra.mxu0 0.0
  %2638 = vmatprep.subr.mxu0 0.0
  %2639 = vmatpush2.msra.mxu0 0.0
  %2640 = vmatprep.subr.mxu0 0.0
  %2641 = vmatpush2.msra.mxu0 0.0
  %2642 = vmatprep.subr.mxu0 0.0
  %2643 = vmatpush2.msra.mxu0 0.0
  %2644 = vmatprep.subr.mxu0 0.0
  %2645 = vmatpush2.msra.mxu0 0.0
  %2646 = vmatprep.subr.mxu0 0.0
  %2647 = vmatpush2.msra.mxu0 0.0
  %2648 = vmatprep.subr.mxu0 0.0
  %2649 = vmatpush2.msra.mxu0 0.0
  %2650 = vmatprep.subr.mxu0 0.0
  %2651 = vmatpush2.msra.mxu0 0.0
  %2652 = vmatprep.subr.mxu0 0.0
  %2653 = vmatpush2.msra.mxu0 0.0
  %2654 = vmatprep.subr.mxu0 0.0
  %2655 = vmatpush2.msra.mxu0 0.0
  %2656 = vmatprep.subr.mxu0 0.0
  %2657 = vmatpush2.msra.mxu0 0.0
  %2658 = vmatprep.subr.mxu0 0.0
  %2659 = vmatpush2.msra.mxu0 0.0
  %2660 = vmatprep.subr.mxu0 0.0
  %2661 = vmatpush2.msra.mxu0 0.0
  %2662 = vmatprep.subr.mxu0 0.0
  %2663 = vmatpush2.msra.mxu0 0.0
  %2664 = vmatprep.subr.mxu0 0.0
  %2665 = vmatpush2.msra.mxu0 0.0
  %2666 = vmatprep.mubr.f32.mxu0 0.0
  %2667 = vmatmul.mubr.f32.gmra.mxu0 %v2591
  %v2668 = vpop.f32.mrf.mxu0
  %v2669 = vadd.f32 0.0, %v2668
  %v2670 = vpop.f32.mrf.mxu0
  %2671 = vmatprep.mubr.f32.mxu0 0.0
  %2672 = vmatmul.mubr.f32.gmra.mxu0 %v2594
  %v2673 = vpop.f32.mrf.mxu0
  %v2674 = vadd.f32 0.0, %v2673
  %v2675 = vpop.f32.mrf.mxu0
  %2676 = vmatprep.mubr.f32.mxu0 0.0
  %2677 = vmatmul.mubr.f32.gmra.mxu0 %v2597
  %v2678 = vpop.f32.mrf.mxu0
  %v2679 = vadd.f32 0.0, %v2678
  %v2680 = vpop.f32.mrf.mxu0
  %2681 = vmatprep.mubr.f32.mxu0 0.0
  %2682 = vmatmul.mubr.f32.gmra.mxu0 %v2600
  %v2683 = vpop.f32.mrf.mxu0
  %v2684 = vadd.f32 0.0, %v2683
  %v2685 = vpop.f32.mrf.mxu0
  %2686 = vdwg.mxu0
  %s2687 = scalar_lea.vmem %s13, 6
  %v2688 = vld [vmem:[%s2687] sm:$0x1]
  %v2690 = vlaneseq
  %v2691 = vshrl.u32 %v2690, 7
  %v2692 = vsub.s32 0, %v2691
  %v2693 = vrot.slane %v2688, %v2692
  %v2695 = vmul.f32 %v2669, %v2693
  %v2696 = vmul.f32 %v2674, %v2693
  %v2697 = vmul.f32 %v2679, %v2693
  %v2698 = vmul.f32 %v2684, %v2693
  %v2699 = vadd.f32 %v2581, %v2695
  %v2700 = vadd.f32 %v2582, %v2696
  %v2701 = vadd.f32 %v2583, %v2697
  %v2702 = vadd.f32 %v2584, %v2698
  %s2703 = scalar_lea.vmem %s12, 224
  %v2704 = vld [vmem:[%s2703] sm:$0xff]
  %v2705 = vld [vmem:[%s2703 + $0x8] sm:$0xff]
  %v2706 = vld [vmem:[%s2703 + $0x10] sm:$0xff]
  %v2707 = vld [vmem:[%s2703 + $0x18] sm:$0xff]
  %v2709 = vsel %vm209, %v2704, 0
  %v2712 = vsel %vm209, %v2705, 0
  %v2715 = vsel %vm209, %v2706, 0
  %v2718 = vsel %vm209, %v2707, 0
  %2720 = vmatprep.subr.mxu0 0.0
  %2721 = vmatpush1.msra.mxu0 0.0
  %2722 = vmatprep.subr.mxu0 0.0
  %2723 = vmatpush1.msra.mxu0 0.0
  %2724 = vmatprep.subr.mxu0 0.0
  %2725 = vmatpush1.msra.mxu0 0.0
  %2726 = vmatprep.subr.mxu0 0.0
  %2727 = vmatpush1.msra.mxu0 0.0
  %2728 = vmatprep.subr.mxu0 0.0
  %2729 = vmatpush1.msra.mxu0 0.0
  %2730 = vmatprep.subr.mxu0 0.0
  %2731 = vmatpush1.msra.mxu0 0.0
  %2732 = vmatprep.subr.mxu0 0.0
  %2733 = vmatpush1.msra.mxu0 0.0
  %2734 = vmatprep.subr.mxu0 0.0
  %2735 = vmatpush1.msra.mxu0 0.0
  %2736 = vmatprep.subr.mxu0 0.0
  %2737 = vmatpush1.msra.mxu0 0.0
  %2738 = vmatprep.subr.mxu0 0.0
  %2739 = vmatpush1.msra.mxu0 0.0
  %2740 = vmatprep.subr.mxu0 0.0
  %2741 = vmatpush1.msra.mxu0 0.0
  %2742 = vmatprep.subr.mxu0 0.0
  %2743 = vmatpush1.msra.mxu0 0.0
  %2744 = vmatprep.subr.mxu0 0.0
  %2745 = vmatpush1.msra.mxu0 %v1869
  %2746 = vmatprep.subr.mxu0 0.0
  %2747 = vmatpush1.msra.mxu0 %v1864
  %2748 = vmatprep.subr.mxu0 0.0
  %2749 = vmatpush1.msra.mxu0 %v1859
  %2750 = vmatprep.subr.mxu0 0.0
  %2751 = vmatpush1.msra.mxu0 %v1854
  %2752 = vmatprep.subr.mxu0 0.0
  %2753 = vmatpush2.msra.mxu0 0.0
  %2754 = vmatprep.subr.mxu0 0.0
  %2755 = vmatpush2.msra.mxu0 0.0
  %2756 = vmatprep.subr.mxu0 0.0
  %2757 = vmatpush2.msra.mxu0 0.0
  %2758 = vmatprep.subr.mxu0 0.0
  %2759 = vmatpush2.msra.mxu0 0.0
  %2760 = vmatprep.subr.mxu0 0.0
  %2761 = vmatpush2.msra.mxu0 0.0
  %2762 = vmatprep.subr.mxu0 0.0
  %2763 = vmatpush2.msra.mxu0 0.0
  %2764 = vmatprep.subr.mxu0 0.0
  %2765 = vmatpush2.msra.mxu0 0.0
  %2766 = vmatprep.subr.mxu0 0.0
  %2767 = vmatpush2.msra.mxu0 0.0
  %2768 = vmatprep.subr.mxu0 0.0
  %2769 = vmatpush2.msra.mxu0 0.0
  %2770 = vmatprep.subr.mxu0 0.0
  %2771 = vmatpush2.msra.mxu0 0.0
  %2772 = vmatprep.subr.mxu0 0.0
  %2773 = vmatpush2.msra.mxu0 0.0
  %2774 = vmatprep.subr.mxu0 0.0
  %2775 = vmatpush2.msra.mxu0 0.0
  %2776 = vmatprep.subr.mxu0 0.0
  %2777 = vmatpush2.msra.mxu0 0.0
  %2778 = vmatprep.subr.mxu0 0.0
  %2779 = vmatpush2.msra.mxu0 0.0
  %2780 = vmatprep.subr.mxu0 0.0
  %2781 = vmatpush2.msra.mxu0 0.0
  %2782 = vmatprep.subr.mxu0 0.0
  %2783 = vmatpush2.msra.mxu0 0.0
  %2784 = vmatprep.mubr.f32.mxu0 0.0
  %2785 = vmatmul.mubr.f32.gmra.mxu0 %v2709
  %v2786 = vpop.f32.mrf.mxu0
  %v2787 = vadd.f32 0.0, %v2786
  %v2788 = vpop.f32.mrf.mxu0
  %2789 = vmatprep.mubr.f32.mxu0 0.0
  %2790 = vmatmul.mubr.f32.gmra.mxu0 %v2712
  %v2791 = vpop.f32.mrf.mxu0
  %v2792 = vadd.f32 0.0, %v2791
  %v2793 = vpop.f32.mrf.mxu0
  %2794 = vmatprep.mubr.f32.mxu0 0.0
  %2795 = vmatmul.mubr.f32.gmra.mxu0 %v2715
  %v2796 = vpop.f32.mrf.mxu0
  %v2797 = vadd.f32 0.0, %v2796
  %v2798 = vpop.f32.mrf.mxu0
  %2799 = vmatprep.mubr.f32.mxu0 0.0
  %2800 = vmatmul.mubr.f32.gmra.mxu0 %v2718
  %v2801 = vpop.f32.mrf.mxu0
  %v2802 = vadd.f32 0.0, %v2801
  %v2803 = vpop.f32.mrf.mxu0
  %2804 = vdwg.mxu0
  %s2805 = scalar_lea.vmem %s13, 7
  %v2806 = vld [vmem:[%s2805] sm:$0x1]
  %v2808 = vlaneseq
  %v2809 = vshrl.u32 %v2808, 7
  %v2810 = vsub.s32 0, %v2809
  %v2811 = vrot.slane %v2806, %v2810
  %v2813 = vmul.f32 %v2787, %v2811
  %v2814 = vmul.f32 %v2792, %v2811
  %v2815 = vmul.f32 %v2797, %v2811
  %v2816 = vmul.f32 %v2802, %v2811
  %v2817 = vadd.f32 %v2699, %v2813
  %v2818 = vadd.f32 %v2700, %v2814
  %v2819 = vadd.f32 %v2701, %v2815
  %v2820 = vadd.f32 %v2702, %v2816
  %s2821 = scalar_lea.vmem %s12, 256
  %v2822 = vld [vmem:[%s2821] sm:$0xff]
  %v2823 = vld [vmem:[%s2821 + $0x8] sm:$0xff]
  %v2824 = vld [vmem:[%s2821 + $0x10] sm:$0xff]
  %v2825 = vld [vmem:[%s2821 + $0x18] sm:$0xff]
  %v2827 = vsel %vm209, %v2822, 0
  %v2830 = vsel %vm209, %v2823, 0
  %v2833 = vsel %vm209, %v2824, 0
  %v2836 = vsel %vm209, %v2825, 0
  %2838 = vmatprep.subr.mxu0 0.0
  %2839 = vmatpush1.msra.mxu0 0.0
  %2840 = vmatprep.subr.mxu0 0.0
  %2841 = vmatpush1.msra.mxu0 0.0
  %2842 = vmatprep.subr.mxu0 0.0
  %2843 = vmatpush1.msra.mxu0 0.0
  %2844 = vmatprep.subr.mxu0 0.0
  %2845 = vmatpush1.msra.mxu0 0.0
  %2846 = vmatprep.subr.mxu0 0.0
  %2847 = vmatpush1.msra.mxu0 0.0
  %2848 = vmatprep.subr.mxu0 0.0
  %2849 = vmatpush1.msra.mxu0 0.0
  %2850 = vmatprep.subr.mxu0 0.0
  %2851 = vmatpush1.msra.mxu0 0.0
  %2852 = vmatprep.subr.mxu0 0.0
  %2853 = vmatpush1.msra.mxu0 0.0
  %2854 = vmatprep.subr.mxu0 0.0
  %2855 = vmatpush1.msra.mxu0 0.0
  %2856 = vmatprep.subr.mxu0 0.0
  %2857 = vmatpush1.msra.mxu0 0.0
  %2858 = vmatprep.subr.mxu0 0.0
  %2859 = vmatpush1.msra.mxu0 0.0
  %2860 = vmatprep.subr.mxu0 0.0
  %2861 = vmatpush1.msra.mxu0 0.0
  %2862 = vmatprep.subr.mxu0 0.0
  %2863 = vmatpush1.msra.mxu0 %v1869
  %2864 = vmatprep.subr.mxu0 0.0
  %2865 = vmatpush1.msra.mxu0 %v1864
  %2866 = vmatprep.subr.mxu0 0.0
  %2867 = vmatpush1.msra.mxu0 %v1859
  %2868 = vmatprep.subr.mxu0 0.0
  %2869 = vmatpush1.msra.mxu0 %v1854
  %2870 = vmatprep.subr.mxu0 0.0
  %2871 = vmatpush2.msra.mxu0 0.0
  %2872 = vmatprep.subr.mxu0 0.0
  %2873 = vmatpush2.msra.mxu0 0.0
  %2874 = vmatprep.subr.mxu0 0.0
  %2875 = vmatpush2.msra.mxu0 0.0
  %2876 = vmatprep.subr.mxu0 0.0
  %2877 = vmatpush2.msra.mxu0 0.0
  %2878 = vmatprep.subr.mxu0 0.0
  %2879 = vmatpush2.msra.mxu0 0.0
  %2880 = vmatprep.subr.mxu0 0.0
  %2881 = vmatpush2.msra.mxu0 0.0
  %2882 = vmatprep.subr.mxu0 0.0
  %2883 = vmatpush2.msra.mxu0 0.0
  %2884 = vmatprep.subr.mxu0 0.0
  %2885 = vmatpush2.msra.mxu0 0.0
  %2886 = vmatprep.subr.mxu0 0.0
  %2887 = vmatpush2.msra.mxu0 0.0
  %2888 = vmatprep.subr.mxu0 0.0
  %2889 = vmatpush2.msra.mxu0 0.0
  %2890 = vmatprep.subr.mxu0 0.0
  %2891 = vmatpush2.msra.mxu0 0.0
  %2892 = vmatprep.subr.mxu0 0.0
  %2893 = vmatpush2.msra.mxu0 0.0
  %2894 = vmatprep.subr.mxu0 0.0
  %2895 = vmatpush2.msra.mxu0 0.0
  %2896 = vmatprep.subr.mxu0 0.0
  %2897 = vmatpush2.msra.mxu0 0.0
  %2898 = vmatprep.subr.mxu0 0.0
  %2899 = vmatpush2.msra.mxu0 0.0
  %2900 = vmatprep.subr.mxu0 0.0
  %2901 = vmatpush2.msra.mxu0 0.0
  %2902 = vmatprep.mubr.f32.mxu0 0.0
  %2903 = vmatmul.mubr.f32.gmra.mxu0 %v2827
  %v2904 = vpop.f32.mrf.mxu0
  %v2905 = vadd.f32 0.0, %v2904
  %v2906 = vpop.f32.mrf.mxu0
  %2907 = vmatprep.mubr.f32.mxu0 0.0
  %2908 = vmatmul.mubr.f32.gmra.mxu0 %v2830
  %v2909 = vpop.f32.mrf.mxu0
  %v2910 = vadd.f32 0.0, %v2909
  %v2911 = vpop.f32.mrf.mxu0
  %2912 = vmatprep.mubr.f32.mxu0 0.0
  %2913 = vmatmul.mubr.f32.gmra.mxu0 %v2833
  %v2914 = vpop.f32.mrf.mxu0
  %v2915 = vadd.f32 0.0, %v2914
  %v2916 = vpop.f32.mrf.mxu0
  %2917 = vmatprep.mubr.f32.mxu0 0.0
  %2918 = vmatmul.mubr.f32.gmra.mxu0 %v2836
  %v2919 = vpop.f32.mrf.mxu0
  %v2920 = vadd.f32 0.0, %v2919
  %v2921 = vpop.f32.mrf.mxu0
  %2922 = vdwg.mxu0
  %s2923 = scalar_lea.vmem %s13, 8
  %v2924 = vld [vmem:[%s2923] sm:$0x1]
  %v2926 = vlaneseq
  %v2927 = vshrl.u32 %v2926, 7
  %v2928 = vsub.s32 0, %v2927
  %v2929 = vrot.slane %v2924, %v2928
  %v2931 = vmul.f32 %v2905, %v2929
  %v2932 = vmul.f32 %v2910, %v2929
  %v2933 = vmul.f32 %v2915, %v2929
  %v2934 = vmul.f32 %v2920, %v2929
  %v2935 = vadd.f32 %v2817, %v2931
  %v2936 = vadd.f32 %v2818, %v2932
  %v2937 = vadd.f32 %v2819, %v2933
  %v2938 = vadd.f32 %v2820, %v2934
  %v2939 = vmul.f32 %v2935, 0.5
  %v2940 = vmul.f32 %v2936, 0.5
  %v2941 = vmul.f32 %v2937, 0.5
  %v2942 = vmul.f32 %v2938, 0.5
  %v2943 = vmul.f32 %v2935, 0.70710677
  %v2944 = vmul.f32 %v2936, 0.70710677
  %v2945 = vmul.f32 %v2937, 0.70710677
  %v2946 = vmul.f32 %v2938, 0.70710677
  %v2947 = verf.f32.pop %v2943
  %v2948 = verf.f32.pop %v2944
  %v2949 = verf.f32.pop %v2945
  %v2950 = verf.f32.pop %v2946
  %v2951 = vadd.f32 %v2947, 1.0
  %v2952 = vadd.f32 %v2948, 1.0
  %v2953 = vadd.f32 %v2949, 1.0
  %v2954 = vadd.f32 %v2950, 1.0
  %v2955 = vmul.f32 %v2939, %v2951
  %v2956 = vmul.f32 %v2940, %v2952
  %v2957 = vmul.f32 %v2941, %v2953
  %v2958 = vmul.f32 %v2942, %v2954
  %v2959 = vld [vmem:[%s15] sm:$0xff]
  %v2960 = vld [vmem:[%s15 + $0x8] sm:$0xff]
  %v2961 = vld [vmem:[%s15 + $0x10] sm:$0xff]
  %v2962 = vld [vmem:[%s15 + $0x18] sm:$0xff]
  %v2963 = vld [vmem:[%s15 + $0x20] sm:$0xff]
  %v2964 = vld [vmem:[%s15 + $0x28] sm:$0xff]
  %v2965 = vld [vmem:[%s15 + $0x30] sm:$0xff]
  %v2966 = vld [vmem:[%s15 + $0x38] sm:$0xff]
  %v2967 = vld [vmem:[%s16] sm:$0x1]
  %v2969 = vlaneseq
  %v2970 = vshrl.u32 %v2969, 7
  %v2971 = vsub.s32 0, %v2970
  %v2972 = vrot.slane %v2967, %v2971
  %vm2974 = vcmask 523264
  %v2976 = vsel %vm2974, %v2955, 0
  %v2979 = vsel %vm2974, %v2956, 0
  %v2982 = vsel %vm2974, %v2957, 0
  %v2985 = vsel %vm2974, %v2958, 0
  %2987 = vmatprep.subr.mxu0 0.0
  %2988 = vmatpush1.msra.mxu0 0.0
  %2989 = vmatprep.subr.mxu0 0.0
  %2990 = vmatpush1.msra.mxu0 0.0
  %2991 = vmatprep.subr.mxu0 0.0
  %2992 = vmatpush1.msra.mxu0 0.0
  %2993 = vmatprep.subr.mxu0 0.0
  %2994 = vmatpush1.msra.mxu0 0.0
  %2995 = vmatprep.subr.mxu0 0.0
  %2996 = vmatpush1.msra.mxu0 0.0
  %2997 = vmatprep.subr.mxu0 0.0
  %2998 = vmatpush1.msra.mxu0 0.0
  %2999 = vmatprep.subr.mxu0 0.0
  %3000 = vmatpush1.msra.mxu0 0.0
  %3001 = vmatprep.subr.mxu0 0.0
  %3002 = vmatpush1.msra.mxu0 0.0
  %3003 = vmatprep.subr.mxu0 0.0
  %3004 = vmatpush1.msra.mxu0 %v2966
  %3005 = vmatprep.subr.mxu0 0.0
  %3006 = vmatpush1.msra.mxu0 %v2965
  %3007 = vmatprep.subr.mxu0 0.0
  %3008 = vmatpush1.msra.mxu0 %v2964
  %3009 = vmatprep.subr.mxu0 0.0
  %3010 = vmatpush1.msra.mxu0 %v2963
  %3011 = vmatprep.subr.mxu0 0.0
  %3012 = vmatpush1.msra.mxu0 %v2962
  %3013 = vmatprep.subr.mxu0 0.0
  %3014 = vmatpush1.msra.mxu0 %v2961
  %3015 = vmatprep.subr.mxu0 0.0
  %3016 = vmatpush1.msra.mxu0 %v2960
  %3017 = vmatprep.subr.mxu0 0.0
  %3018 = vmatpush1.msra.mxu0 %v2959
  %3019 = vmatprep.subr.mxu0 0.0
  %3020 = vmatpush2.msra.mxu0 0.0
  %3021 = vmatprep.subr.mxu0 0.0
  %3022 = vmatpush2.msra.mxu0 0.0
  %3023 = vmatprep.subr.mxu0 0.0
  %3024 = vmatpush2.msra.mxu0 0.0
  %3025 = vmatprep.subr.mxu0 0.0
  %3026 = vmatpush2.msra.mxu0 0.0
  %3027 = vmatprep.subr.mxu0 0.0
  %3028 = vmatpush2.msra.mxu0 0.0
  %3029 = vmatprep.subr.mxu0 0.0
  %3030 = vmatpush2.msra.mxu0 0.0
  %3031 = vmatprep.subr.mxu0 0.0
  %3032 = vmatpush2.msra.mxu0 0.0
  %3033 = vmatprep.subr.mxu0 0.0
  %3034 = vmatpush2.msra.mxu0 0.0
  %3035 = vmatprep.subr.mxu0 0.0
  %3036 = vmatpush2.msra.mxu0 0.0
  %3037 = vmatprep.subr.mxu0 0.0
  %3038 = vmatpush2.msra.mxu0 0.0
  %3039 = vmatprep.subr.mxu0 0.0
  %3040 = vmatpush2.msra.mxu0 0.0
  %3041 = vmatprep.subr.mxu0 0.0
  %3042 = vmatpush2.msra.mxu0 0.0
  %3043 = vmatprep.subr.mxu0 0.0
  %3044 = vmatpush2.msra.mxu0 0.0
  %3045 = vmatprep.subr.mxu0 0.0
  %3046 = vmatpush2.msra.mxu0 0.0
  %3047 = vmatprep.subr.mxu0 0.0
  %3048 = vmatpush2.msra.mxu0 0.0
  %3049 = vmatprep.subr.mxu0 0.0
  %3050 = vmatpush2.msra.mxu0 0.0
  %3051 = vmatprep.mubr.f32.mxu0 0.0
  %3052 = vmatmul.mubr.f32.gmra.mxu0 %v2976
  %v3053 = vpop.f32.mrf.mxu0
  %v3054 = vadd.f32 %v2972, %v3053
  %v3055 = vpop.f32.mrf.mxu0
  %3056 = vmatprep.mubr.f32.mxu0 0.0
  %3057 = vmatmul.mubr.f32.gmra.mxu0 %v2979
  %v3058 = vpop.f32.mrf.mxu0
  %v3059 = vadd.f32 %v2972, %v3058
  %v3060 = vpop.f32.mrf.mxu0
  %3061 = vmatprep.mubr.f32.mxu0 0.0
  %3062 = vmatmul.mubr.f32.gmra.mxu0 %v2982
  %v3063 = vpop.f32.mrf.mxu0
  %v3064 = vadd.f32 %v2972, %v3063
  %v3065 = vpop.f32.mrf.mxu0
  %3066 = vmatprep.mubr.f32.mxu0 0.0
  %3067 = vmatmul.mubr.f32.gmra.mxu0 %v2985
  %v3068 = vpop.f32.mrf.mxu0
  %v3069 = vadd.f32 %v2972, %v3068
  %v3070 = vpop.f32.mrf.mxu0
  %3071 = vdwg.mxu0
  %v3072 = vadd.f32 %v1684, %v3054
  %v3073 = vadd.f32 %v1685, %v3059
  %v3074 = vadd.f32 %v1686, %v3064
  %v3075 = vadd.f32 %v1687, %v3069
  %s3076 = scalar_lea.vmem %s3, 3
  %v3077 = vld [vmem:[%s3076] sm:$0x1]
  %s3078 = scalar_lea.vmem %s4, 3
  %v3079 = vld [vmem:[%s3078] sm:$0x1]
  %v3080 = vsel %vm209, %v3072, 0.0
  %3081 = vadd.xlane.f32.xlu0 %v3080
  %v3082 = vpop.xlane.xlu0 %3081
  %v3083 = vsel %vm209, %v3073, 0.0
  %3084 = vadd.xlane.f32.xlu0 %v3083
  %v3085 = vpop.xlane.xlu0 %3084
  %v3086 = vsel %vm209, %v3074, 0.0
  %3087 = vadd.xlane.f32.xlu0 %v3086
  %v3088 = vpop.xlane.xlu0 %3087
  %v3089 = vsel %vm209, %v3075, 0.0
  %3090 = vadd.xlane.f32.xlu0 %v3089
  %v3091 = vpop.xlane.xlu0 %3090
  %v3092 = vmul.f32 %v3082, %v222
  %v3093 = vmul.f32 %v3085, %v222
  %v3094 = vmul.f32 %v3088, %v222
  %v3095 = vmul.f32 %v3091, %v222
  %v3096 = vsub.f32 %v3072, %v3092
  %v3097 = vsub.f32 %v3073, %v3093
  %v3098 = vsub.f32 %v3074, %v3094
  %v3099 = vsub.f32 %v3075, %v3095
  %v3100 = vmul.f32 %v3096, %v3096
  %v3101 = vmul.f32 %v3097, %v3097
  %v3102 = vmul.f32 %v3098, %v3098
  %v3103 = vmul.f32 %v3099, %v3099
  %v3104 = vsel %vm209, %v3100, 0.0
  %3105 = vadd.xlane.f32.xlu0 %v3104
  %v3106 = vpop.xlane.xlu0 %3105
  %v3107 = vsel %vm209, %v3101, 0.0
  %3108 = vadd.xlane.f32.xlu0 %v3107
  %v3109 = vpop.xlane.xlu0 %3108
  %v3110 = vsel %vm209, %v3102, 0.0
  %3111 = vadd.xlane.f32.xlu0 %v3110
  %v3112 = vpop.xlane.xlu0 %3111
  %v3113 = vsel %vm209, %v3103, 0.0
  %3114 = vadd.xlane.f32.xlu0 %v3113
  %v3115 = vpop.xlane.xlu0 %3114
  %v3116 = vmul.f32 %v3106, %v222
  %v3117 = vmul.f32 %v3109, %v222
  %v3118 = vmul.f32 %v3112, %v222
  %v3119 = vmul.f32 %v3115, %v222
  %v3120 = vadd.f32 %v3116, 1e-06
  %v3121 = vadd.f32 %v3117, 1e-06
  %v3122 = vadd.f32 %v3118, 1e-06
  %v3123 = vadd.f32 %v3119, 1e-06
  %v3124 = vrsqrt.pop %v3120
  %v3125 = vrsqrt.pop %v3121
  %v3126 = vrsqrt.pop %v3122
  %v3127 = vrsqrt.pop %v3123
  %v3128 = vmul.f32 %v3096, %v3124
  %v3129 = vmul.f32 %v3097, %v3125
  %v3130 = vmul.f32 %v3098, %v3126
  %v3131 = vmul.f32 %v3099, %v3127
  %v3133 = vlaneseq
  %v3134 = vshrl.u32 %v3133, 7
  %v3135 = vsub.s32 0, %v3134
  %v3136 = vrot.slane %v3077, %v3135
  %v3138 = vmul.f32 %v3128, %v3136
  %v3139 = vmul.f32 %v3129, %v3136
  %v3140 = vmul.f32 %v3130, %v3136
  %v3141 = vmul.f32 %v3131, %v3136
  %v3143 = vlaneseq
  %v3144 = vshrl.u32 %v3143, 7
  %v3145 = vsub.s32 0, %v3144
  %v3146 = vrot.slane %v3079, %v3145
  %v3148 = vadd.f32 %v3138, %v3146
  %v3149 = vadd.f32 %v3139, %v3146
  %v3150 = vadd.f32 %v3140, %v3146
  %v3151 = vadd.f32 %v3141, %v3146
  %v3152 = vld [vmem:[%s17] sm:$0xff]
  %v3153 = vld [vmem:[%s17 + $0x8] sm:$0xff]
  %v3154 = vld [vmem:[%s17 + $0x10] sm:$0xff]
  %v3155 = vld [vmem:[%s17 + $0x18] sm:$0xff]
  %v3156 = vld [vmem:[%s18] sm:$0x1]
  %v3158 = vlaneseq
  %v3159 = vshrl.u32 %v3158, 7
  %v3160 = vsub.s32 0, %v3159
  %v3161 = vrot.slane %v3156, %v3160
  %v3164 = vsel %vm209, %v3148, 0
  %v3167 = vsel %vm209, %v3149, 0
  %v3170 = vsel %vm209, %v3150, 0
  %v3173 = vsel %vm209, %v3151, 0
  %3175 = vmatprep.subr.mxu0 0.0
  %3176 = vmatpush1.msra.mxu0 0.0
  %3177 = vmatprep.subr.mxu0 0.0
  %3178 = vmatpush1.msra.mxu0 0.0
  %3179 = vmatprep.subr.mxu0 0.0
  %3180 = vmatpush1.msra.mxu0 0.0
  %3181 = vmatprep.subr.mxu0 0.0
  %3182 = vmatpush1.msra.mxu0 0.0
  %3183 = vmatprep.subr.mxu0 0.0
  %3184 = vmatpush1.msra.mxu0 0.0
  %3185 = vmatprep.subr.mxu0 0.0
  %3186 = vmatpush1.msra.mxu0 0.0
  %3187 = vmatprep.subr.mxu0 0.0
  %3188 = vmatpush1.msra.mxu0 0.0
  %3189 = vmatprep.subr.mxu0 0.0
  %3190 = vmatpush1.msra.mxu0 0.0
  %3191 = vmatprep.subr.mxu0 0.0
  %3192 = vmatpush1.msra.mxu0 0.0
  %3193 = vmatprep.subr.mxu0 0.0
  %3194 = vmatpush1.msra.mxu0 0.0
  %3195 = vmatprep.subr.mxu0 0.0
  %3196 = vmatpush1.msra.mxu0 0.0
  %3197 = vmatprep.subr.mxu0 0.0
  %3198 = vmatpush1.msra.mxu0 0.0
  %3199 = vmatprep.subr.mxu0 0.0
  %3200 = vmatpush1.msra.mxu0 %v3155
  %3201 = vmatprep.subr.mxu0 0.0
  %3202 = vmatpush1.msra.mxu0 %v3154
  %3203 = vmatprep.subr.mxu0 0.0
  %3204 = vmatpush1.msra.mxu0 %v3153
  %3205 = vmatprep.subr.mxu0 0.0
  %3206 = vmatpush1.msra.mxu0 %v3152
  %3207 = vmatprep.subr.mxu0 0.0
  %3208 = vmatpush2.msra.mxu0 0.0
  %3209 = vmatprep.subr.mxu0 0.0
  %3210 = vmatpush2.msra.mxu0 0.0
  %3211 = vmatprep.subr.mxu0 0.0
  %3212 = vmatpush2.msra.mxu0 0.0
  %3213 = vmatprep.subr.mxu0 0.0
  %3214 = vmatpush2.msra.mxu0 0.0
  %3215 = vmatprep.subr.mxu0 0.0
  %3216 = vmatpush2.msra.mxu0 0.0
  %3217 = vmatprep.subr.mxu0 0.0
  %3218 = vmatpush2.msra.mxu0 0.0
  %3219 = vmatprep.subr.mxu0 0.0
  %3220 = vmatpush2.msra.mxu0 0.0
  %3221 = vmatprep.subr.mxu0 0.0
  %3222 = vmatpush2.msra.mxu0 0.0
  %3223 = vmatprep.subr.mxu0 0.0
  %3224 = vmatpush2.msra.mxu0 0.0
  %3225 = vmatprep.subr.mxu0 0.0
  %3226 = vmatpush2.msra.mxu0 0.0
  %3227 = vmatprep.subr.mxu0 0.0
  %3228 = vmatpush2.msra.mxu0 0.0
  %3229 = vmatprep.subr.mxu0 0.0
  %3230 = vmatpush2.msra.mxu0 0.0
  %3231 = vmatprep.subr.mxu0 0.0
  %3232 = vmatpush2.msra.mxu0 0.0
  %3233 = vmatprep.subr.mxu0 0.0
  %3234 = vmatpush2.msra.mxu0 0.0
  %3235 = vmatprep.subr.mxu0 0.0
  %3236 = vmatpush2.msra.mxu0 0.0
  %3237 = vmatprep.subr.mxu0 0.0
  %3238 = vmatpush2.msra.mxu0 0.0
  %3239 = vmatprep.mubr.f32.mxu0 0.0
  %3240 = vmatmul.mubr.f32.gmra.mxu0 %v3164
  %v3241 = vpop.f32.mrf.mxu0
  %v3242 = vadd.f32 %v3161, %v3241
  %v3243 = vpop.f32.mrf.mxu0
  %3244 = vmatprep.mubr.f32.mxu0 0.0
  %3245 = vmatmul.mubr.f32.gmra.mxu0 %v3167
  %v3246 = vpop.f32.mrf.mxu0
  %v3247 = vadd.f32 %v3161, %v3246
  %v3248 = vpop.f32.mrf.mxu0
  %3249 = vmatprep.mubr.f32.mxu0 0.0
  %3250 = vmatmul.mubr.f32.gmra.mxu0 %v3170
  %v3251 = vpop.f32.mrf.mxu0
  %v3252 = vadd.f32 %v3161, %v3251
  %v3253 = vpop.f32.mrf.mxu0
  %3254 = vmatprep.mubr.f32.mxu0 0.0
  %3255 = vmatmul.mubr.f32.gmra.mxu0 %v3173
  %v3256 = vpop.f32.mrf.mxu0
  %v3257 = vadd.f32 %v3161, %v3256
  %v3258 = vpop.f32.mrf.mxu0
  %3259 = vdwg.mxu0
  %v3260 = vld [vmem:[%s19] sm:$0xff]
  %v3261 = vld [vmem:[%s19 + $0x8] sm:$0xff]
  %v3262 = vld [vmem:[%s19 + $0x10] sm:$0xff]
  %v3263 = vld [vmem:[%s19 + $0x18] sm:$0xff]
  %v3264 = vld [vmem:[%s20] sm:$0xff]
  %v3265 = vld [vmem:[%s20 + $0x8] sm:$0xff]
  %v3267 = vsel %vm672, %v3242, 0
  %v3270 = vsel %vm672, %v3247, 0
  %v3273 = vsel %vm672, %v3252, 0
  %v3276 = vsel %vm672, %v3257, 0
  %3278 = vmatprep.subr.mxu0 0.0
  %3279 = vmatpush1.msra.mxu0 0.0
  %3280 = vmatprep.subr.mxu0 0.0
  %3281 = vmatpush1.msra.mxu0 0.0
  %3282 = vmatprep.subr.mxu0 0.0
  %3283 = vmatpush1.msra.mxu0 0.0
  %3284 = vmatprep.subr.mxu0 0.0
  %3285 = vmatpush1.msra.mxu0 0.0
  %3286 = vmatprep.subr.mxu0 0.0
  %3287 = vmatpush1.msra.mxu0 0.0
  %3288 = vmatprep.subr.mxu0 0.0
  %3289 = vmatpush1.msra.mxu0 0.0
  %3290 = vmatprep.subr.mxu0 0.0
  %3291 = vmatpush1.msra.mxu0 0.0
  %3292 = vmatprep.subr.mxu0 0.0
  %3293 = vmatpush1.msra.mxu0 0.0
  %3294 = vmatprep.subr.mxu0 0.0
  %3295 = vmatpush1.msra.mxu0 0.0
  %3296 = vmatprep.subr.mxu0 0.0
  %3297 = vmatpush1.msra.mxu0 0.0
  %3298 = vmatprep.subr.mxu0 0.0
  %3299 = vmatpush1.msra.mxu0 0.0
  %3300 = vmatprep.subr.mxu0 0.0
  %3301 = vmatpush1.msra.mxu0 0.0
  %3302 = vmatprep.subr.mxu0 0.0
  %3303 = vmatpush1.msra.mxu0 0.0
  %3304 = vmatprep.subr.mxu0 0.0
  %3305 = vmatpush1.msra.mxu0 0.0
  %3306 = vmatprep.subr.mxu0 0.0
  %3307 = vmatpush1.msra.mxu0 %v3265
  %3308 = vmatprep.subr.mxu0 0.0
  %3309 = vmatpush1.msra.mxu0 %v3264
  %3310 = vmatprep.subr.mxu0 0.0
  %3311 = vmatpush2.msra.mxu0 0.0
  %3312 = vmatprep.subr.mxu0 0.0
  %3313 = vmatpush2.msra.mxu0 0.0
  %3314 = vmatprep.subr.mxu0 0.0
  %3315 = vmatpush2.msra.mxu0 0.0
  %3316 = vmatprep.subr.mxu0 0.0
  %3317 = vmatpush2.msra.mxu0 0.0
  %3318 = vmatprep.subr.mxu0 0.0
  %3319 = vmatpush2.msra.mxu0 0.0
  %3320 = vmatprep.subr.mxu0 0.0
  %3321 = vmatpush2.msra.mxu0 0.0
  %3322 = vmatprep.subr.mxu0 0.0
  %3323 = vmatpush2.msra.mxu0 0.0
  %3324 = vmatprep.subr.mxu0 0.0
  %3325 = vmatpush2.msra.mxu0 0.0
  %3326 = vmatprep.subr.mxu0 0.0
  %3327 = vmatpush2.msra.mxu0 0.0
  %3328 = vmatprep.subr.mxu0 0.0
  %3329 = vmatpush2.msra.mxu0 0.0
  %3330 = vmatprep.subr.mxu0 0.0
  %3331 = vmatpush2.msra.mxu0 0.0
  %3332 = vmatprep.subr.mxu0 0.0
  %3333 = vmatpush2.msra.mxu0 0.0
  %3334 = vmatprep.subr.mxu0 0.0
  %3335 = vmatpush2.msra.mxu0 0.0
  %3336 = vmatprep.subr.mxu0 0.0
  %3337 = vmatpush2.msra.mxu0 0.0
  %3338 = vmatprep.subr.mxu0 0.0
  %3339 = vmatpush2.msra.mxu0 0.0
  %3340 = vmatprep.subr.mxu0 0.0
  %3341 = vmatpush2.msra.mxu0 0.0
  %3342 = vmatprep.mubr.f32.mxu0 0.0
  %3343 = vmatmul.mubr.f32.gmra.mxu0 %v3267
  %v3344 = vpop.f32.mrf.mxu0
  %v3345 = vadd.f32 0.0, %v3344
  %v3346 = vpop.f32.mrf.mxu0
  %3347 = vmatprep.mubr.f32.mxu0 0.0
  %3348 = vmatmul.mubr.f32.gmra.mxu0 %v3270
  %v3349 = vpop.f32.mrf.mxu0
  %v3350 = vadd.f32 0.0, %v3349
  %v3351 = vpop.f32.mrf.mxu0
  %3352 = vmatprep.mubr.f32.mxu0 0.0
  %3353 = vmatmul.mubr.f32.gmra.mxu0 %v3273
  %v3354 = vpop.f32.mrf.mxu0
  %v3355 = vadd.f32 0.0, %v3354
  %v3356 = vpop.f32.mrf.mxu0
  %3357 = vmatprep.mubr.f32.mxu0 0.0
  %3358 = vmatmul.mubr.f32.gmra.mxu0 %v3276
  %v3359 = vpop.f32.mrf.mxu0
  %v3360 = vadd.f32 0.0, %v3359
  %v3361 = vpop.f32.mrf.mxu0
  %3362 = vdwg.mxu0
  %3363 = vmatprep.subr.mxu0 0.0
  %3364 = vmatpush1.msra.mxu0 0.0
  %3365 = vmatprep.subr.mxu0 0.0
  %3366 = vmatpush1.msra.mxu0 0.0
  %3367 = vmatprep.subr.mxu0 0.0
  %3368 = vmatpush1.msra.mxu0 0.0
  %3369 = vmatprep.subr.mxu0 0.0
  %3370 = vmatpush1.msra.mxu0 0.0
  %3371 = vmatprep.subr.mxu0 0.0
  %3372 = vmatpush1.msra.mxu0 0.0
  %3373 = vmatprep.subr.mxu0 0.0
  %3374 = vmatpush1.msra.mxu0 0.0
  %3375 = vmatprep.subr.mxu0 0.0
  %3376 = vmatpush1.msra.mxu0 0.0
  %3377 = vmatprep.subr.mxu0 0.0
  %3378 = vmatpush1.msra.mxu0 0.0
  %3379 = vmatprep.subr.mxu0 0.0
  %3380 = vmatpush1.msra.mxu0 0.0
  %3381 = vmatprep.subr.mxu0 0.0
  %3382 = vmatpush1.msra.mxu0 0.0
  %3383 = vmatprep.subr.mxu0 0.0
  %3384 = vmatpush1.msra.mxu0 0.0
  %3385 = vmatprep.subr.mxu0 0.0
  %3386 = vmatpush1.msra.mxu0 0.0
  %3387 = vmatprep.subr.mxu0 0.0
  %3388 = vmatpush1.msra.mxu0 %v3263
  %3389 = vmatprep.subr.mxu0 0.0
  %3390 = vmatpush1.msra.mxu0 %v3262
  %3391 = vmatprep.subr.mxu0 0.0
  %3392 = vmatpush1.msra.mxu0 %v3261
  %3393 = vmatprep.subr.mxu0 0.0
  %3394 = vmatpush1.msra.mxu0 %v3260
  %3395 = vmatprep.subr.mxu0 0.0
  %3396 = vmatpush2.msra.mxu0 0.0
  %3397 = vmatprep.subr.mxu0 0.0
  %3398 = vmatpush2.msra.mxu0 0.0
  %3399 = vmatprep.subr.mxu0 0.0
  %3400 = vmatpush2.msra.mxu0 0.0
  %3401 = vmatprep.subr.mxu0 0.0
  %3402 = vmatpush2.msra.mxu0 0.0
  %3403 = vmatprep.subr.mxu0 0.0
  %3404 = vmatpush2.msra.mxu0 0.0
  %3405 = vmatprep.subr.mxu0 0.0
  %3406 = vmatpush2.msra.mxu0 0.0
  %3407 = vmatprep.subr.mxu0 0.0
  %3408 = vmatpush2.msra.mxu0 0.0
  %3409 = vmatprep.subr.mxu0 0.0
  %3410 = vmatpush2.msra.mxu0 0.0
  %3411 = vmatprep.subr.mxu0 0.0
  %3412 = vmatpush2.msra.mxu0 0.0
  %3413 = vmatprep.subr.mxu0 0.0
  %3414 = vmatpush2.msra.mxu0 0.0
  %3415 = vmatprep.subr.mxu0 0.0
  %3416 = vmatpush2.msra.mxu0 0.0
  %3417 = vmatprep.subr.mxu0 0.0
  %3418 = vmatpush2.msra.mxu0 0.0
  %3419 = vmatprep.subr.mxu0 0.0
  %3420 = vmatpush2.msra.mxu0 0.0
  %3421 = vmatprep.subr.mxu0 0.0
  %3422 = vmatpush2.msra.mxu0 0.0
  %3423 = vmatprep.subr.mxu0 0.0
  %3424 = vmatpush2.msra.mxu0 0.0
  %3425 = vmatprep.subr.mxu0 0.0
  %3426 = vmatpush2.msra.mxu0 0.0
  %3427 = vmatprep.mubr.f32.mxu0 0.0
  %3428 = vmatmul.mubr.f32.gmra.mxu0 %v3164
  %v3429 = vpop.f32.mrf.mxu0
  %v3430 = vadd.f32 %v3345, %v3429
  %v3431 = vpop.f32.mrf.mxu0
  %3432 = vmatprep.mubr.f32.mxu0 0.0
  %3433 = vmatmul.mubr.f32.gmra.mxu0 %v3167
  %v3434 = vpop.f32.mrf.mxu0
  %v3435 = vadd.f32 %v3350, %v3434
  %v3436 = vpop.f32.mrf.mxu0
  %3437 = vmatprep.mubr.f32.mxu0 0.0
  %3438 = vmatmul.mubr.f32.gmra.mxu0 %v3170
  %v3439 = vpop.f32.mrf.mxu0
  %v3440 = vadd.f32 %v3355, %v3439
  %v3441 = vpop.f32.mrf.mxu0
  %3442 = vmatprep.mubr.f32.mxu0 0.0
  %3443 = vmatmul.mubr.f32.gmra.mxu0 %v3173
  %v3444 = vpop.f32.mrf.mxu0
  %v3445 = vadd.f32 %v3360, %v3444
  %v3446 = vpop.f32.mrf.mxu0
  %3447 = vdwg.mxu0
  %v3448 = vld [vmem:[%s21] sm:$0x1]
  %v3450 = vlaneseq
  %v3451 = vshrl.u32 %v3450, 7
  %v3452 = vsub.s32 0, %v3451
  %v3453 = vrot.slane %v3448, %v3452
  %v3455 = vadd.f32 %v3430, %v3453
  %v3456 = vadd.f32 %v3435, %v3453
  %v3457 = vadd.f32 %v3440, %v3453
  %v3458 = vadd.f32 %v3445, %v3453
  %3459 = vst [vmem:[%s22] sm:$0xff] %v3455
  %3460 = vst [vmem:[%s22 + $0x8] sm:$0xff] %v3456
  %3461 = vst [vmem:[%s22 + $0x10] sm:$0xff] %v3457
  %3462 = vst [vmem:[%s22 + $0x18] sm:$0xff] %v3458
  // Predicated region
  $region90: #{_lambda_.1} parent=0 // pred_check
    _
  $region91: #{_lambda_.1} parent=0 // pred_check_branch
    %3464 = sbr.rel (0) target = $region93
  $region92: #{_lambda_.1} parent=0 // pred_region
    _
  $region93: #{_lambda_.1} parent=0 // pred_fallthru
    _
  // Predicated region
  $region94: #{_lambda_.1} parent=0 // pred_check
    _
  $region95: #{_lambda_.1} parent=0 // pred_check_branch
    %3466 = sbr.rel (0) target = $region97
  $region96: #{_lambda_.1} parent=0 // pred_region
    _
  $region97: #{_lambda_.1} parent=0 // pred_fallthru
    _

</llo_original>
